<compile_context>
chip_gen: v7x
topology: tpu7x:2x2x1
jax: 0.10.0
libtpu: 0.0.40
codegen_flags: <defaults>
</compile_context>

<pallas_src>
import functools

import jax
import jax.numpy as jnp
from jax import lax
from jax.experimental import pallas as pl
from jax.experimental.pallas import tpu as pltpu


# ----------------------------- Pallas kernel -------------------------------

def _embeddings_kernel(idx_ref, sel_tab_ref, node_tab_ref, gamma_ref, beta_ref,
                       out_ref, *, V, P, K2, eps):
    """Fused embedding sum + walk bias + LayerNorm for one tile of rows.

    idx_ref      : (tile_n, 3 + K2) int32, columns = [word, pos, type, walks...]
    sel_tab_ref  : (V + P + T, H) rows = [word_tab | pos_tab | type_tab]
    node_tab_ref : (V_pad, H)     rows = node @ W.T * (1/K), zero-padded to 128
    """
    f32 = jnp.float32

    # ---- word / position / token-type lookups: one one-hot MXU matmul ------
    C_sel = sel_tab_ref.shape[0]                         # V + P + T
    iota_sel = lax.broadcasted_iota(jnp.int32, (1, C_sel), 1)
    iota_pos = iota_sel - V                              # pre-shifted constants
    iota_typ = iota_sel - (V + P)

    # The three one-hot segments are disjoint, so a single OR builds all three.
    sel = ((idx_ref[:, 0:1] == iota_sel)
           | (idx_ref[:, 1:2] == iota_pos)
           | (idx_ref[:, 2:3] == iota_typ)).astype(sel_tab_ref.dtype)
    x = jnp.dot(sel, sel_tab_ref[...], preferred_element_type=f32)

    # ---- walk-path bias: histogram over the (narrow) node vocab ------------
    # Both walks share one counts accumulator; the 1/K mean scale and the bias
    # Linear are already folded into node_tab.
    Vp = node_tab_ref.shape[0]
    iota_v = lax.broadcasted_iota(jnp.int32, (1, Vp), 1)
    counts = (idx_ref[:, 3:4] == iota_v).astype(f32)
    for k in range(1, K2):                               # small & static -> unrolled
        counts = counts + (idx_ref[:, 3 + k:4 + k] == iota_v).astype(f32)
    # TODO(synk): if K2 grows past ~30, switch to lax.fori_loop(..., unroll=True)
    # with counts as the carry to bound live ranges.
    x = x + jnp.dot(counts.astype(node_tab_ref.dtype), node_tab_ref[...],
                    preferred_element_type=f32)

    # ---- LayerNorm over the hidden dim (biased variance, eps inside rsqrt) --
    mu = jnp.mean(x, axis=-1, keepdims=True)
    var = jnp.mean((x - mu) ** 2, axis=-1, keepdims=True)
    y = (x - mu) * lax.rsqrt(var + eps)
    out_ref[...] = y * gamma_ref[...] + beta_ref[...]
    # TODO(synk): nn.Dropout omitted (eval-mode forward => identity).


# ------------------------------- wrapper ------------------------------------

def protein_sge_embeddings(params, input_ids, token_type_ids, position_ids,
                           random_walk, anonymous_random_walk,
                           *, eps=1e-12, tile_n=128,
                           table_dtype=jnp.float32,
                           core_parallel=False):
    """tile_n=128 suits toy N; for real B*S sweep 256-1024 (amortizes per-step
    overhead and fills the 256-wide MXU)."""
    B, S = input_ids.shape
    V, H = params["word"].shape
    P = params["pos"].shape[0]
    T = params["type"].shape[0]
    Wn, L = random_walk.shape[2], random_walk.shape[3]
    K = Wn * L
    K2 = 2 * K
    N = B * S

    # word | pos | type lookup table (disjoint one-hot column segments).
    sel_tab = jnp.concatenate([params["word"], params["pos"], params["type"]],
                              axis=0).astype(table_dtype)
    C_sel = sel_tab.shape[0]

    # Fold the bias Linear AND the 1/K walk-mean scale into the node table:
    #   (counts / K) @ node @ W.T == counts @ (node @ W.T * (1/K))
    # Pad rows to a multiple of 128 so the in-kernel histogram is lane-aligned
    # (padded rows are zero and never matched, walk ids < V).
    fused_node = (params["node"] @ params["lin"].T) * (1.0 / K)
    Vp = 128 * pl.cdiv(V, 128)
    if Vp != V:
        fused_node = jnp.pad(fused_node, ((0, Vp - V), (0, 0)))
    fused_node = fused_node.astype(table_dtype)

    # One merged int32 index array -> a single DMA per tile instead of five.
    idx = jnp.concatenate(
        [input_ids.reshape(N, 1), position_ids.reshape(N, 1),
         token_type_ids.reshape(N, 1),
         random_walk.reshape(N, K), anonymous_random_walk.reshape(N, K)],
        axis=1).astype(jnp.int32)

    # Pad rows to a multiple of tile_n (pad index 0 is a valid lookup for all
    # tables; padded rows are sliced off below).
    n_pad = tile_n * pl.cdiv(N, tile_n)
    if n_pad != N:
        idx = jnp.pad(idx, ((0, n_pad - N), (0, 0)))

    # v7x: CORE_PARALLEL actually shards row tiles across both TensorCores;
    # plain "parallel" is the portable default.
    sem = (pltpu.CORE_PARALLEL,) if core_parallel else ("parallel",)

    # NOTE: the tables / gamma / beta are tiny (<100 KB) and fully resident; if
    # vocab / max_position grow large, single-buffer them (pl.Buffered(1)) or
    # cast to bf16 for residency and raise vmem_limit_bytes (v7x: 64 MiB VMEM).
    out = pl.pallas_call(
        functools.partial(_embeddings_kernel, V=V, P=P, K2=K2, eps=eps),
        out_shape=jax.ShapeDtypeStruct((n_pad, H), jnp.float32),
        grid_spec=pltpu.PrefetchScalarGridSpec(
            num_scalar_prefetch=0,
            grid=(n_pad // tile_n,),
            in_specs=[
                pl.BlockSpec((tile_n, 3 + K2), lambda i: (i, 0)),  # merged ids
                pl.BlockSpec((C_sel, H), lambda i: (0, 0)),        # word|pos|type
                pl.BlockSpec((Vp, H), lambda i: (0, 0)),           # node @ W.T / K
                pl.BlockSpec((1, H), lambda i: (0, 0)),            # gamma
                pl.BlockSpec((1, H), lambda i: (0, 0)),            # beta
            ],
            out_specs=pl.BlockSpec((tile_n, H), lambda i: (i, 0)),
        ),
        compiler_params=pltpu.CompilerParams(dimension_semantics=sem),
    )(idx, sel_tab, fused_node,
      params["gamma"].reshape(1, H), params["beta"].reshape(1, H))

    return out[:N].reshape(B, S, H)


# --------------------------- pure-JAX reference ------------------------------

def reference_forward(params, input_ids, token_type_ids, position_ids,
                      random_walk, anonymous_random_walk, *, eps=1e-12):
    we = params["word"][input_ids]
    pe = params["pos"][position_ids]
    te = params["type"][token_type_ids]

    def bias(walk):
        e = params["node"][walk]                 # (B, S, W, L, H)
        m = e.mean(axis=(2, 3))                  # (B, S, H)
        return m @ params["lin"].T

    b = bias(random_walk) + bias(anonymous_random_walk)
    x = we + pe + te + b
    mu = x.mean(axis=-1, keepdims=True)
    var = ((x - mu) ** 2).mean(axis=-1, keepdims=True)
    y = (x - mu) / jnp.sqrt(var + eps)
    return y * params["gamma"] + params["beta"]


# --------------------------------- main --------------------------------------

if __name__ == "__main__":
    # Small synthetic config.  H=128 keeps table rows / output stores
    # lane-dense; N = B*S = 256 gives a 2-step parallel grid at tile_n=128.
    vocab_size = 24
    hidden_size = 128
    max_position_embeddings = 128
    type_vocab_size = 2
    layer_norm_eps = 1e-12
    B, S, W, L = 2, 128, 3, 5            # batch, seq, num_walks, walk_len

    key = jax.random.PRNGKey(0)
    ks = jax.random.split(key, 10)

    def tab(k, n, h, zero_pad=False):
        t = 0.02 * jax.random.normal(k, (n, h), dtype=jnp.float32)
        if zero_pad:
            t = t.at[0].set(0.0)       # padding_idx=0
        return t

    params = {
        "word": tab(ks[0], vocab_size, hidden_size, zero_pad=True),
        "pos": tab(ks[1], max_position_embeddings, hidden_size),
        "type": tab(ks[2], type_vocab_size, hidden_size),
        "node": tab(ks[3], vocab_size, hidden_size, zero_pad=True),
        "lin": 0.1 * jax.random.normal(ks[4], (hidden_size, hidden_size),
                                       dtype=jnp.float32),
        "gamma": 1.0 + 0.05 * jax.random.normal(ks[5], (hidden_size,),
                                                dtype=jnp.float32),
        "beta": 0.05 * jax.random.normal(ks[6], (hidden_size,),
                                         dtype=jnp.float32),
    }

    input_ids = jax.random.randint(ks[7], (B, S), 0, vocab_size, dtype=jnp.int32)
    position_ids = jnp.broadcast_to(jnp.arange(S, dtype=jnp.int32)[None, :],
                                    (B, S))
    token_type_ids = jnp.zeros((B, S), dtype=jnp.int32)
    random_walk = jax.random.randint(ks[8], (B, S, W, L), 0, vocab_size,
                                     dtype=jnp.int32)
    anonymous_random_walk = jax.random.randint(ks[9], (B, S, W, L), 0,
                                               vocab_size, dtype=jnp.int32)

    ref = reference_forward(params, input_ids, token_type_ids, position_ids,
                            random_walk, anonymous_random_walk,
                            eps=layer_norm_eps)

    # Default path: f32 tables (best choice on v5e/v6e in this VALU-bound
    # regime) -> tight check.
    out = protein_sge_embeddings(params, input_ids, token_type_ids,
                                 position_ids, random_walk,
                                 anonymous_random_walk,
                                 eps=layer_norm_eps, tile_n=128,
                                 table_dtype=jnp.float32)
    out = jax.block_until_ready(out)
    assert out.shape == (B, S, hidden_size)
    assert jnp.allclose(out, ref, rtol=1e-4, atol=1e-4), (
        float(jnp.max(jnp.abs(out - ref))))

    # Optional bf16-table path (measured option only; 1/K fold keeps counts
    # exact, so only table precision changes) -> looser check.
    out_bf16 = protein_sge_embeddings(params, input_ids, token_type_ids,
                                      position_ids, random_walk,
                                      anonymous_random_walk,
                                      eps=layer_norm_eps, tile_n=128,
                                      table_dtype=jnp.bfloat16)
    out_bf16 = jax.block_until_ready(out_bf16)
    assert jnp.allclose(out_bf16, ref, rtol=5e-2, atol=5e-2), (
        float(jnp.max(jnp.abs(out_bf16 - ref))))

    print("KERNEL_OK")
</pallas_src>

<mosaic_0001>
module attributes {stable_mosaic.version = 11 : i64} {
  func.func @_embeddings_kernel(%arg0: i32, %arg1: memref<128x33xi32, #tpu.memory_space<vmem>>, %arg2: memref<154x128xf32, #tpu.memory_space<vmem>>, %arg3: memref<128x128xf32, #tpu.memory_space<vmem>>, %arg4: memref<1x128xf32, #tpu.memory_space<vmem>>, %arg5: memref<1x128xf32, #tpu.memory_space<vmem>>, %arg6: memref<128x128xf32, #tpu.memory_space<vmem>>) attributes {dimension_semantics = [#tpu.dimension_semantics<parallel>], iteration_bounds = array<i64: 2>, scalar_prefetch = 0 : i64, scratch_operands = 0 : i64, tpu.core_type = #tpu.core_type<tc>, window_params = [{transform_indices = @transform_0, window_bounds = array<i64: 128, 33>}, {pipeline_mode = #tpu.pipeline_mode<synchronous>, transform_indices = @transform_1, window_bounds = array<i64: 154, 128>}, {pipeline_mode = #tpu.pipeline_mode<synchronous>, transform_indices = @transform_2, window_bounds = array<i64: 128, 128>}, {pipeline_mode = #tpu.pipeline_mode<synchronous>, transform_indices = @transform_3, window_bounds = array<i64: 1, 128>}, {pipeline_mode = #tpu.pipeline_mode<synchronous>, transform_indices = @transform_4, window_bounds = array<i64: 1, 128>}, {transform_indices = @transform_5, window_bounds = array<i64: 128, 128>}]} {
    %0 = tpu.iota {dimensions = array<i32: 1>} : vector<1x154xi32>
    %c24_i32 = arith.constant 24 : i32
    %1 = vector.broadcast %c24_i32 : i32 to vector<1x154xi32>
    %2 = arith.subi %0, %1 : vector<1x154xi32>
    %c152_i32 = arith.constant 152 : i32
    %3 = vector.broadcast %c152_i32 : i32 to vector<1x154xi32>
    %4 = arith.subi %0, %3 : vector<1x154xi32>
    %c0 = arith.constant 0 : index
    %c0_0 = arith.constant 0 : index
    %5 = vector.load %arg1[%c0, %c0_0] : memref<128x33xi32, #tpu.memory_space<vmem>>, vector<128x1xi32>
    %6 = vector.broadcast %5 : vector<128x1xi32> to vector<128x154xi32>
    %7 = vector.broadcast %0 : vector<1x154xi32> to vector<128x154xi32>
    %8 = arith.cmpi eq, %6, %7 : vector<128x154xi32>
    %c0_1 = arith.constant 0 : index
    %c1 = arith.constant 1 : index
    %9 = vector.load %arg1[%c0_1, %c1] : memref<128x33xi32, #tpu.memory_space<vmem>>, vector<128x1xi32>
    %10 = vector.broadcast %9 : vector<128x1xi32> to vector<128x154xi32>
    %11 = vector.broadcast %2 : vector<1x154xi32> to vector<128x154xi32>
    %12 = arith.cmpi eq, %10, %11 : vector<128x154xi32>
    %13 = arith.ori %8, %12 : vector<128x154xi1>
    %c0_2 = arith.constant 0 : index
    %c2 = arith.constant 2 : index
    %14 = vector.load %arg1[%c0_2, %c2] : memref<128x33xi32, #tpu.memory_space<vmem>>, vector<128x1xi32>
    %15 = vector.broadcast %14 : vector<128x1xi32> to vector<128x154xi32>
    %16 = vector.broadcast %4 : vector<1x154xi32> to vector<128x154xi32>
    %17 = arith.cmpi eq, %15, %16 : vector<128x154xi32>
    %18 = arith.ori %13, %17 : vector<128x154xi1>
    %19 = arith.extui %18 : vector<128x154xi1> to vector<128x154xi32>
    %20 = arith.sitofp %19 : vector<128x154xi32> to vector<128x154xf32>
    %c0_3 = arith.constant 0 : index
    %c0_4 = arith.constant 0 : index
    %21 = vector.load %arg2[%c0_3, %c0_4] : memref<154x128xf32, #tpu.memory_space<vmem>>, vector<154x128xf32>
    %cst = arith.constant dense<0.000000e+00> : vector<128x128xf32>
    %22 = tpu.matmul %20, %21, %cst {dimension_numbers = #tpu.dot_dimension_numbers<[1], [0], [0], [1], [0, 0, 1, 1], [], []>} : vector<128x154xf32>, vector<154x128xf32>, vector<128x128xf32> -> vector<128x128xf32>
    %23 = tpu.iota {dimensions = array<i32: 1>} : vector<1x128xi32>
    %c0_5 = arith.constant 0 : index
    %c3 = arith.constant 3 : index
    %24 = vector.load %arg1[%c0_5, %c3] : memref<128x33xi32, #tpu.memory_space<vmem>>, vector<128x1xi32>
    %25 = vector.broadcast %24 : vector<128x1xi32> to vector<128x128xi32>
    %26 = vector.broadcast %23 : vector<1x128xi32> to vector<128x128xi32>
    %27 = arith.cmpi eq, %25, %26 : vector<128x128xi32>
    %28 = arith.extui %27 : vector<128x128xi1> to vector<128x128xi32>
    %29 = arith.sitofp %28 : vector<128x128xi32> to vector<128x128xf32>
    %c0_6 = arith.constant 0 : index
    %c4 = arith.constant 4 : index
    %30 = vector.load %arg1[%c0_6, %c4] : memref<128x33xi32, #tpu.memory_space<vmem>>, vector<128x1xi32>
    %31 = vector.broadcast %30 : vector<128x1xi32> to vector<128x128xi32>
    %32 = vector.broadcast %23 : vector<1x128xi32> to vector<128x128xi32>
    %33 = arith.cmpi eq, %31, %32 : vector<128x128xi32>
    %34 = arith.extui %33 : vector<128x128xi1> to vector<128x128xi32>
    %35 = arith.sitofp %34 : vector<128x128xi32> to vector<128x128xf32>
    %36 = arith.addf %29, %35 : vector<128x128xf32>
    %c0_7 = arith.constant 0 : index
    %c5 = arith.constant 5 : index
    %37 = vector.load %arg1[%c0_7, %c5] : memref<128x33xi32, #tpu.memory_space<vmem>>, vector<128x1xi32>
    %38 = vector.broadcast %37 : vector<128x1xi32> to vector<128x128xi32>
    %39 = vector.broadcast %23 : vector<1x128xi32> to vector<128x128xi32>
    %40 = arith.cmpi eq, %38, %39 : vector<128x128xi32>
    %41 = arith.extui %40 : vector<128x128xi1> to vector<128x128xi32>
    %42 = arith.sitofp %41 : vector<128x128xi32> to vector<128x128xf32>
    %43 = arith.addf %36, %42 : vector<128x128xf32>
    %c0_8 = arith.constant 0 : index
    %c6 = arith.constant 6 : index
    %44 = vector.load %arg1[%c0_8, %c6] : memref<128x33xi32, #tpu.memory_space<vmem>>, vector<128x1xi32>
    %45 = vector.broadcast %44 : vector<128x1xi32> to vector<128x128xi32>
    %46 = vector.broadcast %23 : vector<1x128xi32> to vector<128x128xi32>
    %47 = arith.cmpi eq, %45, %46 : vector<128x128xi32>
    %48 = arith.extui %47 : vector<128x128xi1> to vector<128x128xi32>
    %49 = arith.sitofp %48 : vector<128x128xi32> to vector<128x128xf32>
    %50 = arith.addf %43, %49 : vector<128x128xf32>
    %c0_9 = arith.constant 0 : index
    %c7 = arith.constant 7 : index
    %51 = vector.load %arg1[%c0_9, %c7] : memref<128x33xi32, #tpu.memory_space<vmem>>, vector<128x1xi32>
    %52 = vector.broadcast %51 : vector<128x1xi32> to vector<128x128xi32>
    %53 = vector.broadcast %23 : vector<1x128xi32> to vector<128x128xi32>
    %54 = arith.cmpi eq, %52, %53 : vector<128x128xi32>
    %55 = arith.extui %54 : vector<128x128xi1> to vector<128x128xi32>
    %56 = arith.sitofp %55 : vector<128x128xi32> to vector<128x128xf32>
    %57 = arith.addf %50, %56 : vector<128x128xf32>
    %c0_10 = arith.constant 0 : index
    %c8 = arith.constant 8 : index
    %58 = vector.load %arg1[%c0_10, %c8] : memref<128x33xi32, #tpu.memory_space<vmem>>, vector<128x1xi32>
    %59 = vector.broadcast %58 : vector<128x1xi32> to vector<128x128xi32>
    %60 = vector.broadcast %23 : vector<1x128xi32> to vector<128x128xi32>
    %61 = arith.cmpi eq, %59, %60 : vector<128x128xi32>
    %62 = arith.extui %61 : vector<128x128xi1> to vector<128x128xi32>
    %63 = arith.sitofp %62 : vector<128x128xi32> to vector<128x128xf32>
    %64 = arith.addf %57, %63 : vector<128x128xf32>
    %c0_11 = arith.constant 0 : index
    %c9 = arith.constant 9 : index
    %65 = vector.load %arg1[%c0_11, %c9] : memref<128x33xi32, #tpu.memory_space<vmem>>, vector<128x1xi32>
    %66 = vector.broadcast %65 : vector<128x1xi32> to vector<128x128xi32>
    %67 = vector.broadcast %23 : vector<1x128xi32> to vector<128x128xi32>
    %68 = arith.cmpi eq, %66, %67 : vector<128x128xi32>
    %69 = arith.extui %68 : vector<128x128xi1> to vector<128x128xi32>
    %70 = arith.sitofp %69 : vector<128x128xi32> to vector<128x128xf32>
    %71 = arith.addf %64, %70 : vector<128x128xf32>
    %c0_12 = arith.constant 0 : index
    %c10 = arith.constant 10 : index
    %72 = vector.load %arg1[%c0_12, %c10] : memref<128x33xi32, #tpu.memory_space<vmem>>, vector<128x1xi32>
    %73 = vector.broadcast %72 : vector<128x1xi32> to vector<128x128xi32>
    %74 = vector.broadcast %23 : vector<1x128xi32> to vector<128x128xi32>
    %75 = arith.cmpi eq, %73, %74 : vector<128x128xi32>
    %76 = arith.extui %75 : vector<128x128xi1> to vector<128x128xi32>
    %77 = arith.sitofp %76 : vector<128x128xi32> to vector<128x128xf32>
    %78 = arith.addf %71, %77 : vector<128x128xf32>
    %c0_13 = arith.constant 0 : index
    %c11 = arith.constant 11 : index
    %79 = vector.load %arg1[%c0_13, %c11] : memref<128x33xi32, #tpu.memory_space<vmem>>, vector<128x1xi32>
    %80 = vector.broadcast %79 : vector<128x1xi32> to vector<128x128xi32>
    %81 = vector.broadcast %23 : vector<1x128xi32> to vector<128x128xi32>
    %82 = arith.cmpi eq, %80, %81 : vector<128x128xi32>
    %83 = arith.extui %82 : vector<128x128xi1> to vector<128x128xi32>
    %84 = arith.sitofp %83 : vector<128x128xi32> to vector<128x128xf32>
    %85 = arith.addf %78, %84 : vector<128x128xf32>
    %c0_14 = arith.constant 0 : index
    %c12 = arith.constant 12 : index
    %86 = vector.load %arg1[%c0_14, %c12] : memref<128x33xi32, #tpu.memory_space<vmem>>, vector<128x1xi32>
    %87 = vector.broadcast %86 : vector<128x1xi32> to vector<128x128xi32>
    %88 = vector.broadcast %23 : vector<1x128xi32> to vector<128x128xi32>
    %89 = arith.cmpi eq, %87, %88 : vector<128x128xi32>
    %90 = arith.extui %89 : vector<128x128xi1> to vector<128x128xi32>
    %91 = arith.sitofp %90 : vector<128x128xi32> to vector<128x128xf32>
    %92 = arith.addf %85, %91 : vector<128x128xf32>
    %c0_15 = arith.constant 0 : index
    %c13 = arith.constant 13 : index
    %93 = vector.load %arg1[%c0_15, %c13] : memref<128x33xi32, #tpu.memory_space<vmem>>, vector<128x1xi32>
    %94 = vector.broadcast %93 : vector<128x1xi32> to vector<128x128xi32>
    %95 = vector.broadcast %23 : vector<1x128xi32> to vector<128x128xi32>
    %96 = arith.cmpi eq, %94, %95 : vector<128x128xi32>
    %97 = arith.extui %96 : vector<128x128xi1> to vector<128x128xi32>
    %98 = arith.sitofp %97 : vector<128x128xi32> to vector<128x128xf32>
    %99 = arith.addf %92, %98 : vector<128x128xf32>
    %c0_16 = arith.constant 0 : index
    %c14 = arith.constant 14 : index
    %100 = vector.load %arg1[%c0_16, %c14] : memref<128x33xi32, #tpu.memory_space<vmem>>, vector<128x1xi32>
    %101 = vector.broadcast %100 : vector<128x1xi32> to vector<128x128xi32>
    %102 = vector.broadcast %23 : vector<1x128xi32> to vector<128x128xi32>
    %103 = arith.cmpi eq, %101, %102 : vector<128x128xi32>
    %104 = arith.extui %103 : vector<128x128xi1> to vector<128x128xi32>
    %105 = arith.sitofp %104 : vector<128x128xi32> to vector<128x128xf32>
    %106 = arith.addf %99, %105 : vector<128x128xf32>
    %c0_17 = arith.constant 0 : index
    %c15 = arith.constant 15 : index
    %107 = vector.load %arg1[%c0_17, %c15] : memref<128x33xi32, #tpu.memory_space<vmem>>, vector<128x1xi32>
    %108 = vector.broadcast %107 : vector<128x1xi32> to vector<128x128xi32>
    %109 = vector.broadcast %23 : vector<1x128xi32> to vector<128x128xi32>
    %110 = arith.cmpi eq, %108, %109 : vector<128x128xi32>
    %111 = arith.extui %110 : vector<128x128xi1> to vector<128x128xi32>
    %112 = arith.sitofp %111 : vector<128x128xi32> to vector<128x128xf32>
    %113 = arith.addf %106, %112 : vector<128x128xf32>
    %c0_18 = arith.constant 0 : index
    %c16 = arith.constant 16 : index
    %114 = vector.load %arg1[%c0_18, %c16] : memref<128x33xi32, #tpu.memory_space<vmem>>, vector<128x1xi32>
    %115 = vector.broadcast %114 : vector<128x1xi32> to vector<128x128xi32>
    %116 = vector.broadcast %23 : vector<1x128xi32> to vector<128x128xi32>
    %117 = arith.cmpi eq, %115, %116 : vector<128x128xi32>
    %118 = arith.extui %117 : vector<128x128xi1> to vector<128x128xi32>
    %119 = arith.sitofp %118 : vector<128x128xi32> to vector<128x128xf32>
    %120 = arith.addf %113, %119 : vector<128x128xf32>
    %c0_19 = arith.constant 0 : index
    %c17 = arith.constant 17 : index
    %121 = vector.load %arg1[%c0_19, %c17] : memref<128x33xi32, #tpu.memory_space<vmem>>, vector<128x1xi32>
    %122 = vector.broadcast %121 : vector<128x1xi32> to vector<128x128xi32>
    %123 = vector.broadcast %23 : vector<1x128xi32> to vector<128x128xi32>
    %124 = arith.cmpi eq, %122, %123 : vector<128x128xi32>
    %125 = arith.extui %124 : vector<128x128xi1> to vector<128x128xi32>
    %126 = arith.sitofp %125 : vector<128x128xi32> to vector<128x128xf32>
    %127 = arith.addf %120, %126 : vector<128x128xf32>
    %c0_20 = arith.constant 0 : index
    %c18 = arith.constant 18 : index
    %128 = vector.load %arg1[%c0_20, %c18] : memref<128x33xi32, #tpu.memory_space<vmem>>, vector<128x1xi32>
    %129 = vector.broadcast %128 : vector<128x1xi32> to vector<128x128xi32>
    %130 = vector.broadcast %23 : vector<1x128xi32> to vector<128x128xi32>
    %131 = arith.cmpi eq, %129, %130 : vector<128x128xi32>
    %132 = arith.extui %131 : vector<128x128xi1> to vector<128x128xi32>
    %133 = arith.sitofp %132 : vector<128x128xi32> to vector<128x128xf32>
    %134 = arith.addf %127, %133 : vector<128x128xf32>
    %c0_21 = arith.constant 0 : index
    %c19 = arith.constant 19 : index
    %135 = vector.load %arg1[%c0_21, %c19] : memref<128x33xi32, #tpu.memory_space<vmem>>, vector<128x1xi32>
    %136 = vector.broadcast %135 : vector<128x1xi32> to vector<128x128xi32>
    %137 = vector.broadcast %23 : vector<1x128xi32> to vector<128x128xi32>
    %138 = arith.cmpi eq, %136, %137 : vector<128x128xi32>
    %139 = arith.extui %138 : vector<128x128xi1> to vector<128x128xi32>
    %140 = arith.sitofp %139 : vector<128x128xi32> to vector<128x128xf32>
    %141 = arith.addf %134, %140 : vector<128x128xf32>
    %c0_22 = arith.constant 0 : index
    %c20 = arith.constant 20 : index
    %142 = vector.load %arg1[%c0_22, %c20] : memref<128x33xi32, #tpu.memory_space<vmem>>, vector<128x1xi32>
    %143 = vector.broadcast %142 : vector<128x1xi32> to vector<128x128xi32>
    %144 = vector.broadcast %23 : vector<1x128xi32> to vector<128x128xi32>
    %145 = arith.cmpi eq, %143, %144 : vector<128x128xi32>
    %146 = arith.extui %145 : vector<128x128xi1> to vector<128x128xi32>
    %147 = arith.sitofp %146 : vector<128x128xi32> to vector<128x128xf32>
    %148 = arith.addf %141, %147 : vector<128x128xf32>
    %c0_23 = arith.constant 0 : index
    %c21 = arith.constant 21 : index
    %149 = vector.load %arg1[%c0_23, %c21] : memref<128x33xi32, #tpu.memory_space<vmem>>, vector<128x1xi32>
    %150 = vector.broadcast %149 : vector<128x1xi32> to vector<128x128xi32>
    %151 = vector.broadcast %23 : vector<1x128xi32> to vector<128x128xi32>
    %152 = arith.cmpi eq, %150, %151 : vector<128x128xi32>
    %153 = arith.extui %152 : vector<128x128xi1> to vector<128x128xi32>
    %154 = arith.sitofp %153 : vector<128x128xi32> to vector<128x128xf32>
    %155 = arith.addf %148, %154 : vector<128x128xf32>
    %c0_24 = arith.constant 0 : index
    %c22 = arith.constant 22 : index
    %156 = vector.load %arg1[%c0_24, %c22] : memref<128x33xi32, #tpu.memory_space<vmem>>, vector<128x1xi32>
    %157 = vector.broadcast %156 : vector<128x1xi32> to vector<128x128xi32>
    %158 = vector.broadcast %23 : vector<1x128xi32> to vector<128x128xi32>
    %159 = arith.cmpi eq, %157, %158 : vector<128x128xi32>
    %160 = arith.extui %159 : vector<128x128xi1> to vector<128x128xi32>
    %161 = arith.sitofp %160 : vector<128x128xi32> to vector<128x128xf32>
    %162 = arith.addf %155, %161 : vector<128x128xf32>
    %c0_25 = arith.constant 0 : index
    %c23 = arith.constant 23 : index
    %163 = vector.load %arg1[%c0_25, %c23] : memref<128x33xi32, #tpu.memory_space<vmem>>, vector<128x1xi32>
    %164 = vector.broadcast %163 : vector<128x1xi32> to vector<128x128xi32>
    %165 = vector.broadcast %23 : vector<1x128xi32> to vector<128x128xi32>
    %166 = arith.cmpi eq, %164, %165 : vector<128x128xi32>
    %167 = arith.extui %166 : vector<128x128xi1> to vector<128x128xi32>
    %168 = arith.sitofp %167 : vector<128x128xi32> to vector<128x128xf32>
    %169 = arith.addf %162, %168 : vector<128x128xf32>
    %c0_26 = arith.constant 0 : index
    %c24 = arith.constant 24 : index
    %170 = vector.load %arg1[%c0_26, %c24] : memref<128x33xi32, #tpu.memory_space<vmem>>, vector<128x1xi32>
    %171 = vector.broadcast %170 : vector<128x1xi32> to vector<128x128xi32>
    %172 = vector.broadcast %23 : vector<1x128xi32> to vector<128x128xi32>
    %173 = arith.cmpi eq, %171, %172 : vector<128x128xi32>
    %174 = arith.extui %173 : vector<128x128xi1> to vector<128x128xi32>
    %175 = arith.sitofp %174 : vector<128x128xi32> to vector<128x128xf32>
    %176 = arith.addf %169, %175 : vector<128x128xf32>
    %c0_27 = arith.constant 0 : index
    %c25 = arith.constant 25 : index
    %177 = vector.load %arg1[%c0_27, %c25] : memref<128x33xi32, #tpu.memory_space<vmem>>, vector<128x1xi32>
    %178 = vector.broadcast %177 : vector<128x1xi32> to vector<128x128xi32>
    %179 = vector.broadcast %23 : vector<1x128xi32> to vector<128x128xi32>
    %180 = arith.cmpi eq, %178, %179 : vector<128x128xi32>
    %181 = arith.extui %180 : vector<128x128xi1> to vector<128x128xi32>
    %182 = arith.sitofp %181 : vector<128x128xi32> to vector<128x128xf32>
    %183 = arith.addf %176, %182 : vector<128x128xf32>
    %c0_28 = arith.constant 0 : index
    %c26 = arith.constant 26 : index
    %184 = vector.load %arg1[%c0_28, %c26] : memref<128x33xi32, #tpu.memory_space<vmem>>, vector<128x1xi32>
    %185 = vector.broadcast %184 : vector<128x1xi32> to vector<128x128xi32>
    %186 = vector.broadcast %23 : vector<1x128xi32> to vector<128x128xi32>
    %187 = arith.cmpi eq, %185, %186 : vector<128x128xi32>
    %188 = arith.extui %187 : vector<128x128xi1> to vector<128x128xi32>
    %189 = arith.sitofp %188 : vector<128x128xi32> to vector<128x128xf32>
    %190 = arith.addf %183, %189 : vector<128x128xf32>
    %c0_29 = arith.constant 0 : index
    %c27 = arith.constant 27 : index
    %191 = vector.load %arg1[%c0_29, %c27] : memref<128x33xi32, #tpu.memory_space<vmem>>, vector<128x1xi32>
    %192 = vector.broadcast %191 : vector<128x1xi32> to vector<128x128xi32>
    %193 = vector.broadcast %23 : vector<1x128xi32> to vector<128x128xi32>
    %194 = arith.cmpi eq, %192, %193 : vector<128x128xi32>
    %195 = arith.extui %194 : vector<128x128xi1> to vector<128x128xi32>
    %196 = arith.sitofp %195 : vector<128x128xi32> to vector<128x128xf32>
    %197 = arith.addf %190, %196 : vector<128x128xf32>
    %c0_30 = arith.constant 0 : index
    %c28 = arith.constant 28 : index
    %198 = vector.load %arg1[%c0_30, %c28] : memref<128x33xi32, #tpu.memory_space<vmem>>, vector<128x1xi32>
    %199 = vector.broadcast %198 : vector<128x1xi32> to vector<128x128xi32>
    %200 = vector.broadcast %23 : vector<1x128xi32> to vector<128x128xi32>
    %201 = arith.cmpi eq, %199, %200 : vector<128x128xi32>
    %202 = arith.extui %201 : vector<128x128xi1> to vector<128x128xi32>
    %203 = arith.sitofp %202 : vector<128x128xi32> to vector<128x128xf32>
    %204 = arith.addf %197, %203 : vector<128x128xf32>
    %c0_31 = arith.constant 0 : index
    %c29 = arith.constant 29 : index
    %205 = vector.load %arg1[%c0_31, %c29] : memref<128x33xi32, #tpu.memory_space<vmem>>, vector<128x1xi32>
    %206 = vector.broadcast %205 : vector<128x1xi32> to vector<128x128xi32>
    %207 = vector.broadcast %23 : vector<1x128xi32> to vector<128x128xi32>
    %208 = arith.cmpi eq, %206, %207 : vector<128x128xi32>
    %209 = arith.extui %208 : vector<128x128xi1> to vector<128x128xi32>
    %210 = arith.sitofp %209 : vector<128x128xi32> to vector<128x128xf32>
    %211 = arith.addf %204, %210 : vector<128x128xf32>
    %c0_32 = arith.constant 0 : index
    %c30 = arith.constant 30 : index
    %212 = vector.load %arg1[%c0_32, %c30] : memref<128x33xi32, #tpu.memory_space<vmem>>, vector<128x1xi32>
    %213 = vector.broadcast %212 : vector<128x1xi32> to vector<128x128xi32>
    %214 = vector.broadcast %23 : vector<1x128xi32> to vector<128x128xi32>
    %215 = arith.cmpi eq, %213, %214 : vector<128x128xi32>
    %216 = arith.extui %215 : vector<128x128xi1> to vector<128x128xi32>
    %217 = arith.sitofp %216 : vector<128x128xi32> to vector<128x128xf32>
    %218 = arith.addf %211, %217 : vector<128x128xf32>
    %c0_33 = arith.constant 0 : index
    %c31 = arith.constant 31 : index
    %219 = vector.load %arg1[%c0_33, %c31] : memref<128x33xi32, #tpu.memory_space<vmem>>, vector<128x1xi32>
    %220 = vector.broadcast %219 : vector<128x1xi32> to vector<128x128xi32>
    %221 = vector.broadcast %23 : vector<1x128xi32> to vector<128x128xi32>
    %222 = arith.cmpi eq, %220, %221 : vector<128x128xi32>
    %223 = arith.extui %222 : vector<128x128xi1> to vector<128x128xi32>
    %224 = arith.sitofp %223 : vector<128x128xi32> to vector<128x128xf32>
    %225 = arith.addf %218, %224 : vector<128x128xf32>
    %c0_34 = arith.constant 0 : index
    %c32 = arith.constant 32 : index
    %226 = vector.load %arg1[%c0_34, %c32] : memref<128x33xi32, #tpu.memory_space<vmem>>, vector<128x1xi32>
    %227 = vector.broadcast %226 : vector<128x1xi32> to vector<128x128xi32>
    %228 = vector.broadcast %23 : vector<1x128xi32> to vector<128x128xi32>
    %229 = arith.cmpi eq, %227, %228 : vector<128x128xi32>
    %230 = arith.extui %229 : vector<128x128xi1> to vector<128x128xi32>
    %231 = arith.sitofp %230 : vector<128x128xi32> to vector<128x128xf32>
    %232 = arith.addf %225, %231 : vector<128x128xf32>
    %c0_35 = arith.constant 0 : index
    %c0_36 = arith.constant 0 : index
    %233 = vector.load %arg3[%c0_35, %c0_36] : memref<128x128xf32, #tpu.memory_space<vmem>>, vector<128x128xf32>
    %cst_37 = arith.constant dense<0.000000e+00> : vector<128x128xf32>
    %234 = tpu.matmul %232, %233, %cst_37 {dimension_numbers = #tpu.dot_dimension_numbers<[1], [0], [0], [1], [0, 0, 1, 1], [], []>} : vector<128x128xf32>, vector<128x128xf32>, vector<128x128xf32> -> vector<128x128xf32>
    %235 = arith.addf %22, %234 : vector<128x128xf32>
    %cst_38 = arith.constant dense<0.000000e+00> : vector<128xf32>
    %236 = vector.multi_reduction <add>, %235, %cst_38 [1] : vector<128x128xf32> to vector<128xf32>
    %237 = vector.shape_cast %236 : vector<128xf32> to vector<128x1xf32>
    %cst_39 = arith.constant 1.280000e+02 : f32
    %238 = vector.broadcast %cst_39 : f32 to vector<128x1xf32>
    %239 = arith.divf %237, %238 : vector<128x1xf32>
    %240 = vector.broadcast %239 : vector<128x1xf32> to vector<128x128xf32>
    %241 = arith.subf %235, %240 : vector<128x128xf32>
    %242 = arith.mulf %241, %241 : vector<128x128xf32>
    %cst_40 = arith.constant dense<0.000000e+00> : vector<128xf32>
    %243 = vector.multi_reduction <add>, %242, %cst_40 [1] : vector<128x128xf32> to vector<128xf32>
    %244 = vector.shape_cast %243 : vector<128xf32> to vector<128x1xf32>
    %cst_41 = arith.constant 1.280000e+02 : f32
    %245 = vector.broadcast %cst_41 : f32 to vector<128x1xf32>
    %246 = arith.divf %244, %245 : vector<128x1xf32>
    %247 = vector.broadcast %239 : vector<128x1xf32> to vector<128x128xf32>
    %248 = arith.subf %235, %247 : vector<128x128xf32>
    %cst_42 = arith.constant 9.99999996E-13 : f32
    %249 = vector.broadcast %cst_42 : f32 to vector<128x1xf32>
    %250 = arith.addf %246, %249 : vector<128x1xf32>
    %251 = math.rsqrt %250 : vector<128x1xf32>
    %252 = vector.broadcast %251 : vector<128x1xf32> to vector<128x128xf32>
    %253 = arith.mulf %248, %252 : vector<128x128xf32>
    %c0_43 = arith.constant 0 : index
    %c0_44 = arith.constant 0 : index
    %254 = vector.load %arg4[%c0_43, %c0_44] : memref<1x128xf32, #tpu.memory_space<vmem>>, vector<1x128xf32>
    %255 = vector.broadcast %254 : vector<1x128xf32> to vector<128x128xf32>
    %256 = arith.mulf %253, %255 : vector<128x128xf32>
    %c0_45 = arith.constant 0 : index
    %c0_46 = arith.constant 0 : index
    %257 = vector.load %arg5[%c0_45, %c0_46] : memref<1x128xf32, #tpu.memory_space<vmem>>, vector<1x128xf32>
    %258 = vector.broadcast %257 : vector<1x128xf32> to vector<128x128xf32>
    %259 = arith.addf %256, %258 : vector<128x128xf32>
    %c0_47 = arith.constant 0 : index
    %c0_48 = arith.constant 0 : index
    %260 = vector.load %arg6[%c0_47, %c0_48] : memref<128x128xf32, #tpu.memory_space<vmem>>, vector<128x128xf32>
    tpu.vector_store %arg6[%c0_47, %c0_48], %259 {strides = array<i32>} : memref<128x128xf32, #tpu.memory_space<vmem>>, vector<128x128xf32>,
    return
  }
  func.func @transform_0(%arg0: i32) -> (i32, i32) {
    %c0_i32 = arith.constant 0 : i32
    %c0_i32_0 = arith.constant 0 : i32
    return %arg0, %c0_i32 : i32, i32
  }
  func.func @transform_1(%arg0: i32) -> (i32, i32) {
    %c0_i32 = arith.constant 0 : i32
    %c0_i32_0 = arith.constant 0 : i32
    %c0_i32_1 = arith.constant 0 : i32
    return %c0_i32, %c0_i32_0 : i32, i32
  }
  func.func @transform_2(%arg0: i32) -> (i32, i32) {
    %c0_i32 = arith.constant 0 : i32
    %c0_i32_0 = arith.constant 0 : i32
    %c0_i32_1 = arith.constant 0 : i32
    return %c0_i32, %c0_i32_0 : i32, i32
  }
  func.func @transform_3(%arg0: i32) -> (i32, i32) {
    %c0_i32 = arith.constant 0 : i32
    %c0_i32_0 = arith.constant 0 : i32
    %c0_i32_1 = arith.constant 0 : i32
    return %c0_i32, %c0_i32_0 : i32, i32
  }
  func.func @transform_4(%arg0: i32) -> (i32, i32) {
    %c0_i32 = arith.constant 0 : i32
    %c0_i32_0 = arith.constant 0 : i32
    %c0_i32_1 = arith.constant 0 : i32
    return %c0_i32, %c0_i32_0 : i32, i32
  }
  func.func @transform_5(%arg0: i32) -> (i32, i32) {
    %c0_i32 = arith.constant 0 : i32
    %c0_i32_0 = arith.constant 0 : i32
    return %arg0, %c0_i32 : i32, i32
  }
}

</mosaic_0001>

<llo_original>
// kernel: tpu_custom_call.1
$region0: #{tpu_custom_call.1}
  #allocation0 [shape = 'u32[]', space=smem, size = 0x4, offset = 0x4, fixed_abs, tag = 'smem constant byte address 0x4 - core index']
  #allocation1 [shape = 'u32[144,128]{1,0:T(1,128)}', space=vmem, size = 0x12000, scoped, tag = 'internal scratch']
  %s0 = inlined_call_operand.vmem [shape: s32[256,33], index: 0, kind: input, shape index: {}]
  %s1 = inlined_call_operand.vmem [shape: f32[154,128], index: 1, kind: input, shape index: {}]
  %s2 = inlined_call_operand.vmem [shape: f32[128,128], index: 2, kind: input, shape index: {}]
  %s3 = inlined_call_operand.vmem [shape: f32[1,128], index: 3, kind: input, shape index: {}]
  %s4 = inlined_call_operand.vmem [shape: f32[1,128], index: 4, kind: input, shape index: {}]
  %s5 = inlined_call_operand.hbm [shape: f32[256,128], index: 5, kind: output, shape index: {}]
  %s6 = sld [smem:[#allocation0]]
  $region53: #{tpu_custom_call.1} parent=0
    _
  %s8 = ssub.s32 1, %s6
  %s9 = scalar_select 0, %s8, %s6
  $region1: #{tpu_custom_call.1} parent=0
    #allocation2 [shape = 'u8[131072]{0}', space=vmem, size = 0x20000, scoped, tag = 'output window, operand 0']
    #allocation3 [shape = 's32[2]{0}', space=sflag, size = 0x8, scoped, tag = 'scoped memory for tpu_custom_call.1']
    %10 = vsyncpa [#allocation3], 0
    %s11 = scalar_lea.sflag [#allocation3], 1
    %12 = vsyncpa %s11, 0
    loop: start=0, step=1, limit=4
    $region2: #{tpu_custom_call.1} parent=1 // loop_pre_header
      _
    $region3: #{tpu_custom_call.1} parent=1 // loop_header
      %s14 = sphi 0, %s18
      %p15 = scmp.ge.s32.totalorder %s14, 4
      %s24 = sphi 0, %s26
      %s27 = sphi 0, %s24
      %s28 = sphi 0, %s27
      %s44 = sphi 0, %s28
      %s48 = sphi 0, %s48
      %s50 = sphi 0, %s48
      %s51 = sphi 0, %s50
      %s65 = sphi 0, %s51
      %s69 = sphi 0, %s69
      %s71 = sphi 0, %s69
      %s72 = sphi 0, %s71
      %s86 = sphi 0, %s72
      %s90 = sphi 0, %s90
      %s92 = sphi 0, %s90
      %s93 = sphi 0, %s92
      %s107 = sphi 0, %s93
      %s111 = sphi 0, %s111
      %s113 = sphi 0, %s111
      %s114 = sphi 0, %s113
      %s128 = sphi 0, %s114
      %s134 = sphi 0, %s136
      %s137 = sphi 0, %s134
      %s138 = sphi 0, %s137
      %s154 = sphi 0, %s138
    $region4: #{tpu_custom_call.1} parent=1 // loop_header_branch
      %17 = sbr.rel (%p15) target = $region8
    $region5: #{tpu_custom_call.1} parent=1 // loop_body
      %s19 = ssub.s32 %s14, 1
      %s20 = ssub.s32 %s14, 2
      %s21 = sadd.s32 %s14, 1
      %s22 = ssub.s32 %s14, %s21
      %p23 = scmp.eq.s32.totalorder %s22, 0
      %s25 = sadd.s32 %s24, 1
      %s26 = scalar_select %p23, %s24, %s25
      %p29 = pneg %p23
      %p30 = scmp.eq.s32.totalorder %s14, 1
      %p31 = por %p29, %p30
      %p32 = scmp.ne.s32.totalorder %s24, %s27
      %p33 = scmp.eq.s32.totalorder %s14, 0
      %p34 = por %p32, %p33
      %p35 = scmp.ne.s32.totalorder %s24, %s27
      %p36 = scmp.eq.s32.totalorder %s19, 1
      %p37 = por %p35, %p36
      %p38 = scmp.ne.s32.totalorder %s27, %s28
      %p39 = scmp.eq.s32.totalorder %s19, 0
      %p40 = por %p38, %p39
      %p41 = scmp.ne.s32.totalorder %s27, %s28
      %p42 = scmp.eq.s32.totalorder %s20, 1
      %p43 = por %p41, %p42
      %p45 = scmp.ne.s32.totalorder %s28, %s44
      %p46 = scmp.eq.s32.totalorder %s20, 0
      %p47 = por %p45, %p46
      %s49 = sadd.s32 %s48, 1
      %p52 = scmp.eq.s32.totalorder %s14, 1
      %p53 = scmp.ne.s32.totalorder %s48, %s50
      %p54 = scmp.eq.s32.totalorder %s14, 0
      %p55 = por %p53, %p54
      %p56 = scmp.ne.s32.totalorder %s48, %s50
      %p57 = scmp.eq.s32.totalorder %s19, 1
      %p58 = por %p56, %p57
      %p59 = scmp.ne.s32.totalorder %s50, %s51
      %p60 = scmp.eq.s32.totalorder %s19, 0
      %p61 = por %p59, %p60
      %p62 = scmp.ne.s32.totalorder %s50, %s51
      %p63 = scmp.eq.s32.totalorder %s20, 1
      %p64 = por %p62, %p63
      %p66 = scmp.ne.s32.totalorder %s51, %s65
      %p67 = scmp.eq.s32.totalorder %s20, 0
      %p68 = por %p66, %p67
      %s70 = sadd.s32 %s69, 1
      %p73 = scmp.eq.s32.totalorder %s14, 1
      %p74 = scmp.ne.s32.totalorder %s69, %s71
      %p75 = scmp.eq.s32.totalorder %s14, 0
      %p76 = por %p74, %p75
      %p77 = scmp.ne.s32.totalorder %s69, %s71
      %p78 = scmp.eq.s32.totalorder %s19, 1
      %p79 = por %p77, %p78
      %p80 = scmp.ne.s32.totalorder %s71, %s72
      %p81 = scmp.eq.s32.totalorder %s19, 0
      %p82 = por %p80, %p81
      %p83 = scmp.ne.s32.totalorder %s71, %s72
      %p84 = scmp.eq.s32.totalorder %s20, 1
      %p85 = por %p83, %p84
      %p87 = scmp.ne.s32.totalorder %s72, %s86
      %p88 = scmp.eq.s32.totalorder %s20, 0
      %p89 = por %p87, %p88
      %s91 = sadd.s32 %s90, 1
      %p94 = scmp.eq.s32.totalorder %s14, 1
      %p95 = scmp.ne.s32.totalorder %s90, %s92
      %p96 = scmp.eq.s32.totalorder %s14, 0
      %p97 = por %p95, %p96
      %p98 = scmp.ne.s32.totalorder %s90, %s92
      %p99 = scmp.eq.s32.totalorder %s19, 1
      %p100 = por %p98, %p99
      %p101 = scmp.ne.s32.totalorder %s92, %s93
      %p102 = scmp.eq.s32.totalorder %s19, 0
      %p103 = por %p101, %p102
      %p104 = scmp.ne.s32.totalorder %s92, %s93
      %p105 = scmp.eq.s32.totalorder %s20, 1
      %p106 = por %p104, %p105
      %p108 = scmp.ne.s32.totalorder %s93, %s107
      %p109 = scmp.eq.s32.totalorder %s20, 0
      %p110 = por %p108, %p109
      %s112 = sadd.s32 %s111, 1
      %p115 = scmp.eq.s32.totalorder %s14, 1
      %p116 = scmp.ne.s32.totalorder %s111, %s113
      %p117 = scmp.eq.s32.totalorder %s14, 0
      %p118 = por %p116, %p117
      %p119 = scmp.ne.s32.totalorder %s111, %s113
      %p120 = scmp.eq.s32.totalorder %s19, 1
      %p121 = por %p119, %p120
      %p122 = scmp.ne.s32.totalorder %s113, %s114
      %p123 = scmp.eq.s32.totalorder %s19, 0
      %p124 = por %p122, %p123
      %p125 = scmp.ne.s32.totalorder %s113, %s114
      %p126 = scmp.eq.s32.totalorder %s20, 1
      %p127 = por %p125, %p126
      %p129 = scmp.ne.s32.totalorder %s114, %s128
      %p130 = scmp.eq.s32.totalorder %s20, 0
      %p131 = por %p129, %p130
      %s132 = ssub.s32 %s14, %s21
      %p133 = scmp.eq.s32.totalorder %s132, 0
      %s135 = sadd.s32 %s134, 1
      %s136 = scalar_select %p133, %s134, %s135
      %p139 = pneg %p133
      %p140 = scmp.eq.s32.totalorder %s14, 1
      %p141 = por %p139, %p140
      %p142 = scmp.ne.s32.totalorder %s134, %s137
      %p143 = scmp.eq.s32.totalorder %s14, 0
      %p144 = por %p142, %p143
      %p145 = scmp.ne.s32.totalorder %s134, %s137
      %p146 = scmp.eq.s32.totalorder %s19, 1
      %p147 = por %p145, %p146
      %p148 = scmp.ne.s32.totalorder %s137, %s138
      %p149 = scmp.eq.s32.totalorder %s19, 0
      %p150 = por %p148, %p149
      %p151 = scmp.ne.s32.totalorder %s137, %s138
      %p152 = scmp.eq.s32.totalorder %s20, 1
      %p153 = por %p151, %p152
      %p155 = scmp.ne.s32.totalorder %s138, %s154
      %p156 = scmp.eq.s32.totalorder %s20, 0
      %p157 = por %p155, %p156
      %p158 = scmp.le.s32.totalorder 1, %s14
      %p159 = scmp.lt.s32.totalorder %s14, 3
      %p160 = pnand %p158, %p159
      %p161 = pneg %p160
      // Predicated region
      $region9: #{tpu_custom_call.1} parent=5 // pred_check
        _
      $region10: #{tpu_custom_call.1} parent=5 // pred_check_branch
        %163 = sbr.rel (%p160) target = $region12
      $region11: #{tpu_custom_call.1} parent=5 // pred_region
        %s164 = ssub.s32 %s14, 1
        // Predicated region
        $region13: #{tpu_custom_call.1} parent=11 // pred_check
          %p165 = pneg %p61
        $region14: #{tpu_custom_call.1} parent=11 // pred_check_branch
          %167 = sbr.rel (%p165) target = $region16
        $region15: #{tpu_custom_call.1} parent=11 // pred_region
          _
        $region16: #{tpu_custom_call.1} parent=11 // pred_fallthru
          _
        // Predicated region
        $region17: #{tpu_custom_call.1} parent=11 // pred_check
          %p168 = pneg %p82
        $region18: #{tpu_custom_call.1} parent=11 // pred_check_branch
          %170 = sbr.rel (%p168) target = $region20
        $region19: #{tpu_custom_call.1} parent=11 // pred_region
          _
        $region20: #{tpu_custom_call.1} parent=11 // pred_fallthru
          _
        // Predicated region
        $region21: #{tpu_custom_call.1} parent=11 // pred_check
          %p171 = pneg %p103
        $region22: #{tpu_custom_call.1} parent=11 // pred_check_branch
          %173 = sbr.rel (%p171) target = $region24
        $region23: #{tpu_custom_call.1} parent=11 // pred_region
          _
        $region24: #{tpu_custom_call.1} parent=11 // pred_fallthru
          _
        // Predicated region
        $region25: #{tpu_custom_call.1} parent=11 // pred_check
          %p174 = pneg %p124
        $region26: #{tpu_custom_call.1} parent=11 // pred_check_branch
          %176 = sbr.rel (%p174) target = $region28
        $region27: #{tpu_custom_call.1} parent=11 // pred_region
          _
        $region28: #{tpu_custom_call.1} parent=11 // pred_fallthru
          _
      $region12: #{tpu_custom_call.1} parent=5 // pred_fallthru
        _
      %p177 = scmp.lt.s32.totalorder %s14, 2
      // Predicated region
      $region29: #{tpu_custom_call.1} parent=5 // pred_check
        %p178 = pneg %p177
      $region30: #{tpu_custom_call.1} parent=5 // pred_check_branch
        %180 = sbr.rel (%p178) target = $region32
      $region31: #{tpu_custom_call.1} parent=5 // pred_region
        // Predicated region
        $region33: #{tpu_custom_call.1} parent=31 // pred_check
          %p181 = pneg %p34
        $region34: #{tpu_custom_call.1} parent=31 // pred_check_branch
          %183 = sbr.rel (%p181) target = $region36
        $region35: #{tpu_custom_call.1} parent=31 // pred_region
          %s184 = smul.u32 16, %s14
          %p185 = scmp.lt.s32.totalorder %s184, 31
          %s186 = scalar_select %p185, %s184, 31
          %s187 = smul.addr %s186, 8
          %s188 = scalar_lea.vmem %s0, %s187
          %s189 = smul.u32 16, %s14
        $region36: #{tpu_custom_call.1} parent=31 // pred_fallthru
          _
      $region32: #{tpu_custom_call.1} parent=5 // pred_fallthru
        _
      %p190 = scmp.le.s32.totalorder 1, %s14
      %p191 = scmp.lt.s32.totalorder %s14, 3
      %p192 = pnand %p190, %p191
      %p193 = pneg %p192
      // Predicated region
      $region37: #{tpu_custom_call.1} parent=5 // pred_check
        _
      $region38: #{tpu_custom_call.1} parent=5 // pred_check_branch
        %195 = sbr.rel (%p192) target = $region40
      $region39: #{tpu_custom_call.1} parent=5 // pred_region
        %s196 = ssub.s32 %s14, 1
        %s197 = smul.u32 16, %s19
        %p198 = scmp.lt.s32.totalorder %s197, 31
        %s199 = scalar_select %p198, %s197, 31
        %s200 = smul.addr %s199, 8
        %s201 = scalar_lea.vmem %s0, %s200
        %p202 = pneg %p40
        %p203 = pneg %p37
        %p204 = pneg %p61
        %p205 = pneg %p58
        %p206 = pneg %p82
        %p207 = pneg %p79
        %p208 = pneg %p103
        %p209 = pneg %p100
        %p210 = pneg %p124
        %p211 = pneg %p121
        %p212 = pneg %p150
        %p213 = pneg %p147
        %s214 = sand.u32 %s137, 1
        %s215 = scalar_lea.sflag [#allocation3], %s214
        %s216 = sand.u32 %s137, 1
        %s217 = smul.addr %s216, 128
        %s218 = scalar_lea.vmem [#allocation2], %s217
        %s219 = smul.u32 16, %s19
        %p220 = scmp.lt.s32.totalorder %s219, 31
        %s221 = scalar_select %p220, %s219, 31
        %s222 = smul.addr %s221, 8
        %s223 = scalar_lea.vmem %s0, %s222
        %s224 = smul.u32 16, %s19
        %s225 = smul.u32 16, %s19
        %v226 = vlaneseq
        %v227 = vand.u32 %v226, 127
        %v228 = vadd.s32 %v227, 128
        %v229 = vsub.s32 %v227, 24
        %v230 = vsub.s32 %v228, 24
        %v231 = vsub.s32 %v227, 152
        %v232 = vsub.s32 %v228, 152
        %v233 = vld [vmem:[%s223] sm:$0xff]
        %v234 = vld [vmem:[%s223 + $0x8] sm:$0xff]
        %v235 = vld [vmem:[%s223 + $0x10] sm:$0xff]
        %v236 = vld [vmem:[%s223 + $0x18] sm:$0xff]
        %v237 = vld [vmem:[%s223 + $0x20] sm:$0xff]
        %v238 = vld [vmem:[%s223 + $0x28] sm:$0xff]
        %v239 = vld [vmem:[%s223 + $0x30] sm:$0xff]
        %v240 = vld [vmem:[%s223 + $0x38] sm:$0xff]
        %v241 = vld [vmem:[%s223 + $0x40] sm:$0xff]
        %v242 = vld [vmem:[%s223 + $0x48] sm:$0xff]
        %v243 = vld [vmem:[%s223 + $0x50] sm:$0xff]
        %v244 = vld [vmem:[%s223 + $0x58] sm:$0xff]
        %v245 = vld [vmem:[%s223 + $0x60] sm:$0xff]
        %v246 = vld [vmem:[%s223 + $0x68] sm:$0xff]
        %v247 = vld [vmem:[%s223 + $0x70] sm:$0xff]
        %v248 = vld [vmem:[%s223 + $0x78] sm:$0xff]
        %249 = vset.pattern.permute.xlu0 0
        %250 = vperm.xlu0 %249, %v233
        %v251 = vpop.permute.xlu0 %250
        %252 = vset.pattern.permute.xlu0 0
        %253 = vperm.xlu0 %252, %v234
        %v254 = vpop.permute.xlu0 %253
        %255 = vset.pattern.permute.xlu0 0
        %256 = vperm.xlu0 %255, %v235
        %v257 = vpop.permute.xlu0 %256
        %258 = vset.pattern.permute.xlu0 0
        %259 = vperm.xlu0 %258, %v236
        %v260 = vpop.permute.xlu0 %259
        %261 = vset.pattern.permute.xlu0 0
        %262 = vperm.xlu0 %261, %v237
        %v263 = vpop.permute.xlu0 %262
        %264 = vset.pattern.permute.xlu0 0
        %265 = vperm.xlu0 %264, %v238
        %v266 = vpop.permute.xlu0 %265
        %267 = vset.pattern.permute.xlu0 0
        %268 = vperm.xlu0 %267, %v239
        %v269 = vpop.permute.xlu0 %268
        %270 = vset.pattern.permute.xlu0 0
        %271 = vperm.xlu0 %270, %v240
        %v272 = vpop.permute.xlu0 %271
        %273 = vset.pattern.permute.xlu0 0
        %274 = vperm.xlu0 %273, %v241
        %v275 = vpop.permute.xlu0 %274
        %276 = vset.pattern.permute.xlu0 0
        %277 = vperm.xlu0 %276, %v242
        %v278 = vpop.permute.xlu0 %277
        %279 = vset.pattern.permute.xlu0 0
        %280 = vperm.xlu0 %279, %v243
        %v281 = vpop.permute.xlu0 %280
        %282 = vset.pattern.permute.xlu0 0
        %283 = vperm.xlu0 %282, %v244
        %v284 = vpop.permute.xlu0 %283
        %285 = vset.pattern.permute.xlu0 0
        %286 = vperm.xlu0 %285, %v245
        %v287 = vpop.permute.xlu0 %286
        %288 = vset.pattern.permute.xlu0 0
        %289 = vperm.xlu0 %288, %v246
        %v290 = vpop.permute.xlu0 %289
        %291 = vset.pattern.permute.xlu0 0
        %292 = vperm.xlu0 %291, %v247
        %v293 = vpop.permute.xlu0 %292
        %294 = vset.pattern.permute.xlu0 0
        %295 = vperm.xlu0 %294, %v248
        %v296 = vpop.permute.xlu0 %295
        %vm297 = vcmp.eq.s32.totalorder %v251, %v227
        %vm298 = vcmp.eq.s32.totalorder %v251, %v228
        %vm299 = vcmp.eq.s32.totalorder %v254, %v227
        %vm300 = vcmp.eq.s32.totalorder %v254, %v228
        %vm301 = vcmp.eq.s32.totalorder %v257, %v227
        %vm302 = vcmp.eq.s32.totalorder %v257, %v228
        %vm303 = vcmp.eq.s32.totalorder %v260, %v227
        %vm304 = vcmp.eq.s32.totalorder %v260, %v228
        %vm305 = vcmp.eq.s32.totalorder %v263, %v227
        %vm306 = vcmp.eq.s32.totalorder %v263, %v228
        %vm307 = vcmp.eq.s32.totalorder %v266, %v227
        %vm308 = vcmp.eq.s32.totalorder %v266, %v228
        %vm309 = vcmp.eq.s32.totalorder %v269, %v227
        %vm310 = vcmp.eq.s32.totalorder %v269, %v228
        %vm311 = vcmp.eq.s32.totalorder %v272, %v227
        %vm312 = vcmp.eq.s32.totalorder %v272, %v228
        %vm313 = vcmp.eq.s32.totalorder %v275, %v227
        %vm314 = vcmp.eq.s32.totalorder %v275, %v228
        %vm315 = vcmp.eq.s32.totalorder %v278, %v227
        %vm316 = vcmp.eq.s32.totalorder %v278, %v228
        %vm317 = vcmp.eq.s32.totalorder %v281, %v227
        %vm318 = vcmp.eq.s32.totalorder %v281, %v228
        %vm319 = vcmp.eq.s32.totalorder %v284, %v227
        %vm320 = vcmp.eq.s32.totalorder %v284, %v228
        %vm321 = vcmp.eq.s32.totalorder %v287, %v227
        %vm322 = vcmp.eq.s32.totalorder %v287, %v228
        %vm323 = vcmp.eq.s32.totalorder %v290, %v227
        %vm324 = vcmp.eq.s32.totalorder %v290, %v228
        %vm325 = vcmp.eq.s32.totalorder %v293, %v227
        %vm326 = vcmp.eq.s32.totalorder %v293, %v228
        %vm327 = vcmp.eq.s32.totalorder %v296, %v227
        %vm328 = vcmp.eq.s32.totalorder %v296, %v228
        %329 = vset.pattern.permute.xlu0 1
        %330 = vperm.xlu0 %329, %v233
        %v331 = vpop.permute.xlu0 %330
        %332 = vset.pattern.permute.xlu0 1
        %333 = vperm.xlu0 %332, %v234
        %v334 = vpop.permute.xlu0 %333
        %335 = vset.pattern.permute.xlu0 1
        %336 = vperm.xlu0 %335, %v235
        %v337 = vpop.permute.xlu0 %336
        %338 = vset.pattern.permute.xlu0 1
        %339 = vperm.xlu0 %338, %v236
        %v340 = vpop.permute.xlu0 %339
        %341 = vset.pattern.permute.xlu0 1
        %342 = vperm.xlu0 %341, %v237
        %v343 = vpop.permute.xlu0 %342
        %344 = vset.pattern.permute.xlu0 1
        %345 = vperm.xlu0 %344, %v238
        %v346 = vpop.permute.xlu0 %345
        %347 = vset.pattern.permute.xlu0 1
        %348 = vperm.xlu0 %347, %v239
        %v349 = vpop.permute.xlu0 %348
        %350 = vset.pattern.permute.xlu0 1
        %351 = vperm.xlu0 %350, %v240
        %v352 = vpop.permute.xlu0 %351
        %353 = vset.pattern.permute.xlu0 1
        %354 = vperm.xlu0 %353, %v241
        %v355 = vpop.permute.xlu0 %354
        %356 = vset.pattern.permute.xlu0 1
        %357 = vperm.xlu0 %356, %v242
        %v358 = vpop.permute.xlu0 %357
        %359 = vset.pattern.permute.xlu0 1
        %360 = vperm.xlu0 %359, %v243
        %v361 = vpop.permute.xlu0 %360
        %362 = vset.pattern.permute.xlu0 1
        %363 = vperm.xlu0 %362, %v244
        %v364 = vpop.permute.xlu0 %363
        %365 = vset.pattern.permute.xlu0 1
        %366 = vperm.xlu0 %365, %v245
        %v367 = vpop.permute.xlu0 %366
        %368 = vset.pattern.permute.xlu0 1
        %369 = vperm.xlu0 %368, %v246
        %v370 = vpop.permute.xlu0 %369
        %371 = vset.pattern.permute.xlu0 1
        %372 = vperm.xlu0 %371, %v247
        %v373 = vpop.permute.xlu0 %372
        %374 = vset.pattern.permute.xlu0 1
        %375 = vperm.xlu0 %374, %v248
        %v376 = vpop.permute.xlu0 %375
        %vm377 = vcmp.eq.s32.totalorder %v331, %v229
        %vm378 = vcmp.eq.s32.totalorder %v331, %v230
        %vm379 = vcmp.eq.s32.totalorder %v334, %v229
        %vm380 = vcmp.eq.s32.totalorder %v334, %v230
        %vm381 = vcmp.eq.s32.totalorder %v337, %v229
        %vm382 = vcmp.eq.s32.totalorder %v337, %v230
        %vm383 = vcmp.eq.s32.totalorder %v340, %v229
        %vm384 = vcmp.eq.s32.totalorder %v340, %v230
        %vm385 = vcmp.eq.s32.totalorder %v343, %v229
        %vm386 = vcmp.eq.s32.totalorder %v343, %v230
        %vm387 = vcmp.eq.s32.totalorder %v346, %v229
        %vm388 = vcmp.eq.s32.totalorder %v346, %v230
        %vm389 = vcmp.eq.s32.totalorder %v349, %v229
        %vm390 = vcmp.eq.s32.totalorder %v349, %v230
        %vm391 = vcmp.eq.s32.totalorder %v352, %v229
        %vm392 = vcmp.eq.s32.totalorder %v352, %v230
        %vm393 = vcmp.eq.s32.totalorder %v355, %v229
        %vm394 = vcmp.eq.s32.totalorder %v355, %v230
        %vm395 = vcmp.eq.s32.totalorder %v358, %v229
        %vm396 = vcmp.eq.s32.totalorder %v358, %v230
        %vm397 = vcmp.eq.s32.totalorder %v361, %v229
        %vm398 = vcmp.eq.s32.totalorder %v361, %v230
        %vm399 = vcmp.eq.s32.totalorder %v364, %v229
        %vm400 = vcmp.eq.s32.totalorder %v364, %v230
        %vm401 = vcmp.eq.s32.totalorder %v367, %v229
        %vm402 = vcmp.eq.s32.totalorder %v367, %v230
        %vm403 = vcmp.eq.s32.totalorder %v370, %v229
        %vm404 = vcmp.eq.s32.totalorder %v370, %v230
        %vm405 = vcmp.eq.s32.totalorder %v373, %v229
        %vm406 = vcmp.eq.s32.totalorder %v373, %v230
        %vm407 = vcmp.eq.s32.totalorder %v376, %v229
        %vm408 = vcmp.eq.s32.totalorder %v376, %v230
        %vm409 = vmor %vm297, %vm377
        %vm410 = vmor %vm298, %vm378
        %vm411 = vmor %vm299, %vm379
        %vm412 = vmor %vm300, %vm380
        %vm413 = vmor %vm301, %vm381
        %vm414 = vmor %vm302, %vm382
        %vm415 = vmor %vm303, %vm383
        %vm416 = vmor %vm304, %vm384
        %vm417 = vmor %vm305, %vm385
        %vm418 = vmor %vm306, %vm386
        %vm419 = vmor %vm307, %vm387
        %vm420 = vmor %vm308, %vm388
        %vm421 = vmor %vm309, %vm389
        %vm422 = vmor %vm310, %vm390
        %vm423 = vmor %vm311, %vm391
        %vm424 = vmor %vm312, %vm392
        %vm425 = vmor %vm313, %vm393
        %vm426 = vmor %vm314, %vm394
        %vm427 = vmor %vm315, %vm395
        %vm428 = vmor %vm316, %vm396
        %vm429 = vmor %vm317, %vm397
        %vm430 = vmor %vm318, %vm398
        %vm431 = vmor %vm319, %vm399
        %vm432 = vmor %vm320, %vm400
        %vm433 = vmor %vm321, %vm401
        %vm434 = vmor %vm322, %vm402
        %vm435 = vmor %vm323, %vm403
        %vm436 = vmor %vm324, %vm404
        %vm437 = vmor %vm325, %vm405
        %vm438 = vmor %vm326, %vm406
        %vm439 = vmor %vm327, %vm407
        %vm440 = vmor %vm328, %vm408
        %441 = vset.pattern.permute.xlu0 2
        %442 = vperm.xlu0 %441, %v233
        %v443 = vpop.permute.xlu0 %442
        %444 = vset.pattern.permute.xlu0 2
        %445 = vperm.xlu0 %444, %v234
        %v446 = vpop.permute.xlu0 %445
        %447 = vset.pattern.permute.xlu0 2
        %448 = vperm.xlu0 %447, %v235
        %v449 = vpop.permute.xlu0 %448
        %450 = vset.pattern.permute.xlu0 2
        %451 = vperm.xlu0 %450, %v236
        %v452 = vpop.permute.xlu0 %451
        %453 = vset.pattern.permute.xlu0 2
        %454 = vperm.xlu0 %453, %v237
        %v455 = vpop.permute.xlu0 %454
        %456 = vset.pattern.permute.xlu0 2
        %457 = vperm.xlu0 %456, %v238
        %v458 = vpop.permute.xlu0 %457
        %459 = vset.pattern.permute.xlu0 2
        %460 = vperm.xlu0 %459, %v239
        %v461 = vpop.permute.xlu0 %460
        %462 = vset.pattern.permute.xlu0 2
        %463 = vperm.xlu0 %462, %v240
        %v464 = vpop.permute.xlu0 %463
        %465 = vset.pattern.permute.xlu0 2
        %466 = vperm.xlu0 %465, %v241
        %v467 = vpop.permute.xlu0 %466
        %468 = vset.pattern.permute.xlu0 2
        %469 = vperm.xlu0 %468, %v242
        %v470 = vpop.permute.xlu0 %469
        %471 = vset.pattern.permute.xlu0 2
        %472 = vperm.xlu0 %471, %v243
        %v473 = vpop.permute.xlu0 %472
        %474 = vset.pattern.permute.xlu0 2
        %475 = vperm.xlu0 %474, %v244
        %v476 = vpop.permute.xlu0 %475
        %477 = vset.pattern.permute.xlu0 2
        %478 = vperm.xlu0 %477, %v245
        %v479 = vpop.permute.xlu0 %478
        %480 = vset.pattern.permute.xlu0 2
        %481 = vperm.xlu0 %480, %v246
        %v482 = vpop.permute.xlu0 %481
        %483 = vset.pattern.permute.xlu0 2
        %484 = vperm.xlu0 %483, %v247
        %v485 = vpop.permute.xlu0 %484
        %486 = vset.pattern.permute.xlu0 2
        %487 = vperm.xlu0 %486, %v248
        %v488 = vpop.permute.xlu0 %487
        %vm489 = vcmp.eq.s32.totalorder %v443, %v231
        %vm490 = vcmp.eq.s32.totalorder %v443, %v232
        %vm491 = vcmp.eq.s32.totalorder %v446, %v231
        %vm492 = vcmp.eq.s32.totalorder %v446, %v232
        %vm493 = vcmp.eq.s32.totalorder %v449, %v231
        %vm494 = vcmp.eq.s32.totalorder %v449, %v232
        %vm495 = vcmp.eq.s32.totalorder %v452, %v231
        %vm496 = vcmp.eq.s32.totalorder %v452, %v232
        %vm497 = vcmp.eq.s32.totalorder %v455, %v231
        %vm498 = vcmp.eq.s32.totalorder %v455, %v232
        %vm499 = vcmp.eq.s32.totalorder %v458, %v231
        %vm500 = vcmp.eq.s32.totalorder %v458, %v232
        %vm501 = vcmp.eq.s32.totalorder %v461, %v231
        %vm502 = vcmp.eq.s32.totalorder %v461, %v232
        %vm503 = vcmp.eq.s32.totalorder %v464, %v231
        %vm504 = vcmp.eq.s32.totalorder %v464, %v232
        %vm505 = vcmp.eq.s32.totalorder %v467, %v231
        %vm506 = vcmp.eq.s32.totalorder %v467, %v232
        %vm507 = vcmp.eq.s32.totalorder %v470, %v231
        %vm508 = vcmp.eq.s32.totalorder %v470, %v232
        %vm509 = vcmp.eq.s32.totalorder %v473, %v231
        %vm510 = vcmp.eq.s32.totalorder %v473, %v232
        %vm511 = vcmp.eq.s32.totalorder %v476, %v231
        %vm512 = vcmp.eq.s32.totalorder %v476, %v232
        %vm513 = vcmp.eq.s32.totalorder %v479, %v231
        %vm514 = vcmp.eq.s32.totalorder %v479, %v232
        %vm515 = vcmp.eq.s32.totalorder %v482, %v231
        %vm516 = vcmp.eq.s32.totalorder %v482, %v232
        %vm517 = vcmp.eq.s32.totalorder %v485, %v231
        %vm518 = vcmp.eq.s32.totalorder %v485, %v232
        %vm519 = vcmp.eq.s32.totalorder %v488, %v231
        %vm520 = vcmp.eq.s32.totalorder %v488, %v232
        %vm521 = vmor %vm409, %vm489
        %vm522 = vmor %vm410, %vm490
        %vm523 = vmor %vm411, %vm491
        %vm524 = vmor %vm412, %vm492
        %vm525 = vmor %vm413, %vm493
        %vm526 = vmor %vm414, %vm494
        %vm527 = vmor %vm415, %vm495
        %vm528 = vmor %vm416, %vm496
        %vm529 = vmor %vm417, %vm497
        %vm530 = vmor %vm418, %vm498
        %vm531 = vmor %vm419, %vm499
        %vm532 = vmor %vm420, %vm500
        %vm533 = vmor %vm421, %vm501
        %vm534 = vmor %vm422, %vm502
        %vm535 = vmor %vm423, %vm503
        %vm536 = vmor %vm424, %vm504
        %vm537 = vmor %vm425, %vm505
        %vm538 = vmor %vm426, %vm506
        %vm539 = vmor %vm427, %vm507
        %vm540 = vmor %vm428, %vm508
        %vm541 = vmor %vm429, %vm509
        %vm542 = vmor %vm430, %vm510
        %vm543 = vmor %vm431, %vm511
        %vm544 = vmor %vm432, %vm512
        %vm545 = vmor %vm433, %vm513
        %vm546 = vmor %vm434, %vm514
        %vm547 = vmor %vm435, %vm515
        %vm548 = vmor %vm436, %vm516
        %vm549 = vmor %vm437, %vm517
        %vm550 = vmor %vm438, %vm518
        %vm551 = vmor %vm439, %vm519
        %vm552 = vmor %vm440, %vm520
        %v553 = vsel %vm521, 1, 0
        %v554 = vsel %vm522, 1, 0
        %v555 = vsel %vm523, 1, 0
        %v556 = vsel %vm524, 1, 0
        %v557 = vsel %vm525, 1, 0
        %v558 = vsel %vm526, 1, 0
        %v559 = vsel %vm527, 1, 0
        %v560 = vsel %vm528, 1, 0
        %v561 = vsel %vm529, 1, 0
        %v562 = vsel %vm530, 1, 0
        %v563 = vsel %vm531, 1, 0
        %v564 = vsel %vm532, 1, 0
        %v565 = vsel %vm533, 1, 0
        %v566 = vsel %vm534, 1, 0
        %v567 = vsel %vm535, 1, 0
        %v568 = vsel %vm536, 1, 0
        %v569 = vsel %vm537, 1, 0
        %v570 = vsel %vm538, 1, 0
        %v571 = vsel %vm539, 1, 0
        %v572 = vsel %vm540, 1, 0
        %v573 = vsel %vm541, 1, 0
        %v574 = vsel %vm542, 1, 0
        %v575 = vsel %vm543, 1, 0
        %v576 = vsel %vm544, 1, 0
        %v577 = vsel %vm545, 1, 0
        %v578 = vsel %vm546, 1, 0
        %v579 = vsel %vm547, 1, 0
        %v580 = vsel %vm548, 1, 0
        %v581 = vsel %vm549, 1, 0
        %v582 = vsel %vm550, 1, 0
        %v583 = vsel %vm551, 1, 0
        %v584 = vsel %vm552, 1, 0
        %v585 = vcvt.s32.f32 %v553
        %v586 = vcvt.s32.f32 %v554
        %v587 = vcvt.s32.f32 %v555
        %v588 = vcvt.s32.f32 %v556
        %v589 = vcvt.s32.f32 %v557
        %v590 = vcvt.s32.f32 %v558
        %v591 = vcvt.s32.f32 %v559
        %v592 = vcvt.s32.f32 %v560
        %v593 = vcvt.s32.f32 %v561
        %v594 = vcvt.s32.f32 %v562
        %v595 = vcvt.s32.f32 %v563
        %v596 = vcvt.s32.f32 %v564
        %v597 = vcvt.s32.f32 %v565
        %v598 = vcvt.s32.f32 %v566
        %v599 = vcvt.s32.f32 %v567
        %v600 = vcvt.s32.f32 %v568
        %v601 = vcvt.s32.f32 %v569
        %v602 = vcvt.s32.f32 %v570
        %v603 = vcvt.s32.f32 %v571
        %v604 = vcvt.s32.f32 %v572
        %v605 = vcvt.s32.f32 %v573
        %v606 = vcvt.s32.f32 %v574
        %v607 = vcvt.s32.f32 %v575
        %v608 = vcvt.s32.f32 %v576
        %v609 = vcvt.s32.f32 %v577
        %v610 = vcvt.s32.f32 %v578
        %v611 = vcvt.s32.f32 %v579
        %v612 = vcvt.s32.f32 %v580
        %v613 = vcvt.s32.f32 %v581
        %v614 = vcvt.s32.f32 %v582
        %v615 = vcvt.s32.f32 %v583
        %v616 = vcvt.s32.f32 %v584
        %v617 = vld [vmem:[%s1] sm:$0xff]
        %v618 = vld [vmem:[%s1 + $0x8] sm:$0xff]
        %v619 = vld [vmem:[%s1 + $0x10] sm:$0xff]
        %v620 = vld [vmem:[%s1 + $0x18] sm:$0xff]
        %v621 = vld [vmem:[%s1 + $0x20] sm:$0xff]
        %v622 = vld [vmem:[%s1 + $0x28] sm:$0xff]
        %v623 = vld [vmem:[%s1 + $0x30] sm:$0xff]
        %v624 = vld [vmem:[%s1 + $0x38] sm:$0xff]
        %v625 = vld [vmem:[%s1 + $0x40] sm:$0xff]
        %v626 = vld [vmem:[%s1 + $0x48] sm:$0xff]
        %v627 = vld [vmem:[%s1 + $0x50] sm:$0xff]
        %v628 = vld [vmem:[%s1 + $0x58] sm:$0xff]
        %v629 = vld [vmem:[%s1 + $0x60] sm:$0xff]
        %v630 = vld [vmem:[%s1 + $0x68] sm:$0xff]
        %v631 = vld [vmem:[%s1 + $0x70] sm:$0xff]
        %v632 = vld [vmem:[%s1 + $0x78] sm:$0xff]
        %v633 = vld [vmem:[%s1 + $0x80] sm:$0xff]
        %v634 = vld [vmem:[%s1 + $0x88] sm:$0xff]
        %v635 = vld [vmem:[%s1 + $0x90] sm:$0xff]
        %v636 = vld [vmem:[%s1 + $0x98] sm:$0x3]
        %637 = vset.pattern.permute.xlu0 3
        %638 = vperm.xlu0 %637, %v233
        %v639 = vpop.permute.xlu0 %638
        %640 = vset.pattern.permute.xlu0 3
        %641 = vperm.xlu0 %640, %v234
        %v642 = vpop.permute.xlu0 %641
        %643 = vset.pattern.permute.xlu0 3
        %644 = vperm.xlu0 %643, %v235
        %v645 = vpop.permute.xlu0 %644
        %646 = vset.pattern.permute.xlu0 3
        %647 = vperm.xlu0 %646, %v236
        %v648 = vpop.permute.xlu0 %647
        %649 = vset.pattern.permute.xlu0 3
        %650 = vperm.xlu0 %649, %v237
        %v651 = vpop.permute.xlu0 %650
        %652 = vset.pattern.permute.xlu0 3
        %653 = vperm.xlu0 %652, %v238
        %v654 = vpop.permute.xlu0 %653
        %655 = vset.pattern.permute.xlu0 3
        %656 = vperm.xlu0 %655, %v239
        %v657 = vpop.permute.xlu0 %656
        %658 = vset.pattern.permute.xlu0 3
        %659 = vperm.xlu0 %658, %v240
        %v660 = vpop.permute.xlu0 %659
        %661 = vset.pattern.permute.xlu0 3
        %662 = vperm.xlu0 %661, %v241
        %v663 = vpop.permute.xlu0 %662
        %664 = vset.pattern.permute.xlu0 3
        %665 = vperm.xlu0 %664, %v242
        %v666 = vpop.permute.xlu0 %665
        %667 = vset.pattern.permute.xlu0 3
        %668 = vperm.xlu0 %667, %v243
        %v669 = vpop.permute.xlu0 %668
        %670 = vset.pattern.permute.xlu0 3
        %671 = vperm.xlu0 %670, %v244
        %v672 = vpop.permute.xlu0 %671
        %673 = vset.pattern.permute.xlu0 3
        %674 = vperm.xlu0 %673, %v245
        %v675 = vpop.permute.xlu0 %674
        %676 = vset.pattern.permute.xlu0 3
        %677 = vperm.xlu0 %676, %v246
        %v678 = vpop.permute.xlu0 %677
        %679 = vset.pattern.permute.xlu0 3
        %680 = vperm.xlu0 %679, %v247
        %v681 = vpop.permute.xlu0 %680
        %682 = vset.pattern.permute.xlu0 3
        %683 = vperm.xlu0 %682, %v248
        %v684 = vpop.permute.xlu0 %683
        %vm685 = vcmp.eq.s32.totalorder %v639, %v227
        %vm686 = vcmp.eq.s32.totalorder %v642, %v227
        %vm687 = vcmp.eq.s32.totalorder %v645, %v227
        %vm688 = vcmp.eq.s32.totalorder %v648, %v227
        %vm689 = vcmp.eq.s32.totalorder %v651, %v227
        %vm690 = vcmp.eq.s32.totalorder %v654, %v227
        %vm691 = vcmp.eq.s32.totalorder %v657, %v227
        %vm692 = vcmp.eq.s32.totalorder %v660, %v227
        %vm693 = vcmp.eq.s32.totalorder %v663, %v227
        %vm694 = vcmp.eq.s32.totalorder %v666, %v227
        %vm695 = vcmp.eq.s32.totalorder %v669, %v227
        %vm696 = vcmp.eq.s32.totalorder %v672, %v227
        %vm697 = vcmp.eq.s32.totalorder %v675, %v227
        %vm698 = vcmp.eq.s32.totalorder %v678, %v227
        %vm699 = vcmp.eq.s32.totalorder %v681, %v227
        %vm700 = vcmp.eq.s32.totalorder %v684, %v227
        %v701 = vsel %vm685, 1, 0
        %v702 = vsel %vm686, 1, 0
        %v703 = vsel %vm687, 1, 0
        %v704 = vsel %vm688, 1, 0
        %v705 = vsel %vm689, 1, 0
        %v706 = vsel %vm690, 1, 0
        %v707 = vsel %vm691, 1, 0
        %v708 = vsel %vm692, 1, 0
        %v709 = vsel %vm693, 1, 0
        %v710 = vsel %vm694, 1, 0
        %v711 = vsel %vm695, 1, 0
        %v712 = vsel %vm696, 1, 0
        %v713 = vsel %vm697, 1, 0
        %v714 = vsel %vm698, 1, 0
        %v715 = vsel %vm699, 1, 0
        %v716 = vsel %vm700, 1, 0
        %v717 = vcvt.s32.f32 %v701
        %v718 = vcvt.s32.f32 %v702
        %v719 = vcvt.s32.f32 %v703
        %v720 = vcvt.s32.f32 %v704
        %v721 = vcvt.s32.f32 %v705
        %v722 = vcvt.s32.f32 %v706
        %v723 = vcvt.s32.f32 %v707
        %v724 = vcvt.s32.f32 %v708
        %v725 = vcvt.s32.f32 %v709
        %v726 = vcvt.s32.f32 %v710
        %v727 = vcvt.s32.f32 %v711
        %v728 = vcvt.s32.f32 %v712
        %v729 = vcvt.s32.f32 %v713
        %v730 = vcvt.s32.f32 %v714
        %v731 = vcvt.s32.f32 %v715
        %v732 = vcvt.s32.f32 %v716
        %733 = vset.pattern.permute.xlu0 4
        %734 = vperm.xlu0 %733, %v233
        %v735 = vpop.permute.xlu0 %734
        %736 = vset.pattern.permute.xlu0 4
        %737 = vperm.xlu0 %736, %v234
        %v738 = vpop.permute.xlu0 %737
        %739 = vset.pattern.permute.xlu0 4
        %740 = vperm.xlu0 %739, %v235
        %v741 = vpop.permute.xlu0 %740
        %742 = vset.pattern.permute.xlu0 4
        %743 = vperm.xlu0 %742, %v236
        %v744 = vpop.permute.xlu0 %743
        %745 = vset.pattern.permute.xlu0 4
        %746 = vperm.xlu0 %745, %v237
        %v747 = vpop.permute.xlu0 %746
        %748 = vset.pattern.permute.xlu0 4
        %749 = vperm.xlu0 %748, %v238
        %v750 = vpop.permute.xlu0 %749
        %751 = vset.pattern.permute.xlu0 4
        %752 = vperm.xlu0 %751, %v239
        %v753 = vpop.permute.xlu0 %752
        %754 = vset.pattern.permute.xlu0 4
        %755 = vperm.xlu0 %754, %v240
        %v756 = vpop.permute.xlu0 %755
        %757 = vset.pattern.permute.xlu0 4
        %758 = vperm.xlu0 %757, %v241
        %v759 = vpop.permute.xlu0 %758
        %760 = vset.pattern.permute.xlu0 4
        %761 = vperm.xlu0 %760, %v242
        %v762 = vpop.permute.xlu0 %761
        %763 = vset.pattern.permute.xlu0 4
        %764 = vperm.xlu0 %763, %v243
        %v765 = vpop.permute.xlu0 %764
        %766 = vset.pattern.permute.xlu0 4
        %767 = vperm.xlu0 %766, %v244
        %v768 = vpop.permute.xlu0 %767
        %769 = vset.pattern.permute.xlu0 4
        %770 = vperm.xlu0 %769, %v245
        %v771 = vpop.permute.xlu0 %770
        %772 = vset.pattern.permute.xlu0 4
        %773 = vperm.xlu0 %772, %v246
        %v774 = vpop.permute.xlu0 %773
        %775 = vset.pattern.permute.xlu0 4
        %776 = vperm.xlu0 %775, %v247
        %v777 = vpop.permute.xlu0 %776
        %778 = vset.pattern.permute.xlu0 4
        %779 = vperm.xlu0 %778, %v248
        %v780 = vpop.permute.xlu0 %779
        %vm781 = vcmp.eq.s32.totalorder %v735, %v227
        %vm782 = vcmp.eq.s32.totalorder %v738, %v227
        %vm783 = vcmp.eq.s32.totalorder %v741, %v227
        %vm784 = vcmp.eq.s32.totalorder %v744, %v227
        %vm785 = vcmp.eq.s32.totalorder %v747, %v227
        %vm786 = vcmp.eq.s32.totalorder %v750, %v227
        %vm787 = vcmp.eq.s32.totalorder %v753, %v227
        %vm788 = vcmp.eq.s32.totalorder %v756, %v227
        %vm789 = vcmp.eq.s32.totalorder %v759, %v227
        %vm790 = vcmp.eq.s32.totalorder %v762, %v227
        %vm791 = vcmp.eq.s32.totalorder %v765, %v227
        %vm792 = vcmp.eq.s32.totalorder %v768, %v227
        %vm793 = vcmp.eq.s32.totalorder %v771, %v227
        %vm794 = vcmp.eq.s32.totalorder %v774, %v227
        %vm795 = vcmp.eq.s32.totalorder %v777, %v227
        %vm796 = vcmp.eq.s32.totalorder %v780, %v227
        %v797 = vsel %vm781, 1, 0
        %v798 = vsel %vm782, 1, 0
        %v799 = vsel %vm783, 1, 0
        %v800 = vsel %vm784, 1, 0
        %v801 = vsel %vm785, 1, 0
        %v802 = vsel %vm786, 1, 0
        %v803 = vsel %vm787, 1, 0
        %v804 = vsel %vm788, 1, 0
        %v805 = vsel %vm789, 1, 0
        %v806 = vsel %vm790, 1, 0
        %v807 = vsel %vm791, 1, 0
        %v808 = vsel %vm792, 1, 0
        %v809 = vsel %vm793, 1, 0
        %v810 = vsel %vm794, 1, 0
        %v811 = vsel %vm795, 1, 0
        %v812 = vsel %vm796, 1, 0
        %v813 = vcvt.s32.f32 %v797
        %v814 = vcvt.s32.f32 %v798
        %v815 = vcvt.s32.f32 %v799
        %v816 = vcvt.s32.f32 %v800
        %v817 = vcvt.s32.f32 %v801
        %v818 = vcvt.s32.f32 %v802
        %v819 = vcvt.s32.f32 %v803
        %v820 = vcvt.s32.f32 %v804
        %v821 = vcvt.s32.f32 %v805
        %v822 = vcvt.s32.f32 %v806
        %v823 = vcvt.s32.f32 %v807
        %v824 = vcvt.s32.f32 %v808
        %v825 = vcvt.s32.f32 %v809
        %v826 = vcvt.s32.f32 %v810
        %v827 = vcvt.s32.f32 %v811
        %v828 = vcvt.s32.f32 %v812
        %v829 = vadd.f32 %v717, %v813
        %v830 = vadd.f32 %v718, %v814
        %v831 = vadd.f32 %v719, %v815
        %v832 = vadd.f32 %v720, %v816
        %v833 = vadd.f32 %v721, %v817
        %v834 = vadd.f32 %v722, %v818
        %v835 = vadd.f32 %v723, %v819
        %v836 = vadd.f32 %v724, %v820
        %v837 = vadd.f32 %v725, %v821
        %v838 = vadd.f32 %v726, %v822
        %v839 = vadd.f32 %v727, %v823
        %v840 = vadd.f32 %v728, %v824
        %v841 = vadd.f32 %v729, %v825
        %v842 = vadd.f32 %v730, %v826
        %v843 = vadd.f32 %v731, %v827
        %v844 = vadd.f32 %v732, %v828
        %845 = vset.pattern.permute.xlu0 5
        %846 = vperm.xlu0 %845, %v233
        %v847 = vpop.permute.xlu0 %846
        %848 = vset.pattern.permute.xlu0 5
        %849 = vperm.xlu0 %848, %v234
        %v850 = vpop.permute.xlu0 %849
        %851 = vset.pattern.permute.xlu0 5
        %852 = vperm.xlu0 %851, %v235
        %v853 = vpop.permute.xlu0 %852
        %854 = vset.pattern.permute.xlu0 5
        %855 = vperm.xlu0 %854, %v236
        %v856 = vpop.permute.xlu0 %855
        %857 = vset.pattern.permute.xlu0 5
        %858 = vperm.xlu0 %857, %v237
        %v859 = vpop.permute.xlu0 %858
        %860 = vset.pattern.permute.xlu0 5
        %861 = vperm.xlu0 %860, %v238
        %v862 = vpop.permute.xlu0 %861
        %863 = vset.pattern.permute.xlu0 5
        %864 = vperm.xlu0 %863, %v239
        %v865 = vpop.permute.xlu0 %864
        %866 = vset.pattern.permute.xlu0 5
        %867 = vperm.xlu0 %866, %v240
        %v868 = vpop.permute.xlu0 %867
        %869 = vset.pattern.permute.xlu0 5
        %870 = vperm.xlu0 %869, %v241
        %v871 = vpop.permute.xlu0 %870
        %872 = vset.pattern.permute.xlu0 5
        %873 = vperm.xlu0 %872, %v242
        %v874 = vpop.permute.xlu0 %873
        %875 = vset.pattern.permute.xlu0 5
        %876 = vperm.xlu0 %875, %v243
        %v877 = vpop.permute.xlu0 %876
        %878 = vset.pattern.permute.xlu0 5
        %879 = vperm.xlu0 %878, %v244
        %v880 = vpop.permute.xlu0 %879
        %881 = vset.pattern.permute.xlu0 5
        %882 = vperm.xlu0 %881, %v245
        %v883 = vpop.permute.xlu0 %882
        %884 = vset.pattern.permute.xlu0 5
        %885 = vperm.xlu0 %884, %v246
        %v886 = vpop.permute.xlu0 %885
        %887 = vset.pattern.permute.xlu0 5
        %888 = vperm.xlu0 %887, %v247
        %v889 = vpop.permute.xlu0 %888
        %890 = vset.pattern.permute.xlu0 5
        %891 = vperm.xlu0 %890, %v248
        %v892 = vpop.permute.xlu0 %891
        %vm893 = vcmp.eq.s32.totalorder %v847, %v227
        %vm894 = vcmp.eq.s32.totalorder %v850, %v227
        %vm895 = vcmp.eq.s32.totalorder %v853, %v227
        %vm896 = vcmp.eq.s32.totalorder %v856, %v227
        %vm897 = vcmp.eq.s32.totalorder %v859, %v227
        %vm898 = vcmp.eq.s32.totalorder %v862, %v227
        %vm899 = vcmp.eq.s32.totalorder %v865, %v227
        %vm900 = vcmp.eq.s32.totalorder %v868, %v227
        %vm901 = vcmp.eq.s32.totalorder %v871, %v227
        %vm902 = vcmp.eq.s32.totalorder %v874, %v227
        %vm903 = vcmp.eq.s32.totalorder %v877, %v227
        %vm904 = vcmp.eq.s32.totalorder %v880, %v227
        %vm905 = vcmp.eq.s32.totalorder %v883, %v227
        %vm906 = vcmp.eq.s32.totalorder %v886, %v227
        %vm907 = vcmp.eq.s32.totalorder %v889, %v227
        %vm908 = vcmp.eq.s32.totalorder %v892, %v227
        %v909 = vsel %vm893, 1, 0
        %v910 = vsel %vm894, 1, 0
        %v911 = vsel %vm895, 1, 0
        %v912 = vsel %vm896, 1, 0
        %v913 = vsel %vm897, 1, 0
        %v914 = vsel %vm898, 1, 0
        %v915 = vsel %vm899, 1, 0
        %v916 = vsel %vm900, 1, 0
        %v917 = vsel %vm901, 1, 0
        %v918 = vsel %vm902, 1, 0
        %v919 = vsel %vm903, 1, 0
        %v920 = vsel %vm904, 1, 0
        %v921 = vsel %vm905, 1, 0
        %v922 = vsel %vm906, 1, 0
        %v923 = vsel %vm907, 1, 0
        %v924 = vsel %vm908, 1, 0
        %v925 = vcvt.s32.f32 %v909
        %v926 = vcvt.s32.f32 %v910
        %v927 = vcvt.s32.f32 %v911
        %v928 = vcvt.s32.f32 %v912
        %v929 = vcvt.s32.f32 %v913
        %v930 = vcvt.s32.f32 %v914
        %v931 = vcvt.s32.f32 %v915
        %v932 = vcvt.s32.f32 %v916
        %v933 = vcvt.s32.f32 %v917
        %v934 = vcvt.s32.f32 %v918
        %v935 = vcvt.s32.f32 %v919
        %v936 = vcvt.s32.f32 %v920
        %v937 = vcvt.s32.f32 %v921
        %v938 = vcvt.s32.f32 %v922
        %v939 = vcvt.s32.f32 %v923
        %v940 = vcvt.s32.f32 %v924
        %v941 = vadd.f32 %v829, %v925
        %v942 = vadd.f32 %v830, %v926
        %v943 = vadd.f32 %v831, %v927
        %v944 = vadd.f32 %v832, %v928
        %v945 = vadd.f32 %v833, %v929
        %v946 = vadd.f32 %v834, %v930
        %v947 = vadd.f32 %v835, %v931
        %v948 = vadd.f32 %v836, %v932
        %v949 = vadd.f32 %v837, %v933
        %v950 = vadd.f32 %v838, %v934
        %v951 = vadd.f32 %v839, %v935
        %v952 = vadd.f32 %v840, %v936
        %v953 = vadd.f32 %v841, %v937
        %v954 = vadd.f32 %v842, %v938
        %v955 = vadd.f32 %v843, %v939
        %v956 = vadd.f32 %v844, %v940
        %957 = vset.pattern.permute.xlu0 6
        %958 = vperm.xlu0 %957, %v233
        %v959 = vpop.permute.xlu0 %958
        %960 = vset.pattern.permute.xlu0 6
        %961 = vperm.xlu0 %960, %v234
        %v962 = vpop.permute.xlu0 %961
        %963 = vset.pattern.permute.xlu0 6
        %964 = vperm.xlu0 %963, %v235
        %v965 = vpop.permute.xlu0 %964
        %966 = vset.pattern.permute.xlu0 6
        %967 = vperm.xlu0 %966, %v236
        %v968 = vpop.permute.xlu0 %967
        %969 = vset.pattern.permute.xlu0 6
        %970 = vperm.xlu0 %969, %v237
        %v971 = vpop.permute.xlu0 %970
        %972 = vset.pattern.permute.xlu0 6
        %973 = vperm.xlu0 %972, %v238
        %v974 = vpop.permute.xlu0 %973
        %975 = vset.pattern.permute.xlu0 6
        %976 = vperm.xlu0 %975, %v239
        %v977 = vpop.permute.xlu0 %976
        %978 = vset.pattern.permute.xlu0 6
        %979 = vperm.xlu0 %978, %v240
        %v980 = vpop.permute.xlu0 %979
        %981 = vset.pattern.permute.xlu0 6
        %982 = vperm.xlu0 %981, %v241
        %v983 = vpop.permute.xlu0 %982
        %984 = vset.pattern.permute.xlu0 6
        %985 = vperm.xlu0 %984, %v242
        %v986 = vpop.permute.xlu0 %985
        %987 = vset.pattern.permute.xlu0 6
        %988 = vperm.xlu0 %987, %v243
        %v989 = vpop.permute.xlu0 %988
        %990 = vset.pattern.permute.xlu0 6
        %991 = vperm.xlu0 %990, %v244
        %v992 = vpop.permute.xlu0 %991
        %993 = vset.pattern.permute.xlu0 6
        %994 = vperm.xlu0 %993, %v245
        %v995 = vpop.permute.xlu0 %994
        %996 = vset.pattern.permute.xlu0 6
        %997 = vperm.xlu0 %996, %v246
        %v998 = vpop.permute.xlu0 %997
        %999 = vset.pattern.permute.xlu0 6
        %1000 = vperm.xlu0 %999, %v247
        %v1001 = vpop.permute.xlu0 %1000
        %1002 = vset.pattern.permute.xlu0 6
        %1003 = vperm.xlu0 %1002, %v248
        %v1004 = vpop.permute.xlu0 %1003
        %vm1005 = vcmp.eq.s32.totalorder %v959, %v227
        %vm1006 = vcmp.eq.s32.totalorder %v962, %v227
        %vm1007 = vcmp.eq.s32.totalorder %v965, %v227
        %vm1008 = vcmp.eq.s32.totalorder %v968, %v227
        %vm1009 = vcmp.eq.s32.totalorder %v971, %v227
        %vm1010 = vcmp.eq.s32.totalorder %v974, %v227
        %vm1011 = vcmp.eq.s32.totalorder %v977, %v227
        %vm1012 = vcmp.eq.s32.totalorder %v980, %v227
        %vm1013 = vcmp.eq.s32.totalorder %v983, %v227
        %vm1014 = vcmp.eq.s32.totalorder %v986, %v227
        %vm1015 = vcmp.eq.s32.totalorder %v989, %v227
        %vm1016 = vcmp.eq.s32.totalorder %v992, %v227
        %vm1017 = vcmp.eq.s32.totalorder %v995, %v227
        %vm1018 = vcmp.eq.s32.totalorder %v998, %v227
        %vm1019 = vcmp.eq.s32.totalorder %v1001, %v227
        %vm1020 = vcmp.eq.s32.totalorder %v1004, %v227
        %v1021 = vsel %vm1005, 1, 0
        %v1022 = vsel %vm1006, 1, 0
        %v1023 = vsel %vm1007, 1, 0
        %v1024 = vsel %vm1008, 1, 0
        %v1025 = vsel %vm1009, 1, 0
        %v1026 = vsel %vm1010, 1, 0
        %v1027 = vsel %vm1011, 1, 0
        %v1028 = vsel %vm1012, 1, 0
        %v1029 = vsel %vm1013, 1, 0
        %v1030 = vsel %vm1014, 1, 0
        %v1031 = vsel %vm1015, 1, 0
        %v1032 = vsel %vm1016, 1, 0
        %v1033 = vsel %vm1017, 1, 0
        %v1034 = vsel %vm1018, 1, 0
        %v1035 = vsel %vm1019, 1, 0
        %v1036 = vsel %vm1020, 1, 0
        %v1037 = vcvt.s32.f32 %v1021
        %v1038 = vcvt.s32.f32 %v1022
        %v1039 = vcvt.s32.f32 %v1023
        %v1040 = vcvt.s32.f32 %v1024
        %v1041 = vcvt.s32.f32 %v1025
        %v1042 = vcvt.s32.f32 %v1026
        %v1043 = vcvt.s32.f32 %v1027
        %v1044 = vcvt.s32.f32 %v1028
        %v1045 = vcvt.s32.f32 %v1029
        %v1046 = vcvt.s32.f32 %v1030
        %v1047 = vcvt.s32.f32 %v1031
        %v1048 = vcvt.s32.f32 %v1032
        %v1049 = vcvt.s32.f32 %v1033
        %v1050 = vcvt.s32.f32 %v1034
        %v1051 = vcvt.s32.f32 %v1035
        %v1052 = vcvt.s32.f32 %v1036
        %v1053 = vadd.f32 %v941, %v1037
        %v1054 = vadd.f32 %v942, %v1038
        %v1055 = vadd.f32 %v943, %v1039
        %v1056 = vadd.f32 %v944, %v1040
        %v1057 = vadd.f32 %v945, %v1041
        %v1058 = vadd.f32 %v946, %v1042
        %v1059 = vadd.f32 %v947, %v1043
        %v1060 = vadd.f32 %v948, %v1044
        %v1061 = vadd.f32 %v949, %v1045
        %v1062 = vadd.f32 %v950, %v1046
        %v1063 = vadd.f32 %v951, %v1047
        %v1064 = vadd.f32 %v952, %v1048
        %v1065 = vadd.f32 %v953, %v1049
        %v1066 = vadd.f32 %v954, %v1050
        %v1067 = vadd.f32 %v955, %v1051
        %v1068 = vadd.f32 %v956, %v1052
        %1069 = vset.pattern.permute.xlu0 7
        %1070 = vperm.xlu0 %1069, %v233
        %v1071 = vpop.permute.xlu0 %1070
        %1072 = vset.pattern.permute.xlu0 7
        %1073 = vperm.xlu0 %1072, %v234
        %v1074 = vpop.permute.xlu0 %1073
        %1075 = vset.pattern.permute.xlu0 7
        %1076 = vperm.xlu0 %1075, %v235
        %v1077 = vpop.permute.xlu0 %1076
        %1078 = vset.pattern.permute.xlu0 7
        %1079 = vperm.xlu0 %1078, %v236
        %v1080 = vpop.permute.xlu0 %1079
        %1081 = vset.pattern.permute.xlu0 7
        %1082 = vperm.xlu0 %1081, %v237
        %v1083 = vpop.permute.xlu0 %1082
        %1084 = vset.pattern.permute.xlu0 7
        %1085 = vperm.xlu0 %1084, %v238
        %v1086 = vpop.permute.xlu0 %1085
        %1087 = vset.pattern.permute.xlu0 7
        %1088 = vperm.xlu0 %1087, %v239
        %v1089 = vpop.permute.xlu0 %1088
        %1090 = vset.pattern.permute.xlu0 7
        %1091 = vperm.xlu0 %1090, %v240
        %v1092 = vpop.permute.xlu0 %1091
        %1093 = vset.pattern.permute.xlu0 7
        %1094 = vperm.xlu0 %1093, %v241
        %v1095 = vpop.permute.xlu0 %1094
        %1096 = vset.pattern.permute.xlu0 7
        %1097 = vperm.xlu0 %1096, %v242
        %v1098 = vpop.permute.xlu0 %1097
        %1099 = vset.pattern.permute.xlu0 7
        %1100 = vperm.xlu0 %1099, %v243
        %v1101 = vpop.permute.xlu0 %1100
        %1102 = vset.pattern.permute.xlu0 7
        %1103 = vperm.xlu0 %1102, %v244
        %v1104 = vpop.permute.xlu0 %1103
        %1105 = vset.pattern.permute.xlu0 7
        %1106 = vperm.xlu0 %1105, %v245
        %v1107 = vpop.permute.xlu0 %1106
        %1108 = vset.pattern.permute.xlu0 7
        %1109 = vperm.xlu0 %1108, %v246
        %v1110 = vpop.permute.xlu0 %1109
        %1111 = vset.pattern.permute.xlu0 7
        %1112 = vperm.xlu0 %1111, %v247
        %v1113 = vpop.permute.xlu0 %1112
        %1114 = vset.pattern.permute.xlu0 7
        %1115 = vperm.xlu0 %1114, %v248
        %v1116 = vpop.permute.xlu0 %1115
        %vm1117 = vcmp.eq.s32.totalorder %v1071, %v227
        %vm1118 = vcmp.eq.s32.totalorder %v1074, %v227
        %vm1119 = vcmp.eq.s32.totalorder %v1077, %v227
        %vm1120 = vcmp.eq.s32.totalorder %v1080, %v227
        %vm1121 = vcmp.eq.s32.totalorder %v1083, %v227
        %vm1122 = vcmp.eq.s32.totalorder %v1086, %v227
        %vm1123 = vcmp.eq.s32.totalorder %v1089, %v227
        %vm1124 = vcmp.eq.s32.totalorder %v1092, %v227
        %vm1125 = vcmp.eq.s32.totalorder %v1095, %v227
        %vm1126 = vcmp.eq.s32.totalorder %v1098, %v227
        %vm1127 = vcmp.eq.s32.totalorder %v1101, %v227
        %vm1128 = vcmp.eq.s32.totalorder %v1104, %v227
        %vm1129 = vcmp.eq.s32.totalorder %v1107, %v227
        %vm1130 = vcmp.eq.s32.totalorder %v1110, %v227
        %vm1131 = vcmp.eq.s32.totalorder %v1113, %v227
        %vm1132 = vcmp.eq.s32.totalorder %v1116, %v227
        %v1133 = vsel %vm1117, 1, 0
        %v1134 = vsel %vm1118, 1, 0
        %v1135 = vsel %vm1119, 1, 0
        %v1136 = vsel %vm1120, 1, 0
        %v1137 = vsel %vm1121, 1, 0
        %v1138 = vsel %vm1122, 1, 0
        %v1139 = vsel %vm1123, 1, 0
        %v1140 = vsel %vm1124, 1, 0
        %v1141 = vsel %vm1125, 1, 0
        %v1142 = vsel %vm1126, 1, 0
        %v1143 = vsel %vm1127, 1, 0
        %v1144 = vsel %vm1128, 1, 0
        %v1145 = vsel %vm1129, 1, 0
        %v1146 = vsel %vm1130, 1, 0
        %v1147 = vsel %vm1131, 1, 0
        %v1148 = vsel %vm1132, 1, 0
        %v1149 = vcvt.s32.f32 %v1133
        %v1150 = vcvt.s32.f32 %v1134
        %v1151 = vcvt.s32.f32 %v1135
        %v1152 = vcvt.s32.f32 %v1136
        %v1153 = vcvt.s32.f32 %v1137
        %v1154 = vcvt.s32.f32 %v1138
        %v1155 = vcvt.s32.f32 %v1139
        %v1156 = vcvt.s32.f32 %v1140
        %v1157 = vcvt.s32.f32 %v1141
        %v1158 = vcvt.s32.f32 %v1142
        %v1159 = vcvt.s32.f32 %v1143
        %v1160 = vcvt.s32.f32 %v1144
        %v1161 = vcvt.s32.f32 %v1145
        %v1162 = vcvt.s32.f32 %v1146
        %v1163 = vcvt.s32.f32 %v1147
        %v1164 = vcvt.s32.f32 %v1148
        %v1165 = vadd.f32 %v1053, %v1149
        %v1166 = vadd.f32 %v1054, %v1150
        %v1167 = vadd.f32 %v1055, %v1151
        %v1168 = vadd.f32 %v1056, %v1152
        %v1169 = vadd.f32 %v1057, %v1153
        %v1170 = vadd.f32 %v1058, %v1154
        %v1171 = vadd.f32 %v1059, %v1155
        %v1172 = vadd.f32 %v1060, %v1156
        %v1173 = vadd.f32 %v1061, %v1157
        %v1174 = vadd.f32 %v1062, %v1158
        %v1175 = vadd.f32 %v1063, %v1159
        %v1176 = vadd.f32 %v1064, %v1160
        %v1177 = vadd.f32 %v1065, %v1161
        %v1178 = vadd.f32 %v1066, %v1162
        %v1179 = vadd.f32 %v1067, %v1163
        %v1180 = vadd.f32 %v1068, %v1164
        %1181 = vset.pattern.permute.xlu0 8
        %1182 = vperm.xlu0 %1181, %v233
        %v1183 = vpop.permute.xlu0 %1182
        %1184 = vset.pattern.permute.xlu0 8
        %1185 = vperm.xlu0 %1184, %v234
        %v1186 = vpop.permute.xlu0 %1185
        %1187 = vset.pattern.permute.xlu0 8
        %1188 = vperm.xlu0 %1187, %v235
        %v1189 = vpop.permute.xlu0 %1188
        %1190 = vset.pattern.permute.xlu0 8
        %1191 = vperm.xlu0 %1190, %v236
        %v1192 = vpop.permute.xlu0 %1191
        %1193 = vset.pattern.permute.xlu0 8
        %1194 = vperm.xlu0 %1193, %v237
        %v1195 = vpop.permute.xlu0 %1194
        %1196 = vset.pattern.permute.xlu0 8
        %1197 = vperm.xlu0 %1196, %v238
        %v1198 = vpop.permute.xlu0 %1197
        %1199 = vset.pattern.permute.xlu0 8
        %1200 = vperm.xlu0 %1199, %v239
        %v1201 = vpop.permute.xlu0 %1200
        %1202 = vset.pattern.permute.xlu0 8
        %1203 = vperm.xlu0 %1202, %v240
        %v1204 = vpop.permute.xlu0 %1203
        %1205 = vset.pattern.permute.xlu0 8
        %1206 = vperm.xlu0 %1205, %v241
        %v1207 = vpop.permute.xlu0 %1206
        %1208 = vset.pattern.permute.xlu0 8
        %1209 = vperm.xlu0 %1208, %v242
        %v1210 = vpop.permute.xlu0 %1209
        %1211 = vset.pattern.permute.xlu0 8
        %1212 = vperm.xlu0 %1211, %v243
        %v1213 = vpop.permute.xlu0 %1212
        %1214 = vset.pattern.permute.xlu0 8
        %1215 = vperm.xlu0 %1214, %v244
        %v1216 = vpop.permute.xlu0 %1215
        %1217 = vset.pattern.permute.xlu0 8
        %1218 = vperm.xlu0 %1217, %v245
        %v1219 = vpop.permute.xlu0 %1218
        %1220 = vset.pattern.permute.xlu0 8
        %1221 = vperm.xlu0 %1220, %v246
        %v1222 = vpop.permute.xlu0 %1221
        %1223 = vset.pattern.permute.xlu0 8
        %1224 = vperm.xlu0 %1223, %v247
        %v1225 = vpop.permute.xlu0 %1224
        %1226 = vset.pattern.permute.xlu0 8
        %1227 = vperm.xlu0 %1226, %v248
        %v1228 = vpop.permute.xlu0 %1227
        %vm1229 = vcmp.eq.s32.totalorder %v1183, %v227
        %vm1230 = vcmp.eq.s32.totalorder %v1186, %v227
        %vm1231 = vcmp.eq.s32.totalorder %v1189, %v227
        %vm1232 = vcmp.eq.s32.totalorder %v1192, %v227
        %vm1233 = vcmp.eq.s32.totalorder %v1195, %v227
        %vm1234 = vcmp.eq.s32.totalorder %v1198, %v227
        %vm1235 = vcmp.eq.s32.totalorder %v1201, %v227
        %vm1236 = vcmp.eq.s32.totalorder %v1204, %v227
        %vm1237 = vcmp.eq.s32.totalorder %v1207, %v227
        %vm1238 = vcmp.eq.s32.totalorder %v1210, %v227
        %vm1239 = vcmp.eq.s32.totalorder %v1213, %v227
        %vm1240 = vcmp.eq.s32.totalorder %v1216, %v227
        %vm1241 = vcmp.eq.s32.totalorder %v1219, %v227
        %vm1242 = vcmp.eq.s32.totalorder %v1222, %v227
        %vm1243 = vcmp.eq.s32.totalorder %v1225, %v227
        %vm1244 = vcmp.eq.s32.totalorder %v1228, %v227
        %v1245 = vsel %vm1229, 1, 0
        %v1246 = vsel %vm1230, 1, 0
        %v1247 = vsel %vm1231, 1, 0
        %v1248 = vsel %vm1232, 1, 0
        %v1249 = vsel %vm1233, 1, 0
        %v1250 = vsel %vm1234, 1, 0
        %v1251 = vsel %vm1235, 1, 0
        %v1252 = vsel %vm1236, 1, 0
        %v1253 = vsel %vm1237, 1, 0
        %v1254 = vsel %vm1238, 1, 0
        %v1255 = vsel %vm1239, 1, 0
        %v1256 = vsel %vm1240, 1, 0
        %v1257 = vsel %vm1241, 1, 0
        %v1258 = vsel %vm1242, 1, 0
        %v1259 = vsel %vm1243, 1, 0
        %v1260 = vsel %vm1244, 1, 0
        %v1261 = vcvt.s32.f32 %v1245
        %v1262 = vcvt.s32.f32 %v1246
        %v1263 = vcvt.s32.f32 %v1247
        %v1264 = vcvt.s32.f32 %v1248
        %v1265 = vcvt.s32.f32 %v1249
        %v1266 = vcvt.s32.f32 %v1250
        %v1267 = vcvt.s32.f32 %v1251
        %v1268 = vcvt.s32.f32 %v1252
        %v1269 = vcvt.s32.f32 %v1253
        %v1270 = vcvt.s32.f32 %v1254
        %v1271 = vcvt.s32.f32 %v1255
        %v1272 = vcvt.s32.f32 %v1256
        %v1273 = vcvt.s32.f32 %v1257
        %v1274 = vcvt.s32.f32 %v1258
        %v1275 = vcvt.s32.f32 %v1259
        %v1276 = vcvt.s32.f32 %v1260
        %v1277 = vadd.f32 %v1165, %v1261
        %v1278 = vadd.f32 %v1166, %v1262
        %v1279 = vadd.f32 %v1167, %v1263
        %v1280 = vadd.f32 %v1168, %v1264
        %v1281 = vadd.f32 %v1169, %v1265
        %v1282 = vadd.f32 %v1170, %v1266
        %v1283 = vadd.f32 %v1171, %v1267
        %v1284 = vadd.f32 %v1172, %v1268
        %v1285 = vadd.f32 %v1173, %v1269
        %v1286 = vadd.f32 %v1174, %v1270
        %v1287 = vadd.f32 %v1175, %v1271
        %v1288 = vadd.f32 %v1176, %v1272
        %v1289 = vadd.f32 %v1177, %v1273
        %v1290 = vadd.f32 %v1178, %v1274
        %v1291 = vadd.f32 %v1179, %v1275
        %v1292 = vadd.f32 %v1180, %v1276
        %1293 = vset.pattern.permute.xlu0 9
        %1294 = vperm.xlu0 %1293, %v233
        %v1295 = vpop.permute.xlu0 %1294
        %1296 = vset.pattern.permute.xlu0 9
        %1297 = vperm.xlu0 %1296, %v234
        %v1298 = vpop.permute.xlu0 %1297
        %1299 = vset.pattern.permute.xlu0 9
        %1300 = vperm.xlu0 %1299, %v235
        %v1301 = vpop.permute.xlu0 %1300
        %1302 = vset.pattern.permute.xlu0 9
        %1303 = vperm.xlu0 %1302, %v236
        %v1304 = vpop.permute.xlu0 %1303
        %1305 = vset.pattern.permute.xlu0 9
        %1306 = vperm.xlu0 %1305, %v237
        %v1307 = vpop.permute.xlu0 %1306
        %1308 = vset.pattern.permute.xlu0 9
        %1309 = vperm.xlu0 %1308, %v238
        %v1310 = vpop.permute.xlu0 %1309
        %1311 = vset.pattern.permute.xlu0 9
        %1312 = vperm.xlu0 %1311, %v239
        %v1313 = vpop.permute.xlu0 %1312
        %1314 = vset.pattern.permute.xlu0 9
        %1315 = vperm.xlu0 %1314, %v240
        %v1316 = vpop.permute.xlu0 %1315
        %1317 = vset.pattern.permute.xlu0 9
        %1318 = vperm.xlu0 %1317, %v241
        %v1319 = vpop.permute.xlu0 %1318
        %1320 = vset.pattern.permute.xlu0 9
        %1321 = vperm.xlu0 %1320, %v242
        %v1322 = vpop.permute.xlu0 %1321
        %1323 = vset.pattern.permute.xlu0 9
        %1324 = vperm.xlu0 %1323, %v243
        %v1325 = vpop.permute.xlu0 %1324
        %1326 = vset.pattern.permute.xlu0 9
        %1327 = vperm.xlu0 %1326, %v244
        %v1328 = vpop.permute.xlu0 %1327
        %1329 = vset.pattern.permute.xlu0 9
        %1330 = vperm.xlu0 %1329, %v245
        %v1331 = vpop.permute.xlu0 %1330
        %1332 = vset.pattern.permute.xlu0 9
        %1333 = vperm.xlu0 %1332, %v246
        %v1334 = vpop.permute.xlu0 %1333
        %1335 = vset.pattern.permute.xlu0 9
        %1336 = vperm.xlu0 %1335, %v247
        %v1337 = vpop.permute.xlu0 %1336
        %1338 = vset.pattern.permute.xlu0 9
        %1339 = vperm.xlu0 %1338, %v248
        %v1340 = vpop.permute.xlu0 %1339
        %vm1341 = vcmp.eq.s32.totalorder %v1295, %v227
        %vm1342 = vcmp.eq.s32.totalorder %v1298, %v227
        %vm1343 = vcmp.eq.s32.totalorder %v1301, %v227
        %vm1344 = vcmp.eq.s32.totalorder %v1304, %v227
        %vm1345 = vcmp.eq.s32.totalorder %v1307, %v227
        %vm1346 = vcmp.eq.s32.totalorder %v1310, %v227
        %vm1347 = vcmp.eq.s32.totalorder %v1313, %v227
        %vm1348 = vcmp.eq.s32.totalorder %v1316, %v227
        %vm1349 = vcmp.eq.s32.totalorder %v1319, %v227
        %vm1350 = vcmp.eq.s32.totalorder %v1322, %v227
        %vm1351 = vcmp.eq.s32.totalorder %v1325, %v227
        %vm1352 = vcmp.eq.s32.totalorder %v1328, %v227
        %vm1353 = vcmp.eq.s32.totalorder %v1331, %v227
        %vm1354 = vcmp.eq.s32.totalorder %v1334, %v227
        %vm1355 = vcmp.eq.s32.totalorder %v1337, %v227
        %vm1356 = vcmp.eq.s32.totalorder %v1340, %v227
        %v1357 = vsel %vm1341, 1, 0
        %v1358 = vsel %vm1342, 1, 0
        %v1359 = vsel %vm1343, 1, 0
        %v1360 = vsel %vm1344, 1, 0
        %v1361 = vsel %vm1345, 1, 0
        %v1362 = vsel %vm1346, 1, 0
        %v1363 = vsel %vm1347, 1, 0
        %v1364 = vsel %vm1348, 1, 0
        %v1365 = vsel %vm1349, 1, 0
        %v1366 = vsel %vm1350, 1, 0
        %v1367 = vsel %vm1351, 1, 0
        %v1368 = vsel %vm1352, 1, 0
        %v1369 = vsel %vm1353, 1, 0
        %v1370 = vsel %vm1354, 1, 0
        %v1371 = vsel %vm1355, 1, 0
        %v1372 = vsel %vm1356, 1, 0
        %v1373 = vcvt.s32.f32 %v1357
        %v1374 = vcvt.s32.f32 %v1358
        %v1375 = vcvt.s32.f32 %v1359
        %v1376 = vcvt.s32.f32 %v1360
        %v1377 = vcvt.s32.f32 %v1361
        %v1378 = vcvt.s32.f32 %v1362
        %v1379 = vcvt.s32.f32 %v1363
        %v1380 = vcvt.s32.f32 %v1364
        %v1381 = vcvt.s32.f32 %v1365
        %v1382 = vcvt.s32.f32 %v1366
        %v1383 = vcvt.s32.f32 %v1367
        %v1384 = vcvt.s32.f32 %v1368
        %v1385 = vcvt.s32.f32 %v1369
        %v1386 = vcvt.s32.f32 %v1370
        %v1387 = vcvt.s32.f32 %v1371
        %v1388 = vcvt.s32.f32 %v1372
        %v1389 = vadd.f32 %v1277, %v1373
        %v1390 = vadd.f32 %v1278, %v1374
        %v1391 = vadd.f32 %v1279, %v1375
        %v1392 = vadd.f32 %v1280, %v1376
        %v1393 = vadd.f32 %v1281, %v1377
        %v1394 = vadd.f32 %v1282, %v1378
        %v1395 = vadd.f32 %v1283, %v1379
        %v1396 = vadd.f32 %v1284, %v1380
        %v1397 = vadd.f32 %v1285, %v1381
        %v1398 = vadd.f32 %v1286, %v1382
        %v1399 = vadd.f32 %v1287, %v1383
        %v1400 = vadd.f32 %v1288, %v1384
        %v1401 = vadd.f32 %v1289, %v1385
        %v1402 = vadd.f32 %v1290, %v1386
        %v1403 = vadd.f32 %v1291, %v1387
        %v1404 = vadd.f32 %v1292, %v1388
        %1405 = vset.pattern.permute.xlu0 10
        %1406 = vperm.xlu0 %1405, %v233
        %v1407 = vpop.permute.xlu0 %1406
        %1408 = vset.pattern.permute.xlu0 10
        %1409 = vperm.xlu0 %1408, %v234
        %v1410 = vpop.permute.xlu0 %1409
        %1411 = vset.pattern.permute.xlu0 10
        %1412 = vperm.xlu0 %1411, %v235
        %v1413 = vpop.permute.xlu0 %1412
        %1414 = vset.pattern.permute.xlu0 10
        %1415 = vperm.xlu0 %1414, %v236
        %v1416 = vpop.permute.xlu0 %1415
        %1417 = vset.pattern.permute.xlu0 10
        %1418 = vperm.xlu0 %1417, %v237
        %v1419 = vpop.permute.xlu0 %1418
        %1420 = vset.pattern.permute.xlu0 10
        %1421 = vperm.xlu0 %1420, %v238
        %v1422 = vpop.permute.xlu0 %1421
        %1423 = vset.pattern.permute.xlu0 10
        %1424 = vperm.xlu0 %1423, %v239
        %v1425 = vpop.permute.xlu0 %1424
        %1426 = vset.pattern.permute.xlu0 10
        %1427 = vperm.xlu0 %1426, %v240
        %v1428 = vpop.permute.xlu0 %1427
        %1429 = vset.pattern.permute.xlu0 10
        %1430 = vperm.xlu0 %1429, %v241
        %v1431 = vpop.permute.xlu0 %1430
        %1432 = vset.pattern.permute.xlu0 10
        %1433 = vperm.xlu0 %1432, %v242
        %v1434 = vpop.permute.xlu0 %1433
        %1435 = vset.pattern.permute.xlu0 10
        %1436 = vperm.xlu0 %1435, %v243
        %v1437 = vpop.permute.xlu0 %1436
        %1438 = vset.pattern.permute.xlu0 10
        %1439 = vperm.xlu0 %1438, %v244
        %v1440 = vpop.permute.xlu0 %1439
        %1441 = vset.pattern.permute.xlu0 10
        %1442 = vperm.xlu0 %1441, %v245
        %v1443 = vpop.permute.xlu0 %1442
        %1444 = vset.pattern.permute.xlu0 10
        %1445 = vperm.xlu0 %1444, %v246
        %v1446 = vpop.permute.xlu0 %1445
        %1447 = vset.pattern.permute.xlu0 10
        %1448 = vperm.xlu0 %1447, %v247
        %v1449 = vpop.permute.xlu0 %1448
        %1450 = vset.pattern.permute.xlu0 10
        %1451 = vperm.xlu0 %1450, %v248
        %v1452 = vpop.permute.xlu0 %1451
        %vm1453 = vcmp.eq.s32.totalorder %v1407, %v227
        %vm1454 = vcmp.eq.s32.totalorder %v1410, %v227
        %vm1455 = vcmp.eq.s32.totalorder %v1413, %v227
        %vm1456 = vcmp.eq.s32.totalorder %v1416, %v227
        %vm1457 = vcmp.eq.s32.totalorder %v1419, %v227
        %vm1458 = vcmp.eq.s32.totalorder %v1422, %v227
        %vm1459 = vcmp.eq.s32.totalorder %v1425, %v227
        %vm1460 = vcmp.eq.s32.totalorder %v1428, %v227
        %vm1461 = vcmp.eq.s32.totalorder %v1431, %v227
        %vm1462 = vcmp.eq.s32.totalorder %v1434, %v227
        %vm1463 = vcmp.eq.s32.totalorder %v1437, %v227
        %vm1464 = vcmp.eq.s32.totalorder %v1440, %v227
        %vm1465 = vcmp.eq.s32.totalorder %v1443, %v227
        %vm1466 = vcmp.eq.s32.totalorder %v1446, %v227
        %vm1467 = vcmp.eq.s32.totalorder %v1449, %v227
        %vm1468 = vcmp.eq.s32.totalorder %v1452, %v227
        %v1469 = vsel %vm1453, 1, 0
        %v1470 = vsel %vm1454, 1, 0
        %v1471 = vsel %vm1455, 1, 0
        %v1472 = vsel %vm1456, 1, 0
        %v1473 = vsel %vm1457, 1, 0
        %v1474 = vsel %vm1458, 1, 0
        %v1475 = vsel %vm1459, 1, 0
        %v1476 = vsel %vm1460, 1, 0
        %v1477 = vsel %vm1461, 1, 0
        %v1478 = vsel %vm1462, 1, 0
        %v1479 = vsel %vm1463, 1, 0
        %v1480 = vsel %vm1464, 1, 0
        %v1481 = vsel %vm1465, 1, 0
        %v1482 = vsel %vm1466, 1, 0
        %v1483 = vsel %vm1467, 1, 0
        %v1484 = vsel %vm1468, 1, 0
        %v1485 = vcvt.s32.f32 %v1469
        %v1486 = vcvt.s32.f32 %v1470
        %v1487 = vcvt.s32.f32 %v1471
        %v1488 = vcvt.s32.f32 %v1472
        %v1489 = vcvt.s32.f32 %v1473
        %v1490 = vcvt.s32.f32 %v1474
        %v1491 = vcvt.s32.f32 %v1475
        %v1492 = vcvt.s32.f32 %v1476
        %v1493 = vcvt.s32.f32 %v1477
        %v1494 = vcvt.s32.f32 %v1478
        %v1495 = vcvt.s32.f32 %v1479
        %v1496 = vcvt.s32.f32 %v1480
        %v1497 = vcvt.s32.f32 %v1481
        %v1498 = vcvt.s32.f32 %v1482
        %v1499 = vcvt.s32.f32 %v1483
        %v1500 = vcvt.s32.f32 %v1484
        %v1501 = vadd.f32 %v1389, %v1485
        %v1502 = vadd.f32 %v1390, %v1486
        %v1503 = vadd.f32 %v1391, %v1487
        %v1504 = vadd.f32 %v1392, %v1488
        %v1505 = vadd.f32 %v1393, %v1489
        %v1506 = vadd.f32 %v1394, %v1490
        %v1507 = vadd.f32 %v1395, %v1491
        %v1508 = vadd.f32 %v1396, %v1492
        %v1509 = vadd.f32 %v1397, %v1493
        %v1510 = vadd.f32 %v1398, %v1494
        %v1511 = vadd.f32 %v1399, %v1495
        %v1512 = vadd.f32 %v1400, %v1496
        %v1513 = vadd.f32 %v1401, %v1497
        %v1514 = vadd.f32 %v1402, %v1498
        %v1515 = vadd.f32 %v1403, %v1499
        %v1516 = vadd.f32 %v1404, %v1500
        %1517 = vset.pattern.permute.xlu0 11
        %1518 = vperm.xlu0 %1517, %v233
        %v1519 = vpop.permute.xlu0 %1518
        %1520 = vset.pattern.permute.xlu0 11
        %1521 = vperm.xlu0 %1520, %v234
        %v1522 = vpop.permute.xlu0 %1521
        %1523 = vset.pattern.permute.xlu0 11
        %1524 = vperm.xlu0 %1523, %v235
        %v1525 = vpop.permute.xlu0 %1524
        %1526 = vset.pattern.permute.xlu0 11
        %1527 = vperm.xlu0 %1526, %v236
        %v1528 = vpop.permute.xlu0 %1527
        %1529 = vset.pattern.permute.xlu0 11
        %1530 = vperm.xlu0 %1529, %v237
        %v1531 = vpop.permute.xlu0 %1530
        %1532 = vset.pattern.permute.xlu0 11
        %1533 = vperm.xlu0 %1532, %v238
        %v1534 = vpop.permute.xlu0 %1533
        %1535 = vset.pattern.permute.xlu0 11
        %1536 = vperm.xlu0 %1535, %v239
        %v1537 = vpop.permute.xlu0 %1536
        %1538 = vset.pattern.permute.xlu0 11
        %1539 = vperm.xlu0 %1538, %v240
        %v1540 = vpop.permute.xlu0 %1539
        %1541 = vset.pattern.permute.xlu0 11
        %1542 = vperm.xlu0 %1541, %v241
        %v1543 = vpop.permute.xlu0 %1542
        %1544 = vset.pattern.permute.xlu0 11
        %1545 = vperm.xlu0 %1544, %v242
        %v1546 = vpop.permute.xlu0 %1545
        %1547 = vset.pattern.permute.xlu0 11
        %1548 = vperm.xlu0 %1547, %v243
        %v1549 = vpop.permute.xlu0 %1548
        %1550 = vset.pattern.permute.xlu0 11
        %1551 = vperm.xlu0 %1550, %v244
        %v1552 = vpop.permute.xlu0 %1551
        %1553 = vset.pattern.permute.xlu0 11
        %1554 = vperm.xlu0 %1553, %v245
        %v1555 = vpop.permute.xlu0 %1554
        %1556 = vset.pattern.permute.xlu0 11
        %1557 = vperm.xlu0 %1556, %v246
        %v1558 = vpop.permute.xlu0 %1557
        %1559 = vset.pattern.permute.xlu0 11
        %1560 = vperm.xlu0 %1559, %v247
        %v1561 = vpop.permute.xlu0 %1560
        %1562 = vset.pattern.permute.xlu0 11
        %1563 = vperm.xlu0 %1562, %v248
        %v1564 = vpop.permute.xlu0 %1563
        %vm1565 = vcmp.eq.s32.totalorder %v1519, %v227
        %vm1566 = vcmp.eq.s32.totalorder %v1522, %v227
        %vm1567 = vcmp.eq.s32.totalorder %v1525, %v227
        %vm1568 = vcmp.eq.s32.totalorder %v1528, %v227
        %vm1569 = vcmp.eq.s32.totalorder %v1531, %v227
        %vm1570 = vcmp.eq.s32.totalorder %v1534, %v227
        %vm1571 = vcmp.eq.s32.totalorder %v1537, %v227
        %vm1572 = vcmp.eq.s32.totalorder %v1540, %v227
        %vm1573 = vcmp.eq.s32.totalorder %v1543, %v227
        %vm1574 = vcmp.eq.s32.totalorder %v1546, %v227
        %vm1575 = vcmp.eq.s32.totalorder %v1549, %v227
        %vm1576 = vcmp.eq.s32.totalorder %v1552, %v227
        %vm1577 = vcmp.eq.s32.totalorder %v1555, %v227
        %vm1578 = vcmp.eq.s32.totalorder %v1558, %v227
        %vm1579 = vcmp.eq.s32.totalorder %v1561, %v227
        %vm1580 = vcmp.eq.s32.totalorder %v1564, %v227
        %v1581 = vsel %vm1565, 1, 0
        %v1582 = vsel %vm1566, 1, 0
        %v1583 = vsel %vm1567, 1, 0
        %v1584 = vsel %vm1568, 1, 0
        %v1585 = vsel %vm1569, 1, 0
        %v1586 = vsel %vm1570, 1, 0
        %v1587 = vsel %vm1571, 1, 0
        %v1588 = vsel %vm1572, 1, 0
        %v1589 = vsel %vm1573, 1, 0
        %v1590 = vsel %vm1574, 1, 0
        %v1591 = vsel %vm1575, 1, 0
        %v1592 = vsel %vm1576, 1, 0
        %v1593 = vsel %vm1577, 1, 0
        %v1594 = vsel %vm1578, 1, 0
        %v1595 = vsel %vm1579, 1, 0
        %v1596 = vsel %vm1580, 1, 0
        %v1597 = vcvt.s32.f32 %v1581
        %v1598 = vcvt.s32.f32 %v1582
        %v1599 = vcvt.s32.f32 %v1583
        %v1600 = vcvt.s32.f32 %v1584
        %v1601 = vcvt.s32.f32 %v1585
        %v1602 = vcvt.s32.f32 %v1586
        %v1603 = vcvt.s32.f32 %v1587
        %v1604 = vcvt.s32.f32 %v1588
        %v1605 = vcvt.s32.f32 %v1589
        %v1606 = vcvt.s32.f32 %v1590
        %v1607 = vcvt.s32.f32 %v1591
        %v1608 = vcvt.s32.f32 %v1592
        %v1609 = vcvt.s32.f32 %v1593
        %v1610 = vcvt.s32.f32 %v1594
        %v1611 = vcvt.s32.f32 %v1595
        %v1612 = vcvt.s32.f32 %v1596
        %v1613 = vadd.f32 %v1501, %v1597
        %v1614 = vadd.f32 %v1502, %v1598
        %v1615 = vadd.f32 %v1503, %v1599
        %v1616 = vadd.f32 %v1504, %v1600
        %v1617 = vadd.f32 %v1505, %v1601
        %v1618 = vadd.f32 %v1506, %v1602
        %v1619 = vadd.f32 %v1507, %v1603
        %v1620 = vadd.f32 %v1508, %v1604
        %v1621 = vadd.f32 %v1509, %v1605
        %v1622 = vadd.f32 %v1510, %v1606
        %v1623 = vadd.f32 %v1511, %v1607
        %v1624 = vadd.f32 %v1512, %v1608
        %v1625 = vadd.f32 %v1513, %v1609
        %v1626 = vadd.f32 %v1514, %v1610
        %v1627 = vadd.f32 %v1515, %v1611
        %v1628 = vadd.f32 %v1516, %v1612
        %1629 = vset.pattern.permute.xlu0 12
        %1630 = vperm.xlu0 %1629, %v233
        %v1631 = vpop.permute.xlu0 %1630
        %1632 = vset.pattern.permute.xlu0 12
        %1633 = vperm.xlu0 %1632, %v234
        %v1634 = vpop.permute.xlu0 %1633
        %1635 = vset.pattern.permute.xlu0 12
        %1636 = vperm.xlu0 %1635, %v235
        %v1637 = vpop.permute.xlu0 %1636
        %1638 = vset.pattern.permute.xlu0 12
        %1639 = vperm.xlu0 %1638, %v236
        %v1640 = vpop.permute.xlu0 %1639
        %1641 = vset.pattern.permute.xlu0 12
        %1642 = vperm.xlu0 %1641, %v237
        %v1643 = vpop.permute.xlu0 %1642
        %1644 = vset.pattern.permute.xlu0 12
        %1645 = vperm.xlu0 %1644, %v238
        %v1646 = vpop.permute.xlu0 %1645
        %1647 = vset.pattern.permute.xlu0 12
        %1648 = vperm.xlu0 %1647, %v239
        %v1649 = vpop.permute.xlu0 %1648
        %1650 = vset.pattern.permute.xlu0 12
        %1651 = vperm.xlu0 %1650, %v240
        %v1652 = vpop.permute.xlu0 %1651
        %1653 = vset.pattern.permute.xlu0 12
        %1654 = vperm.xlu0 %1653, %v241
        %v1655 = vpop.permute.xlu0 %1654
        %1656 = vset.pattern.permute.xlu0 12
        %1657 = vperm.xlu0 %1656, %v242
        %v1658 = vpop.permute.xlu0 %1657
        %1659 = vset.pattern.permute.xlu0 12
        %1660 = vperm.xlu0 %1659, %v243
        %v1661 = vpop.permute.xlu0 %1660
        %1662 = vset.pattern.permute.xlu0 12
        %1663 = vperm.xlu0 %1662, %v244
        %v1664 = vpop.permute.xlu0 %1663
        %1665 = vset.pattern.permute.xlu0 12
        %1666 = vperm.xlu0 %1665, %v245
        %v1667 = vpop.permute.xlu0 %1666
        %1668 = vset.pattern.permute.xlu0 12
        %1669 = vperm.xlu0 %1668, %v246
        %v1670 = vpop.permute.xlu0 %1669
        %1671 = vset.pattern.permute.xlu0 12
        %1672 = vperm.xlu0 %1671, %v247
        %v1673 = vpop.permute.xlu0 %1672
        %1674 = vset.pattern.permute.xlu0 12
        %1675 = vperm.xlu0 %1674, %v248
        %v1676 = vpop.permute.xlu0 %1675
        %vm1677 = vcmp.eq.s32.totalorder %v1631, %v227
        %vm1678 = vcmp.eq.s32.totalorder %v1634, %v227
        %vm1679 = vcmp.eq.s32.totalorder %v1637, %v227
        %vm1680 = vcmp.eq.s32.totalorder %v1640, %v227
        %vm1681 = vcmp.eq.s32.totalorder %v1643, %v227
        %vm1682 = vcmp.eq.s32.totalorder %v1646, %v227
        %vm1683 = vcmp.eq.s32.totalorder %v1649, %v227
        %vm1684 = vcmp.eq.s32.totalorder %v1652, %v227
        %vm1685 = vcmp.eq.s32.totalorder %v1655, %v227
        %vm1686 = vcmp.eq.s32.totalorder %v1658, %v227
        %vm1687 = vcmp.eq.s32.totalorder %v1661, %v227
        %vm1688 = vcmp.eq.s32.totalorder %v1664, %v227
        %vm1689 = vcmp.eq.s32.totalorder %v1667, %v227
        %vm1690 = vcmp.eq.s32.totalorder %v1670, %v227
        %vm1691 = vcmp.eq.s32.totalorder %v1673, %v227
        %vm1692 = vcmp.eq.s32.totalorder %v1676, %v227
        %v1693 = vsel %vm1677, 1, 0
        %v1694 = vsel %vm1678, 1, 0
        %v1695 = vsel %vm1679, 1, 0
        %v1696 = vsel %vm1680, 1, 0
        %v1697 = vsel %vm1681, 1, 0
        %v1698 = vsel %vm1682, 1, 0
        %v1699 = vsel %vm1683, 1, 0
        %v1700 = vsel %vm1684, 1, 0
        %v1701 = vsel %vm1685, 1, 0
        %v1702 = vsel %vm1686, 1, 0
        %v1703 = vsel %vm1687, 1, 0
        %v1704 = vsel %vm1688, 1, 0
        %v1705 = vsel %vm1689, 1, 0
        %v1706 = vsel %vm1690, 1, 0
        %v1707 = vsel %vm1691, 1, 0
        %v1708 = vsel %vm1692, 1, 0
        %v1709 = vcvt.s32.f32 %v1693
        %v1710 = vcvt.s32.f32 %v1694
        %v1711 = vcvt.s32.f32 %v1695
        %v1712 = vcvt.s32.f32 %v1696
        %v1713 = vcvt.s32.f32 %v1697
        %v1714 = vcvt.s32.f32 %v1698
        %v1715 = vcvt.s32.f32 %v1699
        %v1716 = vcvt.s32.f32 %v1700
        %v1717 = vcvt.s32.f32 %v1701
        %v1718 = vcvt.s32.f32 %v1702
        %v1719 = vcvt.s32.f32 %v1703
        %v1720 = vcvt.s32.f32 %v1704
        %v1721 = vcvt.s32.f32 %v1705
        %v1722 = vcvt.s32.f32 %v1706
        %v1723 = vcvt.s32.f32 %v1707
        %v1724 = vcvt.s32.f32 %v1708
        %v1725 = vadd.f32 %v1613, %v1709
        %v1726 = vadd.f32 %v1614, %v1710
        %v1727 = vadd.f32 %v1615, %v1711
        %v1728 = vadd.f32 %v1616, %v1712
        %v1729 = vadd.f32 %v1617, %v1713
        %v1730 = vadd.f32 %v1618, %v1714
        %v1731 = vadd.f32 %v1619, %v1715
        %v1732 = vadd.f32 %v1620, %v1716
        %v1733 = vadd.f32 %v1621, %v1717
        %v1734 = vadd.f32 %v1622, %v1718
        %v1735 = vadd.f32 %v1623, %v1719
        %v1736 = vadd.f32 %v1624, %v1720
        %v1737 = vadd.f32 %v1625, %v1721
        %v1738 = vadd.f32 %v1626, %v1722
        %v1739 = vadd.f32 %v1627, %v1723
        %v1740 = vadd.f32 %v1628, %v1724
        %1741 = vset.pattern.permute.xlu0 13
        %1742 = vperm.xlu0 %1741, %v233
        %v1743 = vpop.permute.xlu0 %1742
        %1744 = vset.pattern.permute.xlu0 13
        %1745 = vperm.xlu0 %1744, %v234
        %v1746 = vpop.permute.xlu0 %1745
        %1747 = vset.pattern.permute.xlu0 13
        %1748 = vperm.xlu0 %1747, %v235
        %v1749 = vpop.permute.xlu0 %1748
        %1750 = vset.pattern.permute.xlu0 13
        %1751 = vperm.xlu0 %1750, %v236
        %v1752 = vpop.permute.xlu0 %1751
        %1753 = vset.pattern.permute.xlu0 13
        %1754 = vperm.xlu0 %1753, %v237
        %v1755 = vpop.permute.xlu0 %1754
        %1756 = vset.pattern.permute.xlu0 13
        %1757 = vperm.xlu0 %1756, %v238
        %v1758 = vpop.permute.xlu0 %1757
        %1759 = vset.pattern.permute.xlu0 13
        %1760 = vperm.xlu0 %1759, %v239
        %v1761 = vpop.permute.xlu0 %1760
        %1762 = vset.pattern.permute.xlu0 13
        %1763 = vperm.xlu0 %1762, %v240
        %v1764 = vpop.permute.xlu0 %1763
        %1765 = vset.pattern.permute.xlu0 13
        %1766 = vperm.xlu0 %1765, %v241
        %v1767 = vpop.permute.xlu0 %1766
        %1768 = vset.pattern.permute.xlu0 13
        %1769 = vperm.xlu0 %1768, %v242
        %v1770 = vpop.permute.xlu0 %1769
        %1771 = vset.pattern.permute.xlu0 13
        %1772 = vperm.xlu0 %1771, %v243
        %v1773 = vpop.permute.xlu0 %1772
        %1774 = vset.pattern.permute.xlu0 13
        %1775 = vperm.xlu0 %1774, %v244
        %v1776 = vpop.permute.xlu0 %1775
        %1777 = vset.pattern.permute.xlu0 13
        %1778 = vperm.xlu0 %1777, %v245
        %v1779 = vpop.permute.xlu0 %1778
        %1780 = vset.pattern.permute.xlu0 13
        %1781 = vperm.xlu0 %1780, %v246
        %v1782 = vpop.permute.xlu0 %1781
        %1783 = vset.pattern.permute.xlu0 13
        %1784 = vperm.xlu0 %1783, %v247
        %v1785 = vpop.permute.xlu0 %1784
        %1786 = vset.pattern.permute.xlu0 13
        %1787 = vperm.xlu0 %1786, %v248
        %v1788 = vpop.permute.xlu0 %1787
        %vm1789 = vcmp.eq.s32.totalorder %v1743, %v227
        %vm1790 = vcmp.eq.s32.totalorder %v1746, %v227
        %vm1791 = vcmp.eq.s32.totalorder %v1749, %v227
        %vm1792 = vcmp.eq.s32.totalorder %v1752, %v227
        %vm1793 = vcmp.eq.s32.totalorder %v1755, %v227
        %vm1794 = vcmp.eq.s32.totalorder %v1758, %v227
        %vm1795 = vcmp.eq.s32.totalorder %v1761, %v227
        %vm1796 = vcmp.eq.s32.totalorder %v1764, %v227
        %vm1797 = vcmp.eq.s32.totalorder %v1767, %v227
        %vm1798 = vcmp.eq.s32.totalorder %v1770, %v227
        %vm1799 = vcmp.eq.s32.totalorder %v1773, %v227
        %vm1800 = vcmp.eq.s32.totalorder %v1776, %v227
        %vm1801 = vcmp.eq.s32.totalorder %v1779, %v227
        %vm1802 = vcmp.eq.s32.totalorder %v1782, %v227
        %vm1803 = vcmp.eq.s32.totalorder %v1785, %v227
        %vm1804 = vcmp.eq.s32.totalorder %v1788, %v227
        %v1805 = vsel %vm1789, 1, 0
        %v1806 = vsel %vm1790, 1, 0
        %v1807 = vsel %vm1791, 1, 0
        %v1808 = vsel %vm1792, 1, 0
        %v1809 = vsel %vm1793, 1, 0
        %v1810 = vsel %vm1794, 1, 0
        %v1811 = vsel %vm1795, 1, 0
        %v1812 = vsel %vm1796, 1, 0
        %v1813 = vsel %vm1797, 1, 0
        %v1814 = vsel %vm1798, 1, 0
        %v1815 = vsel %vm1799, 1, 0
        %v1816 = vsel %vm1800, 1, 0
        %v1817 = vsel %vm1801, 1, 0
        %v1818 = vsel %vm1802, 1, 0
        %v1819 = vsel %vm1803, 1, 0
        %v1820 = vsel %vm1804, 1, 0
        %v1821 = vcvt.s32.f32 %v1805
        %v1822 = vcvt.s32.f32 %v1806
        %v1823 = vcvt.s32.f32 %v1807
        %v1824 = vcvt.s32.f32 %v1808
        %v1825 = vcvt.s32.f32 %v1809
        %v1826 = vcvt.s32.f32 %v1810
        %v1827 = vcvt.s32.f32 %v1811
        %v1828 = vcvt.s32.f32 %v1812
        %v1829 = vcvt.s32.f32 %v1813
        %v1830 = vcvt.s32.f32 %v1814
        %v1831 = vcvt.s32.f32 %v1815
        %v1832 = vcvt.s32.f32 %v1816
        %v1833 = vcvt.s32.f32 %v1817
        %v1834 = vcvt.s32.f32 %v1818
        %v1835 = vcvt.s32.f32 %v1819
        %v1836 = vcvt.s32.f32 %v1820
        %v1837 = vadd.f32 %v1725, %v1821
        %v1838 = vadd.f32 %v1726, %v1822
        %v1839 = vadd.f32 %v1727, %v1823
        %v1840 = vadd.f32 %v1728, %v1824
        %v1841 = vadd.f32 %v1729, %v1825
        %v1842 = vadd.f32 %v1730, %v1826
        %v1843 = vadd.f32 %v1731, %v1827
        %v1844 = vadd.f32 %v1732, %v1828
        %v1845 = vadd.f32 %v1733, %v1829
        %v1846 = vadd.f32 %v1734, %v1830
        %v1847 = vadd.f32 %v1735, %v1831
        %v1848 = vadd.f32 %v1736, %v1832
        %v1849 = vadd.f32 %v1737, %v1833
        %v1850 = vadd.f32 %v1738, %v1834
        %v1851 = vadd.f32 %v1739, %v1835
        %v1852 = vadd.f32 %v1740, %v1836
        %1853 = vset.pattern.permute.xlu0 14
        %1854 = vperm.xlu0 %1853, %v233
        %v1855 = vpop.permute.xlu0 %1854
        %1856 = vset.pattern.permute.xlu0 14
        %1857 = vperm.xlu0 %1856, %v234
        %v1858 = vpop.permute.xlu0 %1857
        %1859 = vset.pattern.permute.xlu0 14
        %1860 = vperm.xlu0 %1859, %v235
        %v1861 = vpop.permute.xlu0 %1860
        %1862 = vset.pattern.permute.xlu0 14
        %1863 = vperm.xlu0 %1862, %v236
        %v1864 = vpop.permute.xlu0 %1863
        %1865 = vset.pattern.permute.xlu0 14
        %1866 = vperm.xlu0 %1865, %v237
        %v1867 = vpop.permute.xlu0 %1866
        %1868 = vset.pattern.permute.xlu0 14
        %1869 = vperm.xlu0 %1868, %v238
        %v1870 = vpop.permute.xlu0 %1869
        %1871 = vset.pattern.permute.xlu0 14
        %1872 = vperm.xlu0 %1871, %v239
        %v1873 = vpop.permute.xlu0 %1872
        %1874 = vset.pattern.permute.xlu0 14
        %1875 = vperm.xlu0 %1874, %v240
        %v1876 = vpop.permute.xlu0 %1875
        %1877 = vset.pattern.permute.xlu0 14
        %1878 = vperm.xlu0 %1877, %v241
        %v1879 = vpop.permute.xlu0 %1878
        %1880 = vset.pattern.permute.xlu0 14
        %1881 = vperm.xlu0 %1880, %v242
        %v1882 = vpop.permute.xlu0 %1881
        %1883 = vset.pattern.permute.xlu0 14
        %1884 = vperm.xlu0 %1883, %v243
        %v1885 = vpop.permute.xlu0 %1884
        %1886 = vset.pattern.permute.xlu0 14
        %1887 = vperm.xlu0 %1886, %v244
        %v1888 = vpop.permute.xlu0 %1887
        %1889 = vset.pattern.permute.xlu0 14
        %1890 = vperm.xlu0 %1889, %v245
        %v1891 = vpop.permute.xlu0 %1890
        %1892 = vset.pattern.permute.xlu0 14
        %1893 = vperm.xlu0 %1892, %v246
        %v1894 = vpop.permute.xlu0 %1893
        %1895 = vset.pattern.permute.xlu0 14
        %1896 = vperm.xlu0 %1895, %v247
        %v1897 = vpop.permute.xlu0 %1896
        %1898 = vset.pattern.permute.xlu0 14
        %1899 = vperm.xlu0 %1898, %v248
        %v1900 = vpop.permute.xlu0 %1899
        %vm1901 = vcmp.eq.s32.totalorder %v1855, %v227
        %vm1902 = vcmp.eq.s32.totalorder %v1858, %v227
        %vm1903 = vcmp.eq.s32.totalorder %v1861, %v227
        %vm1904 = vcmp.eq.s32.totalorder %v1864, %v227
        %vm1905 = vcmp.eq.s32.totalorder %v1867, %v227
        %vm1906 = vcmp.eq.s32.totalorder %v1870, %v227
        %vm1907 = vcmp.eq.s32.totalorder %v1873, %v227
        %vm1908 = vcmp.eq.s32.totalorder %v1876, %v227
        %vm1909 = vcmp.eq.s32.totalorder %v1879, %v227
        %vm1910 = vcmp.eq.s32.totalorder %v1882, %v227
        %vm1911 = vcmp.eq.s32.totalorder %v1885, %v227
        %vm1912 = vcmp.eq.s32.totalorder %v1888, %v227
        %vm1913 = vcmp.eq.s32.totalorder %v1891, %v227
        %vm1914 = vcmp.eq.s32.totalorder %v1894, %v227
        %vm1915 = vcmp.eq.s32.totalorder %v1897, %v227
        %vm1916 = vcmp.eq.s32.totalorder %v1900, %v227
        %v1917 = vsel %vm1901, 1, 0
        %v1918 = vsel %vm1902, 1, 0
        %v1919 = vsel %vm1903, 1, 0
        %v1920 = vsel %vm1904, 1, 0
        %v1921 = vsel %vm1905, 1, 0
        %v1922 = vsel %vm1906, 1, 0
        %v1923 = vsel %vm1907, 1, 0
        %v1924 = vsel %vm1908, 1, 0
        %v1925 = vsel %vm1909, 1, 0
        %v1926 = vsel %vm1910, 1, 0
        %v1927 = vsel %vm1911, 1, 0
        %v1928 = vsel %vm1912, 1, 0
        %v1929 = vsel %vm1913, 1, 0
        %v1930 = vsel %vm1914, 1, 0
        %v1931 = vsel %vm1915, 1, 0
        %v1932 = vsel %vm1916, 1, 0
        %v1933 = vcvt.s32.f32 %v1917
        %v1934 = vcvt.s32.f32 %v1918
        %v1935 = vcvt.s32.f32 %v1919
        %v1936 = vcvt.s32.f32 %v1920
        %v1937 = vcvt.s32.f32 %v1921
        %v1938 = vcvt.s32.f32 %v1922
        %v1939 = vcvt.s32.f32 %v1923
        %v1940 = vcvt.s32.f32 %v1924
        %v1941 = vcvt.s32.f32 %v1925
        %v1942 = vcvt.s32.f32 %v1926
        %v1943 = vcvt.s32.f32 %v1927
        %v1944 = vcvt.s32.f32 %v1928
        %v1945 = vcvt.s32.f32 %v1929
        %v1946 = vcvt.s32.f32 %v1930
        %v1947 = vcvt.s32.f32 %v1931
        %v1948 = vcvt.s32.f32 %v1932
        %v1949 = vadd.f32 %v1837, %v1933
        %v1950 = vadd.f32 %v1838, %v1934
        %v1951 = vadd.f32 %v1839, %v1935
        %v1952 = vadd.f32 %v1840, %v1936
        %v1953 = vadd.f32 %v1841, %v1937
        %v1954 = vadd.f32 %v1842, %v1938
        %v1955 = vadd.f32 %v1843, %v1939
        %v1956 = vadd.f32 %v1844, %v1940
        %v1957 = vadd.f32 %v1845, %v1941
        %v1958 = vadd.f32 %v1846, %v1942
        %v1959 = vadd.f32 %v1847, %v1943
        %v1960 = vadd.f32 %v1848, %v1944
        %v1961 = vadd.f32 %v1849, %v1945
        %v1962 = vadd.f32 %v1850, %v1946
        %v1963 = vadd.f32 %v1851, %v1947
        %v1964 = vadd.f32 %v1852, %v1948
        %1965 = vset.pattern.permute.xlu0 15
        %1966 = vperm.xlu0 %1965, %v233
        %v1967 = vpop.permute.xlu0 %1966
        %1968 = vset.pattern.permute.xlu0 15
        %1969 = vperm.xlu0 %1968, %v234
        %v1970 = vpop.permute.xlu0 %1969
        %1971 = vset.pattern.permute.xlu0 15
        %1972 = vperm.xlu0 %1971, %v235
        %v1973 = vpop.permute.xlu0 %1972
        %1974 = vset.pattern.permute.xlu0 15
        %1975 = vperm.xlu0 %1974, %v236
        %v1976 = vpop.permute.xlu0 %1975
        %1977 = vset.pattern.permute.xlu0 15
        %1978 = vperm.xlu0 %1977, %v237
        %v1979 = vpop.permute.xlu0 %1978
        %1980 = vset.pattern.permute.xlu0 15
        %1981 = vperm.xlu0 %1980, %v238
        %v1982 = vpop.permute.xlu0 %1981
        %1983 = vset.pattern.permute.xlu0 15
        %1984 = vperm.xlu0 %1983, %v239
        %v1985 = vpop.permute.xlu0 %1984
        %1986 = vset.pattern.permute.xlu0 15
        %1987 = vperm.xlu0 %1986, %v240
        %v1988 = vpop.permute.xlu0 %1987
        %1989 = vset.pattern.permute.xlu0 15
        %1990 = vperm.xlu0 %1989, %v241
        %v1991 = vpop.permute.xlu0 %1990
        %1992 = vset.pattern.permute.xlu0 15
        %1993 = vperm.xlu0 %1992, %v242
        %v1994 = vpop.permute.xlu0 %1993
        %1995 = vset.pattern.permute.xlu0 15
        %1996 = vperm.xlu0 %1995, %v243
        %v1997 = vpop.permute.xlu0 %1996
        %1998 = vset.pattern.permute.xlu0 15
        %1999 = vperm.xlu0 %1998, %v244
        %v2000 = vpop.permute.xlu0 %1999
        %2001 = vset.pattern.permute.xlu0 15
        %2002 = vperm.xlu0 %2001, %v245
        %v2003 = vpop.permute.xlu0 %2002
        %2004 = vset.pattern.permute.xlu0 15
        %2005 = vperm.xlu0 %2004, %v246
        %v2006 = vpop.permute.xlu0 %2005
        %2007 = vset.pattern.permute.xlu0 15
        %2008 = vperm.xlu0 %2007, %v247
        %v2009 = vpop.permute.xlu0 %2008
        %2010 = vset.pattern.permute.xlu0 15
        %2011 = vperm.xlu0 %2010, %v248
        %v2012 = vpop.permute.xlu0 %2011
        %vm2013 = vcmp.eq.s32.totalorder %v1967, %v227
        %vm2014 = vcmp.eq.s32.totalorder %v1970, %v227
        %vm2015 = vcmp.eq.s32.totalorder %v1973, %v227
        %vm2016 = vcmp.eq.s32.totalorder %v1976, %v227
        %vm2017 = vcmp.eq.s32.totalorder %v1979, %v227
        %vm2018 = vcmp.eq.s32.totalorder %v1982, %v227
        %vm2019 = vcmp.eq.s32.totalorder %v1985, %v227
        %vm2020 = vcmp.eq.s32.totalorder %v1988, %v227
        %vm2021 = vcmp.eq.s32.totalorder %v1991, %v227
        %vm2022 = vcmp.eq.s32.totalorder %v1994, %v227
        %vm2023 = vcmp.eq.s32.totalorder %v1997, %v227
        %vm2024 = vcmp.eq.s32.totalorder %v2000, %v227
        %vm2025 = vcmp.eq.s32.totalorder %v2003, %v227
        %vm2026 = vcmp.eq.s32.totalorder %v2006, %v227
        %vm2027 = vcmp.eq.s32.totalorder %v2009, %v227
        %vm2028 = vcmp.eq.s32.totalorder %v2012, %v227
        %v2029 = vsel %vm2013, 1, 0
        %v2030 = vsel %vm2014, 1, 0
        %v2031 = vsel %vm2015, 1, 0
        %v2032 = vsel %vm2016, 1, 0
        %v2033 = vsel %vm2017, 1, 0
        %v2034 = vsel %vm2018, 1, 0
        %v2035 = vsel %vm2019, 1, 0
        %v2036 = vsel %vm2020, 1, 0
        %v2037 = vsel %vm2021, 1, 0
        %v2038 = vsel %vm2022, 1, 0
        %v2039 = vsel %vm2023, 1, 0
        %v2040 = vsel %vm2024, 1, 0
        %v2041 = vsel %vm2025, 1, 0
        %v2042 = vsel %vm2026, 1, 0
        %v2043 = vsel %vm2027, 1, 0
        %v2044 = vsel %vm2028, 1, 0
        %v2045 = vcvt.s32.f32 %v2029
        %v2046 = vcvt.s32.f32 %v2030
        %v2047 = vcvt.s32.f32 %v2031
        %v2048 = vcvt.s32.f32 %v2032
        %v2049 = vcvt.s32.f32 %v2033
        %v2050 = vcvt.s32.f32 %v2034
        %v2051 = vcvt.s32.f32 %v2035
        %v2052 = vcvt.s32.f32 %v2036
        %v2053 = vcvt.s32.f32 %v2037
        %v2054 = vcvt.s32.f32 %v2038
        %v2055 = vcvt.s32.f32 %v2039
        %v2056 = vcvt.s32.f32 %v2040
        %v2057 = vcvt.s32.f32 %v2041
        %v2058 = vcvt.s32.f32 %v2042
        %v2059 = vcvt.s32.f32 %v2043
        %v2060 = vcvt.s32.f32 %v2044
        %v2061 = vadd.f32 %v1949, %v2045
        %v2062 = vadd.f32 %v1950, %v2046
        %v2063 = vadd.f32 %v1951, %v2047
        %v2064 = vadd.f32 %v1952, %v2048
        %v2065 = vadd.f32 %v1953, %v2049
        %v2066 = vadd.f32 %v1954, %v2050
        %v2067 = vadd.f32 %v1955, %v2051
        %v2068 = vadd.f32 %v1956, %v2052
        %v2069 = vadd.f32 %v1957, %v2053
        %v2070 = vadd.f32 %v1958, %v2054
        %v2071 = vadd.f32 %v1959, %v2055
        %v2072 = vadd.f32 %v1960, %v2056
        %v2073 = vadd.f32 %v1961, %v2057
        %v2074 = vadd.f32 %v1962, %v2058
        %v2075 = vadd.f32 %v1963, %v2059
        %v2076 = vadd.f32 %v1964, %v2060
        %2077 = vset.pattern.permute.xlu0 16
        %2078 = vperm.xlu0 %2077, %v233
        %v2079 = vpop.permute.xlu0 %2078
        %2080 = vset.pattern.permute.xlu0 16
        %2081 = vperm.xlu0 %2080, %v234
        %v2082 = vpop.permute.xlu0 %2081
        %2083 = vset.pattern.permute.xlu0 16
        %2084 = vperm.xlu0 %2083, %v235
        %v2085 = vpop.permute.xlu0 %2084
        %2086 = vset.pattern.permute.xlu0 16
        %2087 = vperm.xlu0 %2086, %v236
        %v2088 = vpop.permute.xlu0 %2087
        %2089 = vset.pattern.permute.xlu0 16
        %2090 = vperm.xlu0 %2089, %v237
        %v2091 = vpop.permute.xlu0 %2090
        %2092 = vset.pattern.permute.xlu0 16
        %2093 = vperm.xlu0 %2092, %v238
        %v2094 = vpop.permute.xlu0 %2093
        %2095 = vset.pattern.permute.xlu0 16
        %2096 = vperm.xlu0 %2095, %v239
        %v2097 = vpop.permute.xlu0 %2096
        %2098 = vset.pattern.permute.xlu0 16
        %2099 = vperm.xlu0 %2098, %v240
        %v2100 = vpop.permute.xlu0 %2099
        %2101 = vset.pattern.permute.xlu0 16
        %2102 = vperm.xlu0 %2101, %v241
        %v2103 = vpop.permute.xlu0 %2102
        %2104 = vset.pattern.permute.xlu0 16
        %2105 = vperm.xlu0 %2104, %v242
        %v2106 = vpop.permute.xlu0 %2105
        %2107 = vset.pattern.permute.xlu0 16
        %2108 = vperm.xlu0 %2107, %v243
        %v2109 = vpop.permute.xlu0 %2108
        %2110 = vset.pattern.permute.xlu0 16
        %2111 = vperm.xlu0 %2110, %v244
        %v2112 = vpop.permute.xlu0 %2111
        %2113 = vset.pattern.permute.xlu0 16
        %2114 = vperm.xlu0 %2113, %v245
        %v2115 = vpop.permute.xlu0 %2114
        %2116 = vset.pattern.permute.xlu0 16
        %2117 = vperm.xlu0 %2116, %v246
        %v2118 = vpop.permute.xlu0 %2117
        %2119 = vset.pattern.permute.xlu0 16
        %2120 = vperm.xlu0 %2119, %v247
        %v2121 = vpop.permute.xlu0 %2120
        %2122 = vset.pattern.permute.xlu0 16
        %2123 = vperm.xlu0 %2122, %v248
        %v2124 = vpop.permute.xlu0 %2123
        %vm2125 = vcmp.eq.s32.totalorder %v2079, %v227
        %vm2126 = vcmp.eq.s32.totalorder %v2082, %v227
        %vm2127 = vcmp.eq.s32.totalorder %v2085, %v227
        %vm2128 = vcmp.eq.s32.totalorder %v2088, %v227
        %vm2129 = vcmp.eq.s32.totalorder %v2091, %v227
        %vm2130 = vcmp.eq.s32.totalorder %v2094, %v227
        %vm2131 = vcmp.eq.s32.totalorder %v2097, %v227
        %vm2132 = vcmp.eq.s32.totalorder %v2100, %v227
        %vm2133 = vcmp.eq.s32.totalorder %v2103, %v227
        %vm2134 = vcmp.eq.s32.totalorder %v2106, %v227
        %vm2135 = vcmp.eq.s32.totalorder %v2109, %v227
        %vm2136 = vcmp.eq.s32.totalorder %v2112, %v227
        %vm2137 = vcmp.eq.s32.totalorder %v2115, %v227
        %vm2138 = vcmp.eq.s32.totalorder %v2118, %v227
        %vm2139 = vcmp.eq.s32.totalorder %v2121, %v227
        %vm2140 = vcmp.eq.s32.totalorder %v2124, %v227
        %v2141 = vsel %vm2125, 1, 0
        %v2142 = vsel %vm2126, 1, 0
        %v2143 = vsel %vm2127, 1, 0
        %v2144 = vsel %vm2128, 1, 0
        %v2145 = vsel %vm2129, 1, 0
        %v2146 = vsel %vm2130, 1, 0
        %v2147 = vsel %vm2131, 1, 0
        %v2148 = vsel %vm2132, 1, 0
        %v2149 = vsel %vm2133, 1, 0
        %v2150 = vsel %vm2134, 1, 0
        %v2151 = vsel %vm2135, 1, 0
        %v2152 = vsel %vm2136, 1, 0
        %v2153 = vsel %vm2137, 1, 0
        %v2154 = vsel %vm2138, 1, 0
        %v2155 = vsel %vm2139, 1, 0
        %v2156 = vsel %vm2140, 1, 0
        %v2157 = vcvt.s32.f32 %v2141
        %v2158 = vcvt.s32.f32 %v2142
        %v2159 = vcvt.s32.f32 %v2143
        %v2160 = vcvt.s32.f32 %v2144
        %v2161 = vcvt.s32.f32 %v2145
        %v2162 = vcvt.s32.f32 %v2146
        %v2163 = vcvt.s32.f32 %v2147
        %v2164 = vcvt.s32.f32 %v2148
        %v2165 = vcvt.s32.f32 %v2149
        %v2166 = vcvt.s32.f32 %v2150
        %v2167 = vcvt.s32.f32 %v2151
        %v2168 = vcvt.s32.f32 %v2152
        %v2169 = vcvt.s32.f32 %v2153
        %v2170 = vcvt.s32.f32 %v2154
        %v2171 = vcvt.s32.f32 %v2155
        %v2172 = vcvt.s32.f32 %v2156
        %v2173 = vadd.f32 %v2061, %v2157
        %v2174 = vadd.f32 %v2062, %v2158
        %v2175 = vadd.f32 %v2063, %v2159
        %v2176 = vadd.f32 %v2064, %v2160
        %v2177 = vadd.f32 %v2065, %v2161
        %v2178 = vadd.f32 %v2066, %v2162
        %v2179 = vadd.f32 %v2067, %v2163
        %v2180 = vadd.f32 %v2068, %v2164
        %v2181 = vadd.f32 %v2069, %v2165
        %v2182 = vadd.f32 %v2070, %v2166
        %v2183 = vadd.f32 %v2071, %v2167
        %v2184 = vadd.f32 %v2072, %v2168
        %v2185 = vadd.f32 %v2073, %v2169
        %v2186 = vadd.f32 %v2074, %v2170
        %v2187 = vadd.f32 %v2075, %v2171
        %v2188 = vadd.f32 %v2076, %v2172
        %2189 = vset.pattern.permute.xlu0 17
        %2190 = vperm.xlu0 %2189, %v233
        %v2191 = vpop.permute.xlu0 %2190
        %2192 = vset.pattern.permute.xlu0 17
        %2193 = vperm.xlu0 %2192, %v234
        %v2194 = vpop.permute.xlu0 %2193
        %2195 = vset.pattern.permute.xlu0 17
        %2196 = vperm.xlu0 %2195, %v235
        %v2197 = vpop.permute.xlu0 %2196
        %2198 = vset.pattern.permute.xlu0 17
        %2199 = vperm.xlu0 %2198, %v236
        %v2200 = vpop.permute.xlu0 %2199
        %2201 = vset.pattern.permute.xlu0 17
        %2202 = vperm.xlu0 %2201, %v237
        %v2203 = vpop.permute.xlu0 %2202
        %2204 = vset.pattern.permute.xlu0 17
        %2205 = vperm.xlu0 %2204, %v238
        %v2206 = vpop.permute.xlu0 %2205
        %2207 = vset.pattern.permute.xlu0 17
        %2208 = vperm.xlu0 %2207, %v239
        %v2209 = vpop.permute.xlu0 %2208
        %2210 = vset.pattern.permute.xlu0 17
        %2211 = vperm.xlu0 %2210, %v240
        %v2212 = vpop.permute.xlu0 %2211
        %2213 = vset.pattern.permute.xlu0 17
        %2214 = vperm.xlu0 %2213, %v241
        %v2215 = vpop.permute.xlu0 %2214
        %2216 = vset.pattern.permute.xlu0 17
        %2217 = vperm.xlu0 %2216, %v242
        %v2218 = vpop.permute.xlu0 %2217
        %2219 = vset.pattern.permute.xlu0 17
        %2220 = vperm.xlu0 %2219, %v243
        %v2221 = vpop.permute.xlu0 %2220
        %2222 = vset.pattern.permute.xlu0 17
        %2223 = vperm.xlu0 %2222, %v244
        %v2224 = vpop.permute.xlu0 %2223
        %2225 = vset.pattern.permute.xlu0 17
        %2226 = vperm.xlu0 %2225, %v245
        %v2227 = vpop.permute.xlu0 %2226
        %2228 = vset.pattern.permute.xlu0 17
        %2229 = vperm.xlu0 %2228, %v246
        %v2230 = vpop.permute.xlu0 %2229
        %2231 = vset.pattern.permute.xlu0 17
        %2232 = vperm.xlu0 %2231, %v247
        %v2233 = vpop.permute.xlu0 %2232
        %2234 = vset.pattern.permute.xlu0 17
        %2235 = vperm.xlu0 %2234, %v248
        %v2236 = vpop.permute.xlu0 %2235
        %vm2237 = vcmp.eq.s32.totalorder %v2191, %v227
        %vm2238 = vcmp.eq.s32.totalorder %v2194, %v227
        %vm2239 = vcmp.eq.s32.totalorder %v2197, %v227
        %vm2240 = vcmp.eq.s32.totalorder %v2200, %v227
        %vm2241 = vcmp.eq.s32.totalorder %v2203, %v227
        %vm2242 = vcmp.eq.s32.totalorder %v2206, %v227
        %vm2243 = vcmp.eq.s32.totalorder %v2209, %v227
        %vm2244 = vcmp.eq.s32.totalorder %v2212, %v227
        %vm2245 = vcmp.eq.s32.totalorder %v2215, %v227
        %vm2246 = vcmp.eq.s32.totalorder %v2218, %v227
        %vm2247 = vcmp.eq.s32.totalorder %v2221, %v227
        %vm2248 = vcmp.eq.s32.totalorder %v2224, %v227
        %vm2249 = vcmp.eq.s32.totalorder %v2227, %v227
        %vm2250 = vcmp.eq.s32.totalorder %v2230, %v227
        %vm2251 = vcmp.eq.s32.totalorder %v2233, %v227
        %vm2252 = vcmp.eq.s32.totalorder %v2236, %v227
        %v2253 = vsel %vm2237, 1, 0
        %v2254 = vsel %vm2238, 1, 0
        %v2255 = vsel %vm2239, 1, 0
        %v2256 = vsel %vm2240, 1, 0
        %v2257 = vsel %vm2241, 1, 0
        %v2258 = vsel %vm2242, 1, 0
        %v2259 = vsel %vm2243, 1, 0
        %v2260 = vsel %vm2244, 1, 0
        %v2261 = vsel %vm2245, 1, 0
        %v2262 = vsel %vm2246, 1, 0
        %v2263 = vsel %vm2247, 1, 0
        %v2264 = vsel %vm2248, 1, 0
        %v2265 = vsel %vm2249, 1, 0
        %v2266 = vsel %vm2250, 1, 0
        %v2267 = vsel %vm2251, 1, 0
        %v2268 = vsel %vm2252, 1, 0
        %v2269 = vcvt.s32.f32 %v2253
        %v2270 = vcvt.s32.f32 %v2254
        %v2271 = vcvt.s32.f32 %v2255
        %v2272 = vcvt.s32.f32 %v2256
        %v2273 = vcvt.s32.f32 %v2257
        %v2274 = vcvt.s32.f32 %v2258
        %v2275 = vcvt.s32.f32 %v2259
        %v2276 = vcvt.s32.f32 %v2260
        %v2277 = vcvt.s32.f32 %v2261
        %v2278 = vcvt.s32.f32 %v2262
        %v2279 = vcvt.s32.f32 %v2263
        %v2280 = vcvt.s32.f32 %v2264
        %v2281 = vcvt.s32.f32 %v2265
        %v2282 = vcvt.s32.f32 %v2266
        %v2283 = vcvt.s32.f32 %v2267
        %v2284 = vcvt.s32.f32 %v2268
        %v2285 = vadd.f32 %v2173, %v2269
        %v2286 = vadd.f32 %v2174, %v2270
        %v2287 = vadd.f32 %v2175, %v2271
        %v2288 = vadd.f32 %v2176, %v2272
        %v2289 = vadd.f32 %v2177, %v2273
        %v2290 = vadd.f32 %v2178, %v2274
        %v2291 = vadd.f32 %v2179, %v2275
        %v2292 = vadd.f32 %v2180, %v2276
        %v2293 = vadd.f32 %v2181, %v2277
        %v2294 = vadd.f32 %v2182, %v2278
        %v2295 = vadd.f32 %v2183, %v2279
        %v2296 = vadd.f32 %v2184, %v2280
        %v2297 = vadd.f32 %v2185, %v2281
        %v2298 = vadd.f32 %v2186, %v2282
        %v2299 = vadd.f32 %v2187, %v2283
        %v2300 = vadd.f32 %v2188, %v2284
        %2301 = vset.pattern.permute.xlu0 18
        %2302 = vperm.xlu0 %2301, %v233
        %v2303 = vpop.permute.xlu0 %2302
        %2304 = vset.pattern.permute.xlu0 18
        %2305 = vperm.xlu0 %2304, %v234
        %v2306 = vpop.permute.xlu0 %2305
        %2307 = vset.pattern.permute.xlu0 18
        %2308 = vperm.xlu0 %2307, %v235
        %v2309 = vpop.permute.xlu0 %2308
        %2310 = vset.pattern.permute.xlu0 18
        %2311 = vperm.xlu0 %2310, %v236
        %v2312 = vpop.permute.xlu0 %2311
        %2313 = vset.pattern.permute.xlu0 18
        %2314 = vperm.xlu0 %2313, %v237
        %v2315 = vpop.permute.xlu0 %2314
        %2316 = vset.pattern.permute.xlu0 18
        %2317 = vperm.xlu0 %2316, %v238
        %v2318 = vpop.permute.xlu0 %2317
        %2319 = vset.pattern.permute.xlu0 18
        %2320 = vperm.xlu0 %2319, %v239
        %v2321 = vpop.permute.xlu0 %2320
        %2322 = vset.pattern.permute.xlu0 18
        %2323 = vperm.xlu0 %2322, %v240
        %v2324 = vpop.permute.xlu0 %2323
        %2325 = vset.pattern.permute.xlu0 18
        %2326 = vperm.xlu0 %2325, %v241
        %v2327 = vpop.permute.xlu0 %2326
        %2328 = vset.pattern.permute.xlu0 18
        %2329 = vperm.xlu0 %2328, %v242
        %v2330 = vpop.permute.xlu0 %2329
        %2331 = vset.pattern.permute.xlu0 18
        %2332 = vperm.xlu0 %2331, %v243
        %v2333 = vpop.permute.xlu0 %2332
        %2334 = vset.pattern.permute.xlu0 18
        %2335 = vperm.xlu0 %2334, %v244
        %v2336 = vpop.permute.xlu0 %2335
        %2337 = vset.pattern.permute.xlu0 18
        %2338 = vperm.xlu0 %2337, %v245
        %v2339 = vpop.permute.xlu0 %2338
        %2340 = vset.pattern.permute.xlu0 18
        %2341 = vperm.xlu0 %2340, %v246
        %v2342 = vpop.permute.xlu0 %2341
        %2343 = vset.pattern.permute.xlu0 18
        %2344 = vperm.xlu0 %2343, %v247
        %v2345 = vpop.permute.xlu0 %2344
        %2346 = vset.pattern.permute.xlu0 18
        %2347 = vperm.xlu0 %2346, %v248
        %v2348 = vpop.permute.xlu0 %2347
        %vm2349 = vcmp.eq.s32.totalorder %v2303, %v227
        %vm2350 = vcmp.eq.s32.totalorder %v2306, %v227
        %vm2351 = vcmp.eq.s32.totalorder %v2309, %v227
        %vm2352 = vcmp.eq.s32.totalorder %v2312, %v227
        %vm2353 = vcmp.eq.s32.totalorder %v2315, %v227
        %vm2354 = vcmp.eq.s32.totalorder %v2318, %v227
        %vm2355 = vcmp.eq.s32.totalorder %v2321, %v227
        %vm2356 = vcmp.eq.s32.totalorder %v2324, %v227
        %vm2357 = vcmp.eq.s32.totalorder %v2327, %v227
        %vm2358 = vcmp.eq.s32.totalorder %v2330, %v227
        %vm2359 = vcmp.eq.s32.totalorder %v2333, %v227
        %vm2360 = vcmp.eq.s32.totalorder %v2336, %v227
        %vm2361 = vcmp.eq.s32.totalorder %v2339, %v227
        %vm2362 = vcmp.eq.s32.totalorder %v2342, %v227
        %vm2363 = vcmp.eq.s32.totalorder %v2345, %v227
        %vm2364 = vcmp.eq.s32.totalorder %v2348, %v227
        %v2365 = vsel %vm2349, 1, 0
        %v2366 = vsel %vm2350, 1, 0
        %v2367 = vsel %vm2351, 1, 0
        %v2368 = vsel %vm2352, 1, 0
        %v2369 = vsel %vm2353, 1, 0
        %v2370 = vsel %vm2354, 1, 0
        %v2371 = vsel %vm2355, 1, 0
        %v2372 = vsel %vm2356, 1, 0
        %v2373 = vsel %vm2357, 1, 0
        %v2374 = vsel %vm2358, 1, 0
        %v2375 = vsel %vm2359, 1, 0
        %v2376 = vsel %vm2360, 1, 0
        %v2377 = vsel %vm2361, 1, 0
        %v2378 = vsel %vm2362, 1, 0
        %v2379 = vsel %vm2363, 1, 0
        %v2380 = vsel %vm2364, 1, 0
        %v2381 = vcvt.s32.f32 %v2365
        %v2382 = vcvt.s32.f32 %v2366
        %v2383 = vcvt.s32.f32 %v2367
        %v2384 = vcvt.s32.f32 %v2368
        %v2385 = vcvt.s32.f32 %v2369
        %v2386 = vcvt.s32.f32 %v2370
        %v2387 = vcvt.s32.f32 %v2371
        %v2388 = vcvt.s32.f32 %v2372
        %v2389 = vcvt.s32.f32 %v2373
        %v2390 = vcvt.s32.f32 %v2374
        %v2391 = vcvt.s32.f32 %v2375
        %v2392 = vcvt.s32.f32 %v2376
        %v2393 = vcvt.s32.f32 %v2377
        %v2394 = vcvt.s32.f32 %v2378
        %v2395 = vcvt.s32.f32 %v2379
        %v2396 = vcvt.s32.f32 %v2380
        %v2397 = vadd.f32 %v2285, %v2381
        %v2398 = vadd.f32 %v2286, %v2382
        %v2399 = vadd.f32 %v2287, %v2383
        %v2400 = vadd.f32 %v2288, %v2384
        %v2401 = vadd.f32 %v2289, %v2385
        %v2402 = vadd.f32 %v2290, %v2386
        %v2403 = vadd.f32 %v2291, %v2387
        %v2404 = vadd.f32 %v2292, %v2388
        %v2405 = vadd.f32 %v2293, %v2389
        %v2406 = vadd.f32 %v2294, %v2390
        %v2407 = vadd.f32 %v2295, %v2391
        %v2408 = vadd.f32 %v2296, %v2392
        %v2409 = vadd.f32 %v2297, %v2393
        %v2410 = vadd.f32 %v2298, %v2394
        %v2411 = vadd.f32 %v2299, %v2395
        %v2412 = vadd.f32 %v2300, %v2396
        %2413 = vset.pattern.permute.xlu0 19
        %2414 = vperm.xlu0 %2413, %v233
        %v2415 = vpop.permute.xlu0 %2414
        %2416 = vset.pattern.permute.xlu0 19
        %2417 = vperm.xlu0 %2416, %v234
        %v2418 = vpop.permute.xlu0 %2417
        %2419 = vset.pattern.permute.xlu0 19
        %2420 = vperm.xlu0 %2419, %v235
        %v2421 = vpop.permute.xlu0 %2420
        %2422 = vset.pattern.permute.xlu0 19
        %2423 = vperm.xlu0 %2422, %v236
        %v2424 = vpop.permute.xlu0 %2423
        %2425 = vset.pattern.permute.xlu0 19
        %2426 = vperm.xlu0 %2425, %v237
        %v2427 = vpop.permute.xlu0 %2426
        %2428 = vset.pattern.permute.xlu0 19
        %2429 = vperm.xlu0 %2428, %v238
        %v2430 = vpop.permute.xlu0 %2429
        %2431 = vset.pattern.permute.xlu0 19
        %2432 = vperm.xlu0 %2431, %v239
        %v2433 = vpop.permute.xlu0 %2432
        %2434 = vset.pattern.permute.xlu0 19
        %2435 = vperm.xlu0 %2434, %v240
        %v2436 = vpop.permute.xlu0 %2435
        %2437 = vset.pattern.permute.xlu0 19
        %2438 = vperm.xlu0 %2437, %v241
        %v2439 = vpop.permute.xlu0 %2438
        %2440 = vset.pattern.permute.xlu0 19
        %2441 = vperm.xlu0 %2440, %v242
        %v2442 = vpop.permute.xlu0 %2441
        %2443 = vset.pattern.permute.xlu0 19
        %2444 = vperm.xlu0 %2443, %v243
        %v2445 = vpop.permute.xlu0 %2444
        %2446 = vset.pattern.permute.xlu0 19
        %2447 = vperm.xlu0 %2446, %v244
        %v2448 = vpop.permute.xlu0 %2447
        %2449 = vset.pattern.permute.xlu0 19
        %2450 = vperm.xlu0 %2449, %v245
        %v2451 = vpop.permute.xlu0 %2450
        %2452 = vset.pattern.permute.xlu0 19
        %2453 = vperm.xlu0 %2452, %v246
        %v2454 = vpop.permute.xlu0 %2453
        %2455 = vset.pattern.permute.xlu0 19
        %2456 = vperm.xlu0 %2455, %v247
        %v2457 = vpop.permute.xlu0 %2456
        %2458 = vset.pattern.permute.xlu0 19
        %2459 = vperm.xlu0 %2458, %v248
        %v2460 = vpop.permute.xlu0 %2459
        %vm2461 = vcmp.eq.s32.totalorder %v2415, %v227
        %vm2462 = vcmp.eq.s32.totalorder %v2418, %v227
        %vm2463 = vcmp.eq.s32.totalorder %v2421, %v227
        %vm2464 = vcmp.eq.s32.totalorder %v2424, %v227
        %vm2465 = vcmp.eq.s32.totalorder %v2427, %v227
        %vm2466 = vcmp.eq.s32.totalorder %v2430, %v227
        %vm2467 = vcmp.eq.s32.totalorder %v2433, %v227
        %vm2468 = vcmp.eq.s32.totalorder %v2436, %v227
        %vm2469 = vcmp.eq.s32.totalorder %v2439, %v227
        %vm2470 = vcmp.eq.s32.totalorder %v2442, %v227
        %vm2471 = vcmp.eq.s32.totalorder %v2445, %v227
        %vm2472 = vcmp.eq.s32.totalorder %v2448, %v227
        %vm2473 = vcmp.eq.s32.totalorder %v2451, %v227
        %vm2474 = vcmp.eq.s32.totalorder %v2454, %v227
        %vm2475 = vcmp.eq.s32.totalorder %v2457, %v227
        %vm2476 = vcmp.eq.s32.totalorder %v2460, %v227
        %v2477 = vsel %vm2461, 1, 0
        %v2478 = vsel %vm2462, 1, 0
        %v2479 = vsel %vm2463, 1, 0
        %v2480 = vsel %vm2464, 1, 0
        %v2481 = vsel %vm2465, 1, 0
        %v2482 = vsel %vm2466, 1, 0
        %v2483 = vsel %vm2467, 1, 0
        %v2484 = vsel %vm2468, 1, 0
        %v2485 = vsel %vm2469, 1, 0
        %v2486 = vsel %vm2470, 1, 0
        %v2487 = vsel %vm2471, 1, 0
        %v2488 = vsel %vm2472, 1, 0
        %v2489 = vsel %vm2473, 1, 0
        %v2490 = vsel %vm2474, 1, 0
        %v2491 = vsel %vm2475, 1, 0
        %v2492 = vsel %vm2476, 1, 0
        %v2493 = vcvt.s32.f32 %v2477
        %v2494 = vcvt.s32.f32 %v2478
        %v2495 = vcvt.s32.f32 %v2479
        %v2496 = vcvt.s32.f32 %v2480
        %v2497 = vcvt.s32.f32 %v2481
        %v2498 = vcvt.s32.f32 %v2482
        %v2499 = vcvt.s32.f32 %v2483
        %v2500 = vcvt.s32.f32 %v2484
        %v2501 = vcvt.s32.f32 %v2485
        %v2502 = vcvt.s32.f32 %v2486
        %v2503 = vcvt.s32.f32 %v2487
        %v2504 = vcvt.s32.f32 %v2488
        %v2505 = vcvt.s32.f32 %v2489
        %v2506 = vcvt.s32.f32 %v2490
        %v2507 = vcvt.s32.f32 %v2491
        %v2508 = vcvt.s32.f32 %v2492
        %v2509 = vadd.f32 %v2397, %v2493
        %v2510 = vadd.f32 %v2398, %v2494
        %v2511 = vadd.f32 %v2399, %v2495
        %v2512 = vadd.f32 %v2400, %v2496
        %v2513 = vadd.f32 %v2401, %v2497
        %v2514 = vadd.f32 %v2402, %v2498
        %v2515 = vadd.f32 %v2403, %v2499
        %v2516 = vadd.f32 %v2404, %v2500
        %v2517 = vadd.f32 %v2405, %v2501
        %v2518 = vadd.f32 %v2406, %v2502
        %v2519 = vadd.f32 %v2407, %v2503
        %v2520 = vadd.f32 %v2408, %v2504
        %v2521 = vadd.f32 %v2409, %v2505
        %v2522 = vadd.f32 %v2410, %v2506
        %v2523 = vadd.f32 %v2411, %v2507
        %v2524 = vadd.f32 %v2412, %v2508
        %2525 = vset.pattern.permute.xlu0 20
        %2526 = vperm.xlu0 %2525, %v233
        %v2527 = vpop.permute.xlu0 %2526
        %2528 = vset.pattern.permute.xlu0 20
        %2529 = vperm.xlu0 %2528, %v234
        %v2530 = vpop.permute.xlu0 %2529
        %2531 = vset.pattern.permute.xlu0 20
        %2532 = vperm.xlu0 %2531, %v235
        %v2533 = vpop.permute.xlu0 %2532
        %2534 = vset.pattern.permute.xlu0 20
        %2535 = vperm.xlu0 %2534, %v236
        %v2536 = vpop.permute.xlu0 %2535
        %2537 = vset.pattern.permute.xlu0 20
        %2538 = vperm.xlu0 %2537, %v237
        %v2539 = vpop.permute.xlu0 %2538
        %2540 = vset.pattern.permute.xlu0 20
        %2541 = vperm.xlu0 %2540, %v238
        %v2542 = vpop.permute.xlu0 %2541
        %2543 = vset.pattern.permute.xlu0 20
        %2544 = vperm.xlu0 %2543, %v239
        %v2545 = vpop.permute.xlu0 %2544
        %2546 = vset.pattern.permute.xlu0 20
        %2547 = vperm.xlu0 %2546, %v240
        %v2548 = vpop.permute.xlu0 %2547
        %2549 = vset.pattern.permute.xlu0 20
        %2550 = vperm.xlu0 %2549, %v241
        %v2551 = vpop.permute.xlu0 %2550
        %2552 = vset.pattern.permute.xlu0 20
        %2553 = vperm.xlu0 %2552, %v242
        %v2554 = vpop.permute.xlu0 %2553
        %2555 = vset.pattern.permute.xlu0 20
        %2556 = vperm.xlu0 %2555, %v243
        %v2557 = vpop.permute.xlu0 %2556
        %2558 = vset.pattern.permute.xlu0 20
        %2559 = vperm.xlu0 %2558, %v244
        %v2560 = vpop.permute.xlu0 %2559
        %2561 = vset.pattern.permute.xlu0 20
        %2562 = vperm.xlu0 %2561, %v245
        %v2563 = vpop.permute.xlu0 %2562
        %2564 = vset.pattern.permute.xlu0 20
        %2565 = vperm.xlu0 %2564, %v246
        %v2566 = vpop.permute.xlu0 %2565
        %2567 = vset.pattern.permute.xlu0 20
        %2568 = vperm.xlu0 %2567, %v247
        %v2569 = vpop.permute.xlu0 %2568
        %2570 = vset.pattern.permute.xlu0 20
        %2571 = vperm.xlu0 %2570, %v248
        %v2572 = vpop.permute.xlu0 %2571
        %vm2573 = vcmp.eq.s32.totalorder %v2527, %v227
        %vm2574 = vcmp.eq.s32.totalorder %v2530, %v227
        %vm2575 = vcmp.eq.s32.totalorder %v2533, %v227
        %vm2576 = vcmp.eq.s32.totalorder %v2536, %v227
        %vm2577 = vcmp.eq.s32.totalorder %v2539, %v227
        %vm2578 = vcmp.eq.s32.totalorder %v2542, %v227
        %vm2579 = vcmp.eq.s32.totalorder %v2545, %v227
        %vm2580 = vcmp.eq.s32.totalorder %v2548, %v227
        %vm2581 = vcmp.eq.s32.totalorder %v2551, %v227
        %vm2582 = vcmp.eq.s32.totalorder %v2554, %v227
        %vm2583 = vcmp.eq.s32.totalorder %v2557, %v227
        %vm2584 = vcmp.eq.s32.totalorder %v2560, %v227
        %vm2585 = vcmp.eq.s32.totalorder %v2563, %v227
        %vm2586 = vcmp.eq.s32.totalorder %v2566, %v227
        %vm2587 = vcmp.eq.s32.totalorder %v2569, %v227
        %vm2588 = vcmp.eq.s32.totalorder %v2572, %v227
        %v2589 = vsel %vm2573, 1, 0
        %v2590 = vsel %vm2574, 1, 0
        %v2591 = vsel %vm2575, 1, 0
        %v2592 = vsel %vm2576, 1, 0
        %v2593 = vsel %vm2577, 1, 0
        %v2594 = vsel %vm2578, 1, 0
        %v2595 = vsel %vm2579, 1, 0
        %v2596 = vsel %vm2580, 1, 0
        %v2597 = vsel %vm2581, 1, 0
        %v2598 = vsel %vm2582, 1, 0
        %v2599 = vsel %vm2583, 1, 0
        %v2600 = vsel %vm2584, 1, 0
        %v2601 = vsel %vm2585, 1, 0
        %v2602 = vsel %vm2586, 1, 0
        %v2603 = vsel %vm2587, 1, 0
        %v2604 = vsel %vm2588, 1, 0
        %v2605 = vcvt.s32.f32 %v2589
        %v2606 = vcvt.s32.f32 %v2590
        %v2607 = vcvt.s32.f32 %v2591
        %v2608 = vcvt.s32.f32 %v2592
        %v2609 = vcvt.s32.f32 %v2593
        %v2610 = vcvt.s32.f32 %v2594
        %v2611 = vcvt.s32.f32 %v2595
        %v2612 = vcvt.s32.f32 %v2596
        %v2613 = vcvt.s32.f32 %v2597
        %v2614 = vcvt.s32.f32 %v2598
        %v2615 = vcvt.s32.f32 %v2599
        %v2616 = vcvt.s32.f32 %v2600
        %v2617 = vcvt.s32.f32 %v2601
        %v2618 = vcvt.s32.f32 %v2602
        %v2619 = vcvt.s32.f32 %v2603
        %v2620 = vcvt.s32.f32 %v2604
        %v2621 = vadd.f32 %v2509, %v2605
        %v2622 = vadd.f32 %v2510, %v2606
        %v2623 = vadd.f32 %v2511, %v2607
        %v2624 = vadd.f32 %v2512, %v2608
        %v2625 = vadd.f32 %v2513, %v2609
        %v2626 = vadd.f32 %v2514, %v2610
        %v2627 = vadd.f32 %v2515, %v2611
        %v2628 = vadd.f32 %v2516, %v2612
        %v2629 = vadd.f32 %v2517, %v2613
        %v2630 = vadd.f32 %v2518, %v2614
        %v2631 = vadd.f32 %v2519, %v2615
        %v2632 = vadd.f32 %v2520, %v2616
        %v2633 = vadd.f32 %v2521, %v2617
        %v2634 = vadd.f32 %v2522, %v2618
        %v2635 = vadd.f32 %v2523, %v2619
        %v2636 = vadd.f32 %v2524, %v2620
        %2637 = vset.pattern.permute.xlu0 21
        %2638 = vperm.xlu0 %2637, %v233
        %v2639 = vpop.permute.xlu0 %2638
        %2640 = vset.pattern.permute.xlu0 21
        %2641 = vperm.xlu0 %2640, %v234
        %v2642 = vpop.permute.xlu0 %2641
        %2643 = vset.pattern.permute.xlu0 21
        %2644 = vperm.xlu0 %2643, %v235
        %v2645 = vpop.permute.xlu0 %2644
        %2646 = vset.pattern.permute.xlu0 21
        %2647 = vperm.xlu0 %2646, %v236
        %v2648 = vpop.permute.xlu0 %2647
        %2649 = vset.pattern.permute.xlu0 21
        %2650 = vperm.xlu0 %2649, %v237
        %v2651 = vpop.permute.xlu0 %2650
        %2652 = vset.pattern.permute.xlu0 21
        %2653 = vperm.xlu0 %2652, %v238
        %v2654 = vpop.permute.xlu0 %2653
        %2655 = vset.pattern.permute.xlu0 21
        %2656 = vperm.xlu0 %2655, %v239
        %v2657 = vpop.permute.xlu0 %2656
        %2658 = vset.pattern.permute.xlu0 21
        %2659 = vperm.xlu0 %2658, %v240
        %v2660 = vpop.permute.xlu0 %2659
        %2661 = vset.pattern.permute.xlu0 21
        %2662 = vperm.xlu0 %2661, %v241
        %v2663 = vpop.permute.xlu0 %2662
        %2664 = vset.pattern.permute.xlu0 21
        %2665 = vperm.xlu0 %2664, %v242
        %v2666 = vpop.permute.xlu0 %2665
        %2667 = vset.pattern.permute.xlu0 21
        %2668 = vperm.xlu0 %2667, %v243
        %v2669 = vpop.permute.xlu0 %2668
        %2670 = vset.pattern.permute.xlu0 21
        %2671 = vperm.xlu0 %2670, %v244
        %v2672 = vpop.permute.xlu0 %2671
        %2673 = vset.pattern.permute.xlu0 21
        %2674 = vperm.xlu0 %2673, %v245
        %v2675 = vpop.permute.xlu0 %2674
        %2676 = vset.pattern.permute.xlu0 21
        %2677 = vperm.xlu0 %2676, %v246
        %v2678 = vpop.permute.xlu0 %2677
        %2679 = vset.pattern.permute.xlu0 21
        %2680 = vperm.xlu0 %2679, %v247
        %v2681 = vpop.permute.xlu0 %2680
        %2682 = vset.pattern.permute.xlu0 21
        %2683 = vperm.xlu0 %2682, %v248
        %v2684 = vpop.permute.xlu0 %2683
        %vm2685 = vcmp.eq.s32.totalorder %v2639, %v227
        %vm2686 = vcmp.eq.s32.totalorder %v2642, %v227
        %vm2687 = vcmp.eq.s32.totalorder %v2645, %v227
        %vm2688 = vcmp.eq.s32.totalorder %v2648, %v227
        %vm2689 = vcmp.eq.s32.totalorder %v2651, %v227
        %vm2690 = vcmp.eq.s32.totalorder %v2654, %v227
        %vm2691 = vcmp.eq.s32.totalorder %v2657, %v227
        %vm2692 = vcmp.eq.s32.totalorder %v2660, %v227
        %vm2693 = vcmp.eq.s32.totalorder %v2663, %v227
        %vm2694 = vcmp.eq.s32.totalorder %v2666, %v227
        %vm2695 = vcmp.eq.s32.totalorder %v2669, %v227
        %vm2696 = vcmp.eq.s32.totalorder %v2672, %v227
        %vm2697 = vcmp.eq.s32.totalorder %v2675, %v227
        %vm2698 = vcmp.eq.s32.totalorder %v2678, %v227
        %vm2699 = vcmp.eq.s32.totalorder %v2681, %v227
        %vm2700 = vcmp.eq.s32.totalorder %v2684, %v227
        %v2701 = vsel %vm2685, 1, 0
        %v2702 = vsel %vm2686, 1, 0
        %v2703 = vsel %vm2687, 1, 0
        %v2704 = vsel %vm2688, 1, 0
        %v2705 = vsel %vm2689, 1, 0
        %v2706 = vsel %vm2690, 1, 0
        %v2707 = vsel %vm2691, 1, 0
        %v2708 = vsel %vm2692, 1, 0
        %v2709 = vsel %vm2693, 1, 0
        %v2710 = vsel %vm2694, 1, 0
        %v2711 = vsel %vm2695, 1, 0
        %v2712 = vsel %vm2696, 1, 0
        %v2713 = vsel %vm2697, 1, 0
        %v2714 = vsel %vm2698, 1, 0
        %v2715 = vsel %vm2699, 1, 0
        %v2716 = vsel %vm2700, 1, 0
        %v2717 = vcvt.s32.f32 %v2701
        %v2718 = vcvt.s32.f32 %v2702
        %v2719 = vcvt.s32.f32 %v2703
        %v2720 = vcvt.s32.f32 %v2704
        %v2721 = vcvt.s32.f32 %v2705
        %v2722 = vcvt.s32.f32 %v2706
        %v2723 = vcvt.s32.f32 %v2707
        %v2724 = vcvt.s32.f32 %v2708
        %v2725 = vcvt.s32.f32 %v2709
        %v2726 = vcvt.s32.f32 %v2710
        %v2727 = vcvt.s32.f32 %v2711
        %v2728 = vcvt.s32.f32 %v2712
        %v2729 = vcvt.s32.f32 %v2713
        %v2730 = vcvt.s32.f32 %v2714
        %v2731 = vcvt.s32.f32 %v2715
        %v2732 = vcvt.s32.f32 %v2716
        %v2733 = vadd.f32 %v2621, %v2717
        %v2734 = vadd.f32 %v2622, %v2718
        %v2735 = vadd.f32 %v2623, %v2719
        %v2736 = vadd.f32 %v2624, %v2720
        %v2737 = vadd.f32 %v2625, %v2721
        %v2738 = vadd.f32 %v2626, %v2722
        %v2739 = vadd.f32 %v2627, %v2723
        %v2740 = vadd.f32 %v2628, %v2724
        %v2741 = vadd.f32 %v2629, %v2725
        %v2742 = vadd.f32 %v2630, %v2726
        %v2743 = vadd.f32 %v2631, %v2727
        %v2744 = vadd.f32 %v2632, %v2728
        %v2745 = vadd.f32 %v2633, %v2729
        %v2746 = vadd.f32 %v2634, %v2730
        %v2747 = vadd.f32 %v2635, %v2731
        %v2748 = vadd.f32 %v2636, %v2732
        %2749 = vset.pattern.permute.xlu0 22
        %2750 = vperm.xlu0 %2749, %v233
        %v2751 = vpop.permute.xlu0 %2750
        %2752 = vset.pattern.permute.xlu0 22
        %2753 = vperm.xlu0 %2752, %v234
        %v2754 = vpop.permute.xlu0 %2753
        %2755 = vset.pattern.permute.xlu0 22
        %2756 = vperm.xlu0 %2755, %v235
        %v2757 = vpop.permute.xlu0 %2756
        %2758 = vset.pattern.permute.xlu0 22
        %2759 = vperm.xlu0 %2758, %v236
        %v2760 = vpop.permute.xlu0 %2759
        %2761 = vset.pattern.permute.xlu0 22
        %2762 = vperm.xlu0 %2761, %v237
        %v2763 = vpop.permute.xlu0 %2762
        %2764 = vset.pattern.permute.xlu0 22
        %2765 = vperm.xlu0 %2764, %v238
        %v2766 = vpop.permute.xlu0 %2765
        %2767 = vset.pattern.permute.xlu0 22
        %2768 = vperm.xlu0 %2767, %v239
        %v2769 = vpop.permute.xlu0 %2768
        %2770 = vset.pattern.permute.xlu0 22
        %2771 = vperm.xlu0 %2770, %v240
        %v2772 = vpop.permute.xlu0 %2771
        %2773 = vset.pattern.permute.xlu0 22
        %2774 = vperm.xlu0 %2773, %v241
        %v2775 = vpop.permute.xlu0 %2774
        %2776 = vset.pattern.permute.xlu0 22
        %2777 = vperm.xlu0 %2776, %v242
        %v2778 = vpop.permute.xlu0 %2777
        %2779 = vset.pattern.permute.xlu0 22
        %2780 = vperm.xlu0 %2779, %v243
        %v2781 = vpop.permute.xlu0 %2780
        %2782 = vset.pattern.permute.xlu0 22
        %2783 = vperm.xlu0 %2782, %v244
        %v2784 = vpop.permute.xlu0 %2783
        %2785 = vset.pattern.permute.xlu0 22
        %2786 = vperm.xlu0 %2785, %v245
        %v2787 = vpop.permute.xlu0 %2786
        %2788 = vset.pattern.permute.xlu0 22
        %2789 = vperm.xlu0 %2788, %v246
        %v2790 = vpop.permute.xlu0 %2789
        %2791 = vset.pattern.permute.xlu0 22
        %2792 = vperm.xlu0 %2791, %v247
        %v2793 = vpop.permute.xlu0 %2792
        %2794 = vset.pattern.permute.xlu0 22
        %2795 = vperm.xlu0 %2794, %v248
        %v2796 = vpop.permute.xlu0 %2795
        %vm2797 = vcmp.eq.s32.totalorder %v2751, %v227
        %vm2798 = vcmp.eq.s32.totalorder %v2754, %v227
        %vm2799 = vcmp.eq.s32.totalorder %v2757, %v227
        %vm2800 = vcmp.eq.s32.totalorder %v2760, %v227
        %vm2801 = vcmp.eq.s32.totalorder %v2763, %v227
        %vm2802 = vcmp.eq.s32.totalorder %v2766, %v227
        %vm2803 = vcmp.eq.s32.totalorder %v2769, %v227
        %vm2804 = vcmp.eq.s32.totalorder %v2772, %v227
        %vm2805 = vcmp.eq.s32.totalorder %v2775, %v227
        %vm2806 = vcmp.eq.s32.totalorder %v2778, %v227
        %vm2807 = vcmp.eq.s32.totalorder %v2781, %v227
        %vm2808 = vcmp.eq.s32.totalorder %v2784, %v227
        %vm2809 = vcmp.eq.s32.totalorder %v2787, %v227
        %vm2810 = vcmp.eq.s32.totalorder %v2790, %v227
        %vm2811 = vcmp.eq.s32.totalorder %v2793, %v227
        %vm2812 = vcmp.eq.s32.totalorder %v2796, %v227
        %v2813 = vsel %vm2797, 1, 0
        %v2814 = vsel %vm2798, 1, 0
        %v2815 = vsel %vm2799, 1, 0
        %v2816 = vsel %vm2800, 1, 0
        %v2817 = vsel %vm2801, 1, 0
        %v2818 = vsel %vm2802, 1, 0
        %v2819 = vsel %vm2803, 1, 0
        %v2820 = vsel %vm2804, 1, 0
        %v2821 = vsel %vm2805, 1, 0
        %v2822 = vsel %vm2806, 1, 0
        %v2823 = vsel %vm2807, 1, 0
        %v2824 = vsel %vm2808, 1, 0
        %v2825 = vsel %vm2809, 1, 0
        %v2826 = vsel %vm2810, 1, 0
        %v2827 = vsel %vm2811, 1, 0
        %v2828 = vsel %vm2812, 1, 0
        %v2829 = vcvt.s32.f32 %v2813
        %v2830 = vcvt.s32.f32 %v2814
        %v2831 = vcvt.s32.f32 %v2815
        %v2832 = vcvt.s32.f32 %v2816
        %v2833 = vcvt.s32.f32 %v2817
        %v2834 = vcvt.s32.f32 %v2818
        %v2835 = vcvt.s32.f32 %v2819
        %v2836 = vcvt.s32.f32 %v2820
        %v2837 = vcvt.s32.f32 %v2821
        %v2838 = vcvt.s32.f32 %v2822
        %v2839 = vcvt.s32.f32 %v2823
        %v2840 = vcvt.s32.f32 %v2824
        %v2841 = vcvt.s32.f32 %v2825
        %v2842 = vcvt.s32.f32 %v2826
        %v2843 = vcvt.s32.f32 %v2827
        %v2844 = vcvt.s32.f32 %v2828
        %v2845 = vadd.f32 %v2733, %v2829
        %v2846 = vadd.f32 %v2734, %v2830
        %v2847 = vadd.f32 %v2735, %v2831
        %v2848 = vadd.f32 %v2736, %v2832
        %v2849 = vadd.f32 %v2737, %v2833
        %v2850 = vadd.f32 %v2738, %v2834
        %v2851 = vadd.f32 %v2739, %v2835
        %v2852 = vadd.f32 %v2740, %v2836
        %v2853 = vadd.f32 %v2741, %v2837
        %v2854 = vadd.f32 %v2742, %v2838
        %v2855 = vadd.f32 %v2743, %v2839
        %v2856 = vadd.f32 %v2744, %v2840
        %v2857 = vadd.f32 %v2745, %v2841
        %v2858 = vadd.f32 %v2746, %v2842
        %v2859 = vadd.f32 %v2747, %v2843
        %v2860 = vadd.f32 %v2748, %v2844
        %2861 = vset.pattern.permute.xlu0 23
        %2862 = vperm.xlu0 %2861, %v233
        %v2863 = vpop.permute.xlu0 %2862
        %2864 = vset.pattern.permute.xlu0 23
        %2865 = vperm.xlu0 %2864, %v234
        %v2866 = vpop.permute.xlu0 %2865
        %2867 = vset.pattern.permute.xlu0 23
        %2868 = vperm.xlu0 %2867, %v235
        %v2869 = vpop.permute.xlu0 %2868
        %2870 = vset.pattern.permute.xlu0 23
        %2871 = vperm.xlu0 %2870, %v236
        %v2872 = vpop.permute.xlu0 %2871
        %2873 = vset.pattern.permute.xlu0 23
        %2874 = vperm.xlu0 %2873, %v237
        %v2875 = vpop.permute.xlu0 %2874
        %2876 = vset.pattern.permute.xlu0 23
        %2877 = vperm.xlu0 %2876, %v238
        %v2878 = vpop.permute.xlu0 %2877
        %2879 = vset.pattern.permute.xlu0 23
        %2880 = vperm.xlu0 %2879, %v239
        %v2881 = vpop.permute.xlu0 %2880
        %2882 = vset.pattern.permute.xlu0 23
        %2883 = vperm.xlu0 %2882, %v240
        %v2884 = vpop.permute.xlu0 %2883
        %2885 = vset.pattern.permute.xlu0 23
        %2886 = vperm.xlu0 %2885, %v241
        %v2887 = vpop.permute.xlu0 %2886
        %2888 = vset.pattern.permute.xlu0 23
        %2889 = vperm.xlu0 %2888, %v242
        %v2890 = vpop.permute.xlu0 %2889
        %2891 = vset.pattern.permute.xlu0 23
        %2892 = vperm.xlu0 %2891, %v243
        %v2893 = vpop.permute.xlu0 %2892
        %2894 = vset.pattern.permute.xlu0 23
        %2895 = vperm.xlu0 %2894, %v244
        %v2896 = vpop.permute.xlu0 %2895
        %2897 = vset.pattern.permute.xlu0 23
        %2898 = vperm.xlu0 %2897, %v245
        %v2899 = vpop.permute.xlu0 %2898
        %2900 = vset.pattern.permute.xlu0 23
        %2901 = vperm.xlu0 %2900, %v246
        %v2902 = vpop.permute.xlu0 %2901
        %2903 = vset.pattern.permute.xlu0 23
        %2904 = vperm.xlu0 %2903, %v247
        %v2905 = vpop.permute.xlu0 %2904
        %2906 = vset.pattern.permute.xlu0 23
        %2907 = vperm.xlu0 %2906, %v248
        %v2908 = vpop.permute.xlu0 %2907
        %vm2909 = vcmp.eq.s32.totalorder %v2863, %v227
        %vm2910 = vcmp.eq.s32.totalorder %v2866, %v227
        %vm2911 = vcmp.eq.s32.totalorder %v2869, %v227
        %vm2912 = vcmp.eq.s32.totalorder %v2872, %v227
        %vm2913 = vcmp.eq.s32.totalorder %v2875, %v227
        %vm2914 = vcmp.eq.s32.totalorder %v2878, %v227
        %vm2915 = vcmp.eq.s32.totalorder %v2881, %v227
        %vm2916 = vcmp.eq.s32.totalorder %v2884, %v227
        %vm2917 = vcmp.eq.s32.totalorder %v2887, %v227
        %vm2918 = vcmp.eq.s32.totalorder %v2890, %v227
        %vm2919 = vcmp.eq.s32.totalorder %v2893, %v227
        %vm2920 = vcmp.eq.s32.totalorder %v2896, %v227
        %vm2921 = vcmp.eq.s32.totalorder %v2899, %v227
        %vm2922 = vcmp.eq.s32.totalorder %v2902, %v227
        %vm2923 = vcmp.eq.s32.totalorder %v2905, %v227
        %vm2924 = vcmp.eq.s32.totalorder %v2908, %v227
        %v2925 = vsel %vm2909, 1, 0
        %v2926 = vsel %vm2910, 1, 0
        %v2927 = vsel %vm2911, 1, 0
        %v2928 = vsel %vm2912, 1, 0
        %v2929 = vsel %vm2913, 1, 0
        %v2930 = vsel %vm2914, 1, 0
        %v2931 = vsel %vm2915, 1, 0
        %v2932 = vsel %vm2916, 1, 0
        %v2933 = vsel %vm2917, 1, 0
        %v2934 = vsel %vm2918, 1, 0
        %v2935 = vsel %vm2919, 1, 0
        %v2936 = vsel %vm2920, 1, 0
        %v2937 = vsel %vm2921, 1, 0
        %v2938 = vsel %vm2922, 1, 0
        %v2939 = vsel %vm2923, 1, 0
        %v2940 = vsel %vm2924, 1, 0
        %v2941 = vcvt.s32.f32 %v2925
        %v2942 = vcvt.s32.f32 %v2926
        %v2943 = vcvt.s32.f32 %v2927
        %v2944 = vcvt.s32.f32 %v2928
        %v2945 = vcvt.s32.f32 %v2929
        %v2946 = vcvt.s32.f32 %v2930
        %v2947 = vcvt.s32.f32 %v2931
        %v2948 = vcvt.s32.f32 %v2932
        %v2949 = vcvt.s32.f32 %v2933
        %v2950 = vcvt.s32.f32 %v2934
        %v2951 = vcvt.s32.f32 %v2935
        %v2952 = vcvt.s32.f32 %v2936
        %v2953 = vcvt.s32.f32 %v2937
        %v2954 = vcvt.s32.f32 %v2938
        %v2955 = vcvt.s32.f32 %v2939
        %v2956 = vcvt.s32.f32 %v2940
        %v2957 = vadd.f32 %v2845, %v2941
        %v2958 = vadd.f32 %v2846, %v2942
        %v2959 = vadd.f32 %v2847, %v2943
        %v2960 = vadd.f32 %v2848, %v2944
        %v2961 = vadd.f32 %v2849, %v2945
        %v2962 = vadd.f32 %v2850, %v2946
        %v2963 = vadd.f32 %v2851, %v2947
        %v2964 = vadd.f32 %v2852, %v2948
        %v2965 = vadd.f32 %v2853, %v2949
        %v2966 = vadd.f32 %v2854, %v2950
        %v2967 = vadd.f32 %v2855, %v2951
        %v2968 = vadd.f32 %v2856, %v2952
        %v2969 = vadd.f32 %v2857, %v2953
        %v2970 = vadd.f32 %v2858, %v2954
        %v2971 = vadd.f32 %v2859, %v2955
        %v2972 = vadd.f32 %v2860, %v2956
        %2973 = vset.pattern.permute.xlu0 24
        %2974 = vperm.xlu0 %2973, %v233
        %v2975 = vpop.permute.xlu0 %2974
        %2976 = vset.pattern.permute.xlu0 24
        %2977 = vperm.xlu0 %2976, %v234
        %v2978 = vpop.permute.xlu0 %2977
        %2979 = vset.pattern.permute.xlu0 24
        %2980 = vperm.xlu0 %2979, %v235
        %v2981 = vpop.permute.xlu0 %2980
        %2982 = vset.pattern.permute.xlu0 24
        %2983 = vperm.xlu0 %2982, %v236
        %v2984 = vpop.permute.xlu0 %2983
        %2985 = vset.pattern.permute.xlu0 24
        %2986 = vperm.xlu0 %2985, %v237
        %v2987 = vpop.permute.xlu0 %2986
        %2988 = vset.pattern.permute.xlu0 24
        %2989 = vperm.xlu0 %2988, %v238
        %v2990 = vpop.permute.xlu0 %2989
        %2991 = vset.pattern.permute.xlu0 24
        %2992 = vperm.xlu0 %2991, %v239
        %v2993 = vpop.permute.xlu0 %2992
        %2994 = vset.pattern.permute.xlu0 24
        %2995 = vperm.xlu0 %2994, %v240
        %v2996 = vpop.permute.xlu0 %2995
        %2997 = vset.pattern.permute.xlu0 24
        %2998 = vperm.xlu0 %2997, %v241
        %v2999 = vpop.permute.xlu0 %2998
        %3000 = vset.pattern.permute.xlu0 24
        %3001 = vperm.xlu0 %3000, %v242
        %v3002 = vpop.permute.xlu0 %3001
        %3003 = vset.pattern.permute.xlu0 24
        %3004 = vperm.xlu0 %3003, %v243
        %v3005 = vpop.permute.xlu0 %3004
        %3006 = vset.pattern.permute.xlu0 24
        %3007 = vperm.xlu0 %3006, %v244
        %v3008 = vpop.permute.xlu0 %3007
        %3009 = vset.pattern.permute.xlu0 24
        %3010 = vperm.xlu0 %3009, %v245
        %v3011 = vpop.permute.xlu0 %3010
        %3012 = vset.pattern.permute.xlu0 24
        %3013 = vperm.xlu0 %3012, %v246
        %v3014 = vpop.permute.xlu0 %3013
        %3015 = vset.pattern.permute.xlu0 24
        %3016 = vperm.xlu0 %3015, %v247
        %v3017 = vpop.permute.xlu0 %3016
        %3018 = vset.pattern.permute.xlu0 24
        %3019 = vperm.xlu0 %3018, %v248
        %v3020 = vpop.permute.xlu0 %3019
        %vm3021 = vcmp.eq.s32.totalorder %v2975, %v227
        %vm3022 = vcmp.eq.s32.totalorder %v2978, %v227
        %vm3023 = vcmp.eq.s32.totalorder %v2981, %v227
        %vm3024 = vcmp.eq.s32.totalorder %v2984, %v227
        %vm3025 = vcmp.eq.s32.totalorder %v2987, %v227
        %vm3026 = vcmp.eq.s32.totalorder %v2990, %v227
        %vm3027 = vcmp.eq.s32.totalorder %v2993, %v227
        %vm3028 = vcmp.eq.s32.totalorder %v2996, %v227
        %vm3029 = vcmp.eq.s32.totalorder %v2999, %v227
        %vm3030 = vcmp.eq.s32.totalorder %v3002, %v227
        %vm3031 = vcmp.eq.s32.totalorder %v3005, %v227
        %vm3032 = vcmp.eq.s32.totalorder %v3008, %v227
        %vm3033 = vcmp.eq.s32.totalorder %v3011, %v227
        %vm3034 = vcmp.eq.s32.totalorder %v3014, %v227
        %vm3035 = vcmp.eq.s32.totalorder %v3017, %v227
        %vm3036 = vcmp.eq.s32.totalorder %v3020, %v227
        %v3037 = vsel %vm3021, 1, 0
        %v3038 = vsel %vm3022, 1, 0
        %v3039 = vsel %vm3023, 1, 0
        %v3040 = vsel %vm3024, 1, 0
        %v3041 = vsel %vm3025, 1, 0
        %v3042 = vsel %vm3026, 1, 0
        %v3043 = vsel %vm3027, 1, 0
        %v3044 = vsel %vm3028, 1, 0
        %v3045 = vsel %vm3029, 1, 0
        %v3046 = vsel %vm3030, 1, 0
        %v3047 = vsel %vm3031, 1, 0
        %v3048 = vsel %vm3032, 1, 0
        %v3049 = vsel %vm3033, 1, 0
        %v3050 = vsel %vm3034, 1, 0
        %v3051 = vsel %vm3035, 1, 0
        %v3052 = vsel %vm3036, 1, 0
        %v3053 = vcvt.s32.f32 %v3037
        %v3054 = vcvt.s32.f32 %v3038
        %v3055 = vcvt.s32.f32 %v3039
        %v3056 = vcvt.s32.f32 %v3040
        %v3057 = vcvt.s32.f32 %v3041
        %v3058 = vcvt.s32.f32 %v3042
        %v3059 = vcvt.s32.f32 %v3043
        %v3060 = vcvt.s32.f32 %v3044
        %v3061 = vcvt.s32.f32 %v3045
        %v3062 = vcvt.s32.f32 %v3046
        %v3063 = vcvt.s32.f32 %v3047
        %v3064 = vcvt.s32.f32 %v3048
        %v3065 = vcvt.s32.f32 %v3049
        %v3066 = vcvt.s32.f32 %v3050
        %v3067 = vcvt.s32.f32 %v3051
        %v3068 = vcvt.s32.f32 %v3052
        %v3069 = vadd.f32 %v2957, %v3053
        %v3070 = vadd.f32 %v2958, %v3054
        %v3071 = vadd.f32 %v2959, %v3055
        %v3072 = vadd.f32 %v2960, %v3056
        %v3073 = vadd.f32 %v2961, %v3057
        %v3074 = vadd.f32 %v2962, %v3058
        %v3075 = vadd.f32 %v2963, %v3059
        %v3076 = vadd.f32 %v2964, %v3060
        %v3077 = vadd.f32 %v2965, %v3061
        %v3078 = vadd.f32 %v2966, %v3062
        %v3079 = vadd.f32 %v2967, %v3063
        %v3080 = vadd.f32 %v2968, %v3064
        %v3081 = vadd.f32 %v2969, %v3065
        %v3082 = vadd.f32 %v2970, %v3066
        %v3083 = vadd.f32 %v2971, %v3067
        %v3084 = vadd.f32 %v2972, %v3068
        %3085 = vset.pattern.permute.xlu0 25
        %3086 = vperm.xlu0 %3085, %v233
        %v3087 = vpop.permute.xlu0 %3086
        %3088 = vset.pattern.permute.xlu0 25
        %3089 = vperm.xlu0 %3088, %v234
        %v3090 = vpop.permute.xlu0 %3089
        %3091 = vset.pattern.permute.xlu0 25
        %3092 = vperm.xlu0 %3091, %v235
        %v3093 = vpop.permute.xlu0 %3092
        %3094 = vset.pattern.permute.xlu0 25
        %3095 = vperm.xlu0 %3094, %v236
        %v3096 = vpop.permute.xlu0 %3095
        %3097 = vset.pattern.permute.xlu0 25
        %3098 = vperm.xlu0 %3097, %v237
        %v3099 = vpop.permute.xlu0 %3098
        %3100 = vset.pattern.permute.xlu0 25
        %3101 = vperm.xlu0 %3100, %v238
        %v3102 = vpop.permute.xlu0 %3101
        %3103 = vset.pattern.permute.xlu0 25
        %3104 = vperm.xlu0 %3103, %v239
        %v3105 = vpop.permute.xlu0 %3104
        %3106 = vset.pattern.permute.xlu0 25
        %3107 = vperm.xlu0 %3106, %v240
        %v3108 = vpop.permute.xlu0 %3107
        %3109 = vset.pattern.permute.xlu0 25
        %3110 = vperm.xlu0 %3109, %v241
        %v3111 = vpop.permute.xlu0 %3110
        %3112 = vset.pattern.permute.xlu0 25
        %3113 = vperm.xlu0 %3112, %v242
        %v3114 = vpop.permute.xlu0 %3113
        %3115 = vset.pattern.permute.xlu0 25
        %3116 = vperm.xlu0 %3115, %v243
        %v3117 = vpop.permute.xlu0 %3116
        %3118 = vset.pattern.permute.xlu0 25
        %3119 = vperm.xlu0 %3118, %v244
        %v3120 = vpop.permute.xlu0 %3119
        %3121 = vset.pattern.permute.xlu0 25
        %3122 = vperm.xlu0 %3121, %v245
        %v3123 = vpop.permute.xlu0 %3122
        %3124 = vset.pattern.permute.xlu0 25
        %3125 = vperm.xlu0 %3124, %v246
        %v3126 = vpop.permute.xlu0 %3125
        %3127 = vset.pattern.permute.xlu0 25
        %3128 = vperm.xlu0 %3127, %v247
        %v3129 = vpop.permute.xlu0 %3128
        %3130 = vset.pattern.permute.xlu0 25
        %3131 = vperm.xlu0 %3130, %v248
        %v3132 = vpop.permute.xlu0 %3131
        %vm3133 = vcmp.eq.s32.totalorder %v3087, %v227
        %vm3134 = vcmp.eq.s32.totalorder %v3090, %v227
        %vm3135 = vcmp.eq.s32.totalorder %v3093, %v227
        %vm3136 = vcmp.eq.s32.totalorder %v3096, %v227
        %vm3137 = vcmp.eq.s32.totalorder %v3099, %v227
        %vm3138 = vcmp.eq.s32.totalorder %v3102, %v227
        %vm3139 = vcmp.eq.s32.totalorder %v3105, %v227
        %vm3140 = vcmp.eq.s32.totalorder %v3108, %v227
        %vm3141 = vcmp.eq.s32.totalorder %v3111, %v227
        %vm3142 = vcmp.eq.s32.totalorder %v3114, %v227
        %vm3143 = vcmp.eq.s32.totalorder %v3117, %v227
        %vm3144 = vcmp.eq.s32.totalorder %v3120, %v227
        %vm3145 = vcmp.eq.s32.totalorder %v3123, %v227
        %vm3146 = vcmp.eq.s32.totalorder %v3126, %v227
        %vm3147 = vcmp.eq.s32.totalorder %v3129, %v227
        %vm3148 = vcmp.eq.s32.totalorder %v3132, %v227
        %v3149 = vsel %vm3133, 1, 0
        %v3150 = vsel %vm3134, 1, 0
        %v3151 = vsel %vm3135, 1, 0
        %v3152 = vsel %vm3136, 1, 0
        %v3153 = vsel %vm3137, 1, 0
        %v3154 = vsel %vm3138, 1, 0
        %v3155 = vsel %vm3139, 1, 0
        %v3156 = vsel %vm3140, 1, 0
        %v3157 = vsel %vm3141, 1, 0
        %v3158 = vsel %vm3142, 1, 0
        %v3159 = vsel %vm3143, 1, 0
        %v3160 = vsel %vm3144, 1, 0
        %v3161 = vsel %vm3145, 1, 0
        %v3162 = vsel %vm3146, 1, 0
        %v3163 = vsel %vm3147, 1, 0
        %v3164 = vsel %vm3148, 1, 0
        %v3165 = vcvt.s32.f32 %v3149
        %v3166 = vcvt.s32.f32 %v3150
        %v3167 = vcvt.s32.f32 %v3151
        %v3168 = vcvt.s32.f32 %v3152
        %v3169 = vcvt.s32.f32 %v3153
        %v3170 = vcvt.s32.f32 %v3154
        %v3171 = vcvt.s32.f32 %v3155
        %v3172 = vcvt.s32.f32 %v3156
        %v3173 = vcvt.s32.f32 %v3157
        %v3174 = vcvt.s32.f32 %v3158
        %v3175 = vcvt.s32.f32 %v3159
        %v3176 = vcvt.s32.f32 %v3160
        %v3177 = vcvt.s32.f32 %v3161
        %v3178 = vcvt.s32.f32 %v3162
        %v3179 = vcvt.s32.f32 %v3163
        %v3180 = vcvt.s32.f32 %v3164
        %v3181 = vadd.f32 %v3069, %v3165
        %v3182 = vadd.f32 %v3070, %v3166
        %v3183 = vadd.f32 %v3071, %v3167
        %v3184 = vadd.f32 %v3072, %v3168
        %v3185 = vadd.f32 %v3073, %v3169
        %v3186 = vadd.f32 %v3074, %v3170
        %v3187 = vadd.f32 %v3075, %v3171
        %v3188 = vadd.f32 %v3076, %v3172
        %v3189 = vadd.f32 %v3077, %v3173
        %v3190 = vadd.f32 %v3078, %v3174
        %v3191 = vadd.f32 %v3079, %v3175
        %v3192 = vadd.f32 %v3080, %v3176
        %v3193 = vadd.f32 %v3081, %v3177
        %v3194 = vadd.f32 %v3082, %v3178
        %v3195 = vadd.f32 %v3083, %v3179
        %v3196 = vadd.f32 %v3084, %v3180
        %3197 = vset.pattern.permute.xlu0 26
        %3198 = vperm.xlu0 %3197, %v233
        %v3199 = vpop.permute.xlu0 %3198
        %3200 = vset.pattern.permute.xlu0 26
        %3201 = vperm.xlu0 %3200, %v234
        %v3202 = vpop.permute.xlu0 %3201
        %3203 = vset.pattern.permute.xlu0 26
        %3204 = vperm.xlu0 %3203, %v235
        %v3205 = vpop.permute.xlu0 %3204
        %3206 = vset.pattern.permute.xlu0 26
        %3207 = vperm.xlu0 %3206, %v236
        %v3208 = vpop.permute.xlu0 %3207
        %3209 = vset.pattern.permute.xlu0 26
        %3210 = vperm.xlu0 %3209, %v237
        %v3211 = vpop.permute.xlu0 %3210
        %3212 = vset.pattern.permute.xlu0 26
        %3213 = vperm.xlu0 %3212, %v238
        %v3214 = vpop.permute.xlu0 %3213
        %3215 = vset.pattern.permute.xlu0 26
        %3216 = vperm.xlu0 %3215, %v239
        %v3217 = vpop.permute.xlu0 %3216
        %3218 = vset.pattern.permute.xlu0 26
        %3219 = vperm.xlu0 %3218, %v240
        %v3220 = vpop.permute.xlu0 %3219
        %3221 = vset.pattern.permute.xlu0 26
        %3222 = vperm.xlu0 %3221, %v241
        %v3223 = vpop.permute.xlu0 %3222
        %3224 = vset.pattern.permute.xlu0 26
        %3225 = vperm.xlu0 %3224, %v242
        %v3226 = vpop.permute.xlu0 %3225
        %3227 = vset.pattern.permute.xlu0 26
        %3228 = vperm.xlu0 %3227, %v243
        %v3229 = vpop.permute.xlu0 %3228
        %3230 = vset.pattern.permute.xlu0 26
        %3231 = vperm.xlu0 %3230, %v244
        %v3232 = vpop.permute.xlu0 %3231
        %3233 = vset.pattern.permute.xlu0 26
        %3234 = vperm.xlu0 %3233, %v245
        %v3235 = vpop.permute.xlu0 %3234
        %3236 = vset.pattern.permute.xlu0 26
        %3237 = vperm.xlu0 %3236, %v246
        %v3238 = vpop.permute.xlu0 %3237
        %3239 = vset.pattern.permute.xlu0 26
        %3240 = vperm.xlu0 %3239, %v247
        %v3241 = vpop.permute.xlu0 %3240
        %3242 = vset.pattern.permute.xlu0 26
        %3243 = vperm.xlu0 %3242, %v248
        %v3244 = vpop.permute.xlu0 %3243
        %vm3245 = vcmp.eq.s32.totalorder %v3199, %v227
        %vm3246 = vcmp.eq.s32.totalorder %v3202, %v227
        %vm3247 = vcmp.eq.s32.totalorder %v3205, %v227
        %vm3248 = vcmp.eq.s32.totalorder %v3208, %v227
        %vm3249 = vcmp.eq.s32.totalorder %v3211, %v227
        %vm3250 = vcmp.eq.s32.totalorder %v3214, %v227
        %vm3251 = vcmp.eq.s32.totalorder %v3217, %v227
        %vm3252 = vcmp.eq.s32.totalorder %v3220, %v227
        %vm3253 = vcmp.eq.s32.totalorder %v3223, %v227
        %vm3254 = vcmp.eq.s32.totalorder %v3226, %v227
        %vm3255 = vcmp.eq.s32.totalorder %v3229, %v227
        %vm3256 = vcmp.eq.s32.totalorder %v3232, %v227
        %vm3257 = vcmp.eq.s32.totalorder %v3235, %v227
        %vm3258 = vcmp.eq.s32.totalorder %v3238, %v227
        %vm3259 = vcmp.eq.s32.totalorder %v3241, %v227
        %vm3260 = vcmp.eq.s32.totalorder %v3244, %v227
        %v3261 = vsel %vm3245, 1, 0
        %v3262 = vsel %vm3246, 1, 0
        %v3263 = vsel %vm3247, 1, 0
        %v3264 = vsel %vm3248, 1, 0
        %v3265 = vsel %vm3249, 1, 0
        %v3266 = vsel %vm3250, 1, 0
        %v3267 = vsel %vm3251, 1, 0
        %v3268 = vsel %vm3252, 1, 0
        %v3269 = vsel %vm3253, 1, 0
        %v3270 = vsel %vm3254, 1, 0
        %v3271 = vsel %vm3255, 1, 0
        %v3272 = vsel %vm3256, 1, 0
        %v3273 = vsel %vm3257, 1, 0
        %v3274 = vsel %vm3258, 1, 0
        %v3275 = vsel %vm3259, 1, 0
        %v3276 = vsel %vm3260, 1, 0
        %v3277 = vcvt.s32.f32 %v3261
        %v3278 = vcvt.s32.f32 %v3262
        %v3279 = vcvt.s32.f32 %v3263
        %v3280 = vcvt.s32.f32 %v3264
        %v3281 = vcvt.s32.f32 %v3265
        %v3282 = vcvt.s32.f32 %v3266
        %v3283 = vcvt.s32.f32 %v3267
        %v3284 = vcvt.s32.f32 %v3268
        %v3285 = vcvt.s32.f32 %v3269
        %v3286 = vcvt.s32.f32 %v3270
        %v3287 = vcvt.s32.f32 %v3271
        %v3288 = vcvt.s32.f32 %v3272
        %v3289 = vcvt.s32.f32 %v3273
        %v3290 = vcvt.s32.f32 %v3274
        %v3291 = vcvt.s32.f32 %v3275
        %v3292 = vcvt.s32.f32 %v3276
        %v3293 = vadd.f32 %v3181, %v3277
        %v3294 = vadd.f32 %v3182, %v3278
        %v3295 = vadd.f32 %v3183, %v3279
        %v3296 = vadd.f32 %v3184, %v3280
        %v3297 = vadd.f32 %v3185, %v3281
        %v3298 = vadd.f32 %v3186, %v3282
        %v3299 = vadd.f32 %v3187, %v3283
        %v3300 = vadd.f32 %v3188, %v3284
        %v3301 = vadd.f32 %v3189, %v3285
        %v3302 = vadd.f32 %v3190, %v3286
        %v3303 = vadd.f32 %v3191, %v3287
        %v3304 = vadd.f32 %v3192, %v3288
        %v3305 = vadd.f32 %v3193, %v3289
        %v3306 = vadd.f32 %v3194, %v3290
        %v3307 = vadd.f32 %v3195, %v3291
        %v3308 = vadd.f32 %v3196, %v3292
        %3309 = vset.pattern.permute.xlu0 27
        %3310 = vperm.xlu0 %3309, %v233
        %v3311 = vpop.permute.xlu0 %3310
        %3312 = vset.pattern.permute.xlu0 27
        %3313 = vperm.xlu0 %3312, %v234
        %v3314 = vpop.permute.xlu0 %3313
        %3315 = vset.pattern.permute.xlu0 27
        %3316 = vperm.xlu0 %3315, %v235
        %v3317 = vpop.permute.xlu0 %3316
        %3318 = vset.pattern.permute.xlu0 27
        %3319 = vperm.xlu0 %3318, %v236
        %v3320 = vpop.permute.xlu0 %3319
        %3321 = vset.pattern.permute.xlu0 27
        %3322 = vperm.xlu0 %3321, %v237
        %v3323 = vpop.permute.xlu0 %3322
        %3324 = vset.pattern.permute.xlu0 27
        %3325 = vperm.xlu0 %3324, %v238
        %v3326 = vpop.permute.xlu0 %3325
        %3327 = vset.pattern.permute.xlu0 27
        %3328 = vperm.xlu0 %3327, %v239
        %v3329 = vpop.permute.xlu0 %3328
        %3330 = vset.pattern.permute.xlu0 27
        %3331 = vperm.xlu0 %3330, %v240
        %v3332 = vpop.permute.xlu0 %3331
        %3333 = vset.pattern.permute.xlu0 27
        %3334 = vperm.xlu0 %3333, %v241
        %v3335 = vpop.permute.xlu0 %3334
        %3336 = vset.pattern.permute.xlu0 27
        %3337 = vperm.xlu0 %3336, %v242
        %v3338 = vpop.permute.xlu0 %3337
        %3339 = vset.pattern.permute.xlu0 27
        %3340 = vperm.xlu0 %3339, %v243
        %v3341 = vpop.permute.xlu0 %3340
        %3342 = vset.pattern.permute.xlu0 27
        %3343 = vperm.xlu0 %3342, %v244
        %v3344 = vpop.permute.xlu0 %3343
        %3345 = vset.pattern.permute.xlu0 27
        %3346 = vperm.xlu0 %3345, %v245
        %v3347 = vpop.permute.xlu0 %3346
        %3348 = vset.pattern.permute.xlu0 27
        %3349 = vperm.xlu0 %3348, %v246
        %v3350 = vpop.permute.xlu0 %3349
        %3351 = vset.pattern.permute.xlu0 27
        %3352 = vperm.xlu0 %3351, %v247
        %v3353 = vpop.permute.xlu0 %3352
        %3354 = vset.pattern.permute.xlu0 27
        %3355 = vperm.xlu0 %3354, %v248
        %v3356 = vpop.permute.xlu0 %3355
        %vm3357 = vcmp.eq.s32.totalorder %v3311, %v227
        %vm3358 = vcmp.eq.s32.totalorder %v3314, %v227
        %vm3359 = vcmp.eq.s32.totalorder %v3317, %v227
        %vm3360 = vcmp.eq.s32.totalorder %v3320, %v227
        %vm3361 = vcmp.eq.s32.totalorder %v3323, %v227
        %vm3362 = vcmp.eq.s32.totalorder %v3326, %v227
        %vm3363 = vcmp.eq.s32.totalorder %v3329, %v227
        %vm3364 = vcmp.eq.s32.totalorder %v3332, %v227
        %vm3365 = vcmp.eq.s32.totalorder %v3335, %v227
        %vm3366 = vcmp.eq.s32.totalorder %v3338, %v227
        %vm3367 = vcmp.eq.s32.totalorder %v3341, %v227
        %vm3368 = vcmp.eq.s32.totalorder %v3344, %v227
        %vm3369 = vcmp.eq.s32.totalorder %v3347, %v227
        %vm3370 = vcmp.eq.s32.totalorder %v3350, %v227
        %vm3371 = vcmp.eq.s32.totalorder %v3353, %v227
        %vm3372 = vcmp.eq.s32.totalorder %v3356, %v227
        %v3373 = vsel %vm3357, 1, 0
        %v3374 = vsel %vm3358, 1, 0
        %v3375 = vsel %vm3359, 1, 0
        %v3376 = vsel %vm3360, 1, 0
        %v3377 = vsel %vm3361, 1, 0
        %v3378 = vsel %vm3362, 1, 0
        %v3379 = vsel %vm3363, 1, 0
        %v3380 = vsel %vm3364, 1, 0
        %v3381 = vsel %vm3365, 1, 0
        %v3382 = vsel %vm3366, 1, 0
        %v3383 = vsel %vm3367, 1, 0
        %v3384 = vsel %vm3368, 1, 0
        %v3385 = vsel %vm3369, 1, 0
        %v3386 = vsel %vm3370, 1, 0
        %v3387 = vsel %vm3371, 1, 0
        %v3388 = vsel %vm3372, 1, 0
        %v3389 = vcvt.s32.f32 %v3373
        %v3390 = vcvt.s32.f32 %v3374
        %v3391 = vcvt.s32.f32 %v3375
        %v3392 = vcvt.s32.f32 %v3376
        %v3393 = vcvt.s32.f32 %v3377
        %v3394 = vcvt.s32.f32 %v3378
        %v3395 = vcvt.s32.f32 %v3379
        %v3396 = vcvt.s32.f32 %v3380
        %v3397 = vcvt.s32.f32 %v3381
        %v3398 = vcvt.s32.f32 %v3382
        %v3399 = vcvt.s32.f32 %v3383
        %v3400 = vcvt.s32.f32 %v3384
        %v3401 = vcvt.s32.f32 %v3385
        %v3402 = vcvt.s32.f32 %v3386
        %v3403 = vcvt.s32.f32 %v3387
        %v3404 = vcvt.s32.f32 %v3388
        %v3405 = vadd.f32 %v3293, %v3389
        %v3406 = vadd.f32 %v3294, %v3390
        %v3407 = vadd.f32 %v3295, %v3391
        %v3408 = vadd.f32 %v3296, %v3392
        %v3409 = vadd.f32 %v3297, %v3393
        %v3410 = vadd.f32 %v3298, %v3394
        %v3411 = vadd.f32 %v3299, %v3395
        %v3412 = vadd.f32 %v3300, %v3396
        %v3413 = vadd.f32 %v3301, %v3397
        %v3414 = vadd.f32 %v3302, %v3398
        %v3415 = vadd.f32 %v3303, %v3399
        %v3416 = vadd.f32 %v3304, %v3400
        %v3417 = vadd.f32 %v3305, %v3401
        %v3418 = vadd.f32 %v3306, %v3402
        %v3419 = vadd.f32 %v3307, %v3403
        %v3420 = vadd.f32 %v3308, %v3404
        %3421 = vset.pattern.permute.xlu0 28
        %3422 = vperm.xlu0 %3421, %v233
        %v3423 = vpop.permute.xlu0 %3422
        %3424 = vset.pattern.permute.xlu0 28
        %3425 = vperm.xlu0 %3424, %v234
        %v3426 = vpop.permute.xlu0 %3425
        %3427 = vset.pattern.permute.xlu0 28
        %3428 = vperm.xlu0 %3427, %v235
        %v3429 = vpop.permute.xlu0 %3428
        %3430 = vset.pattern.permute.xlu0 28
        %3431 = vperm.xlu0 %3430, %v236
        %v3432 = vpop.permute.xlu0 %3431
        %3433 = vset.pattern.permute.xlu0 28
        %3434 = vperm.xlu0 %3433, %v237
        %v3435 = vpop.permute.xlu0 %3434
        %3436 = vset.pattern.permute.xlu0 28
        %3437 = vperm.xlu0 %3436, %v238
        %v3438 = vpop.permute.xlu0 %3437
        %3439 = vset.pattern.permute.xlu0 28
        %3440 = vperm.xlu0 %3439, %v239
        %v3441 = vpop.permute.xlu0 %3440
        %3442 = vset.pattern.permute.xlu0 28
        %3443 = vperm.xlu0 %3442, %v240
        %v3444 = vpop.permute.xlu0 %3443
        %3445 = vset.pattern.permute.xlu0 28
        %3446 = vperm.xlu0 %3445, %v241
        %v3447 = vpop.permute.xlu0 %3446
        %3448 = vset.pattern.permute.xlu0 28
        %3449 = vperm.xlu0 %3448, %v242
        %v3450 = vpop.permute.xlu0 %3449
        %3451 = vset.pattern.permute.xlu0 28
        %3452 = vperm.xlu0 %3451, %v243
        %v3453 = vpop.permute.xlu0 %3452
        %3454 = vset.pattern.permute.xlu0 28
        %3455 = vperm.xlu0 %3454, %v244
        %v3456 = vpop.permute.xlu0 %3455
        %3457 = vset.pattern.permute.xlu0 28
        %3458 = vperm.xlu0 %3457, %v245
        %v3459 = vpop.permute.xlu0 %3458
        %3460 = vset.pattern.permute.xlu0 28
        %3461 = vperm.xlu0 %3460, %v246
        %v3462 = vpop.permute.xlu0 %3461
        %3463 = vset.pattern.permute.xlu0 28
        %3464 = vperm.xlu0 %3463, %v247
        %v3465 = vpop.permute.xlu0 %3464
        %3466 = vset.pattern.permute.xlu0 28
        %3467 = vperm.xlu0 %3466, %v248
        %v3468 = vpop.permute.xlu0 %3467
        %vm3469 = vcmp.eq.s32.totalorder %v3423, %v227
        %vm3470 = vcmp.eq.s32.totalorder %v3426, %v227
        %vm3471 = vcmp.eq.s32.totalorder %v3429, %v227
        %vm3472 = vcmp.eq.s32.totalorder %v3432, %v227
        %vm3473 = vcmp.eq.s32.totalorder %v3435, %v227
        %vm3474 = vcmp.eq.s32.totalorder %v3438, %v227
        %vm3475 = vcmp.eq.s32.totalorder %v3441, %v227
        %vm3476 = vcmp.eq.s32.totalorder %v3444, %v227
        %vm3477 = vcmp.eq.s32.totalorder %v3447, %v227
        %vm3478 = vcmp.eq.s32.totalorder %v3450, %v227
        %vm3479 = vcmp.eq.s32.totalorder %v3453, %v227
        %vm3480 = vcmp.eq.s32.totalorder %v3456, %v227
        %vm3481 = vcmp.eq.s32.totalorder %v3459, %v227
        %vm3482 = vcmp.eq.s32.totalorder %v3462, %v227
        %vm3483 = vcmp.eq.s32.totalorder %v3465, %v227
        %vm3484 = vcmp.eq.s32.totalorder %v3468, %v227
        %v3485 = vsel %vm3469, 1, 0
        %v3486 = vsel %vm3470, 1, 0
        %v3487 = vsel %vm3471, 1, 0
        %v3488 = vsel %vm3472, 1, 0
        %v3489 = vsel %vm3473, 1, 0
        %v3490 = vsel %vm3474, 1, 0
        %v3491 = vsel %vm3475, 1, 0
        %v3492 = vsel %vm3476, 1, 0
        %v3493 = vsel %vm3477, 1, 0
        %v3494 = vsel %vm3478, 1, 0
        %v3495 = vsel %vm3479, 1, 0
        %v3496 = vsel %vm3480, 1, 0
        %v3497 = vsel %vm3481, 1, 0
        %v3498 = vsel %vm3482, 1, 0
        %v3499 = vsel %vm3483, 1, 0
        %v3500 = vsel %vm3484, 1, 0
        %v3501 = vcvt.s32.f32 %v3485
        %v3502 = vcvt.s32.f32 %v3486
        %v3503 = vcvt.s32.f32 %v3487
        %v3504 = vcvt.s32.f32 %v3488
        %v3505 = vcvt.s32.f32 %v3489
        %v3506 = vcvt.s32.f32 %v3490
        %v3507 = vcvt.s32.f32 %v3491
        %v3508 = vcvt.s32.f32 %v3492
        %v3509 = vcvt.s32.f32 %v3493
        %v3510 = vcvt.s32.f32 %v3494
        %v3511 = vcvt.s32.f32 %v3495
        %v3512 = vcvt.s32.f32 %v3496
        %v3513 = vcvt.s32.f32 %v3497
        %v3514 = vcvt.s32.f32 %v3498
        %v3515 = vcvt.s32.f32 %v3499
        %v3516 = vcvt.s32.f32 %v3500
        %v3517 = vadd.f32 %v3405, %v3501
        %v3518 = vadd.f32 %v3406, %v3502
        %v3519 = vadd.f32 %v3407, %v3503
        %v3520 = vadd.f32 %v3408, %v3504
        %v3521 = vadd.f32 %v3409, %v3505
        %v3522 = vadd.f32 %v3410, %v3506
        %v3523 = vadd.f32 %v3411, %v3507
        %v3524 = vadd.f32 %v3412, %v3508
        %v3525 = vadd.f32 %v3413, %v3509
        %v3526 = vadd.f32 %v3414, %v3510
        %v3527 = vadd.f32 %v3415, %v3511
        %v3528 = vadd.f32 %v3416, %v3512
        %v3529 = vadd.f32 %v3417, %v3513
        %v3530 = vadd.f32 %v3418, %v3514
        %v3531 = vadd.f32 %v3419, %v3515
        %v3532 = vadd.f32 %v3420, %v3516
        %3533 = vset.pattern.permute.xlu0 29
        %3534 = vperm.xlu0 %3533, %v233
        %v3535 = vpop.permute.xlu0 %3534
        %3536 = vset.pattern.permute.xlu0 29
        %3537 = vperm.xlu0 %3536, %v234
        %v3538 = vpop.permute.xlu0 %3537
        %3539 = vset.pattern.permute.xlu0 29
        %3540 = vperm.xlu0 %3539, %v235
        %v3541 = vpop.permute.xlu0 %3540
        %3542 = vset.pattern.permute.xlu0 29
        %3543 = vperm.xlu0 %3542, %v236
        %v3544 = vpop.permute.xlu0 %3543
        %3545 = vset.pattern.permute.xlu0 29
        %3546 = vperm.xlu0 %3545, %v237
        %v3547 = vpop.permute.xlu0 %3546
        %3548 = vset.pattern.permute.xlu0 29
        %3549 = vperm.xlu0 %3548, %v238
        %v3550 = vpop.permute.xlu0 %3549
        %3551 = vset.pattern.permute.xlu0 29
        %3552 = vperm.xlu0 %3551, %v239
        %v3553 = vpop.permute.xlu0 %3552
        %3554 = vset.pattern.permute.xlu0 29
        %3555 = vperm.xlu0 %3554, %v240
        %v3556 = vpop.permute.xlu0 %3555
        %3557 = vset.pattern.permute.xlu0 29
        %3558 = vperm.xlu0 %3557, %v241
        %v3559 = vpop.permute.xlu0 %3558
        %3560 = vset.pattern.permute.xlu0 29
        %3561 = vperm.xlu0 %3560, %v242
        %v3562 = vpop.permute.xlu0 %3561
        %3563 = vset.pattern.permute.xlu0 29
        %3564 = vperm.xlu0 %3563, %v243
        %v3565 = vpop.permute.xlu0 %3564
        %3566 = vset.pattern.permute.xlu0 29
        %3567 = vperm.xlu0 %3566, %v244
        %v3568 = vpop.permute.xlu0 %3567
        %3569 = vset.pattern.permute.xlu0 29
        %3570 = vperm.xlu0 %3569, %v245
        %v3571 = vpop.permute.xlu0 %3570
        %3572 = vset.pattern.permute.xlu0 29
        %3573 = vperm.xlu0 %3572, %v246
        %v3574 = vpop.permute.xlu0 %3573
        %3575 = vset.pattern.permute.xlu0 29
        %3576 = vperm.xlu0 %3575, %v247
        %v3577 = vpop.permute.xlu0 %3576
        %3578 = vset.pattern.permute.xlu0 29
        %3579 = vperm.xlu0 %3578, %v248
        %v3580 = vpop.permute.xlu0 %3579
        %vm3581 = vcmp.eq.s32.totalorder %v3535, %v227
        %vm3582 = vcmp.eq.s32.totalorder %v3538, %v227
        %vm3583 = vcmp.eq.s32.totalorder %v3541, %v227
        %vm3584 = vcmp.eq.s32.totalorder %v3544, %v227
        %vm3585 = vcmp.eq.s32.totalorder %v3547, %v227
        %vm3586 = vcmp.eq.s32.totalorder %v3550, %v227
        %vm3587 = vcmp.eq.s32.totalorder %v3553, %v227
        %vm3588 = vcmp.eq.s32.totalorder %v3556, %v227
        %vm3589 = vcmp.eq.s32.totalorder %v3559, %v227
        %vm3590 = vcmp.eq.s32.totalorder %v3562, %v227
        %vm3591 = vcmp.eq.s32.totalorder %v3565, %v227
        %vm3592 = vcmp.eq.s32.totalorder %v3568, %v227
        %vm3593 = vcmp.eq.s32.totalorder %v3571, %v227
        %vm3594 = vcmp.eq.s32.totalorder %v3574, %v227
        %vm3595 = vcmp.eq.s32.totalorder %v3577, %v227
        %vm3596 = vcmp.eq.s32.totalorder %v3580, %v227
        %v3597 = vsel %vm3581, 1, 0
        %v3598 = vsel %vm3582, 1, 0
        %v3599 = vsel %vm3583, 1, 0
        %v3600 = vsel %vm3584, 1, 0
        %v3601 = vsel %vm3585, 1, 0
        %v3602 = vsel %vm3586, 1, 0
        %v3603 = vsel %vm3587, 1, 0
        %v3604 = vsel %vm3588, 1, 0
        %v3605 = vsel %vm3589, 1, 0
        %v3606 = vsel %vm3590, 1, 0
        %v3607 = vsel %vm3591, 1, 0
        %v3608 = vsel %vm3592, 1, 0
        %v3609 = vsel %vm3593, 1, 0
        %v3610 = vsel %vm3594, 1, 0
        %v3611 = vsel %vm3595, 1, 0
        %v3612 = vsel %vm3596, 1, 0
        %v3613 = vcvt.s32.f32 %v3597
        %v3614 = vcvt.s32.f32 %v3598
        %v3615 = vcvt.s32.f32 %v3599
        %v3616 = vcvt.s32.f32 %v3600
        %v3617 = vcvt.s32.f32 %v3601
        %v3618 = vcvt.s32.f32 %v3602
        %v3619 = vcvt.s32.f32 %v3603
        %v3620 = vcvt.s32.f32 %v3604
        %v3621 = vcvt.s32.f32 %v3605
        %v3622 = vcvt.s32.f32 %v3606
        %v3623 = vcvt.s32.f32 %v3607
        %v3624 = vcvt.s32.f32 %v3608
        %v3625 = vcvt.s32.f32 %v3609
        %v3626 = vcvt.s32.f32 %v3610
        %v3627 = vcvt.s32.f32 %v3611
        %v3628 = vcvt.s32.f32 %v3612
        %v3629 = vadd.f32 %v3517, %v3613
        %v3630 = vadd.f32 %v3518, %v3614
        %v3631 = vadd.f32 %v3519, %v3615
        %v3632 = vadd.f32 %v3520, %v3616
        %v3633 = vadd.f32 %v3521, %v3617
        %v3634 = vadd.f32 %v3522, %v3618
        %v3635 = vadd.f32 %v3523, %v3619
        %v3636 = vadd.f32 %v3524, %v3620
        %v3637 = vadd.f32 %v3525, %v3621
        %v3638 = vadd.f32 %v3526, %v3622
        %v3639 = vadd.f32 %v3527, %v3623
        %v3640 = vadd.f32 %v3528, %v3624
        %v3641 = vadd.f32 %v3529, %v3625
        %v3642 = vadd.f32 %v3530, %v3626
        %v3643 = vadd.f32 %v3531, %v3627
        %v3644 = vadd.f32 %v3532, %v3628
        %3645 = vset.pattern.permute.xlu0 30
        %3646 = vperm.xlu0 %3645, %v233
        %v3647 = vpop.permute.xlu0 %3646
        %3648 = vset.pattern.permute.xlu0 30
        %3649 = vperm.xlu0 %3648, %v234
        %v3650 = vpop.permute.xlu0 %3649
        %3651 = vset.pattern.permute.xlu0 30
        %3652 = vperm.xlu0 %3651, %v235
        %v3653 = vpop.permute.xlu0 %3652
        %3654 = vset.pattern.permute.xlu0 30
        %3655 = vperm.xlu0 %3654, %v236
        %v3656 = vpop.permute.xlu0 %3655
        %3657 = vset.pattern.permute.xlu0 30
        %3658 = vperm.xlu0 %3657, %v237
        %v3659 = vpop.permute.xlu0 %3658
        %3660 = vset.pattern.permute.xlu0 30
        %3661 = vperm.xlu0 %3660, %v238
        %v3662 = vpop.permute.xlu0 %3661
        %3663 = vset.pattern.permute.xlu0 30
        %3664 = vperm.xlu0 %3663, %v239
        %v3665 = vpop.permute.xlu0 %3664
        %3666 = vset.pattern.permute.xlu0 30
        %3667 = vperm.xlu0 %3666, %v240
        %v3668 = vpop.permute.xlu0 %3667
        %3669 = vset.pattern.permute.xlu0 30
        %3670 = vperm.xlu0 %3669, %v241
        %v3671 = vpop.permute.xlu0 %3670
        %3672 = vset.pattern.permute.xlu0 30
        %3673 = vperm.xlu0 %3672, %v242
        %v3674 = vpop.permute.xlu0 %3673
        %3675 = vset.pattern.permute.xlu0 30
        %3676 = vperm.xlu0 %3675, %v243
        %v3677 = vpop.permute.xlu0 %3676
        %3678 = vset.pattern.permute.xlu0 30
        %3679 = vperm.xlu0 %3678, %v244
        %v3680 = vpop.permute.xlu0 %3679
        %3681 = vset.pattern.permute.xlu0 30
        %3682 = vperm.xlu0 %3681, %v245
        %v3683 = vpop.permute.xlu0 %3682
        %3684 = vset.pattern.permute.xlu0 30
        %3685 = vperm.xlu0 %3684, %v246
        %v3686 = vpop.permute.xlu0 %3685
        %3687 = vset.pattern.permute.xlu0 30
        %3688 = vperm.xlu0 %3687, %v247
        %v3689 = vpop.permute.xlu0 %3688
        %3690 = vset.pattern.permute.xlu0 30
        %3691 = vperm.xlu0 %3690, %v248
        %v3692 = vpop.permute.xlu0 %3691
        %vm3693 = vcmp.eq.s32.totalorder %v3647, %v227
        %vm3694 = vcmp.eq.s32.totalorder %v3650, %v227
        %vm3695 = vcmp.eq.s32.totalorder %v3653, %v227
        %vm3696 = vcmp.eq.s32.totalorder %v3656, %v227
        %vm3697 = vcmp.eq.s32.totalorder %v3659, %v227
        %vm3698 = vcmp.eq.s32.totalorder %v3662, %v227
        %vm3699 = vcmp.eq.s32.totalorder %v3665, %v227
        %vm3700 = vcmp.eq.s32.totalorder %v3668, %v227
        %vm3701 = vcmp.eq.s32.totalorder %v3671, %v227
        %vm3702 = vcmp.eq.s32.totalorder %v3674, %v227
        %vm3703 = vcmp.eq.s32.totalorder %v3677, %v227
        %vm3704 = vcmp.eq.s32.totalorder %v3680, %v227
        %vm3705 = vcmp.eq.s32.totalorder %v3683, %v227
        %vm3706 = vcmp.eq.s32.totalorder %v3686, %v227
        %vm3707 = vcmp.eq.s32.totalorder %v3689, %v227
        %vm3708 = vcmp.eq.s32.totalorder %v3692, %v227
        %v3709 = vsel %vm3693, 1, 0
        %v3710 = vsel %vm3694, 1, 0
        %v3711 = vsel %vm3695, 1, 0
        %v3712 = vsel %vm3696, 1, 0
        %v3713 = vsel %vm3697, 1, 0
        %v3714 = vsel %vm3698, 1, 0
        %v3715 = vsel %vm3699, 1, 0
        %v3716 = vsel %vm3700, 1, 0
        %v3717 = vsel %vm3701, 1, 0
        %v3718 = vsel %vm3702, 1, 0
        %v3719 = vsel %vm3703, 1, 0
        %v3720 = vsel %vm3704, 1, 0
        %v3721 = vsel %vm3705, 1, 0
        %v3722 = vsel %vm3706, 1, 0
        %v3723 = vsel %vm3707, 1, 0
        %v3724 = vsel %vm3708, 1, 0
        %v3725 = vcvt.s32.f32 %v3709
        %v3726 = vcvt.s32.f32 %v3710
        %v3727 = vcvt.s32.f32 %v3711
        %v3728 = vcvt.s32.f32 %v3712
        %v3729 = vcvt.s32.f32 %v3713
        %v3730 = vcvt.s32.f32 %v3714
        %v3731 = vcvt.s32.f32 %v3715
        %v3732 = vcvt.s32.f32 %v3716
        %v3733 = vcvt.s32.f32 %v3717
        %v3734 = vcvt.s32.f32 %v3718
        %v3735 = vcvt.s32.f32 %v3719
        %v3736 = vcvt.s32.f32 %v3720
        %v3737 = vcvt.s32.f32 %v3721
        %v3738 = vcvt.s32.f32 %v3722
        %v3739 = vcvt.s32.f32 %v3723
        %v3740 = vcvt.s32.f32 %v3724
        %v3741 = vadd.f32 %v3629, %v3725
        %v3742 = vadd.f32 %v3630, %v3726
        %v3743 = vadd.f32 %v3631, %v3727
        %v3744 = vadd.f32 %v3632, %v3728
        %v3745 = vadd.f32 %v3633, %v3729
        %v3746 = vadd.f32 %v3634, %v3730
        %v3747 = vadd.f32 %v3635, %v3731
        %v3748 = vadd.f32 %v3636, %v3732
        %v3749 = vadd.f32 %v3637, %v3733
        %v3750 = vadd.f32 %v3638, %v3734
        %v3751 = vadd.f32 %v3639, %v3735
        %v3752 = vadd.f32 %v3640, %v3736
        %v3753 = vadd.f32 %v3641, %v3737
        %v3754 = vadd.f32 %v3642, %v3738
        %v3755 = vadd.f32 %v3643, %v3739
        %v3756 = vadd.f32 %v3644, %v3740
        %3757 = vset.pattern.permute.xlu0 31
        %3758 = vperm.xlu0 %3757, %v233
        %v3759 = vpop.permute.xlu0 %3758
        %3760 = vset.pattern.permute.xlu0 31
        %3761 = vperm.xlu0 %3760, %v234
        %v3762 = vpop.permute.xlu0 %3761
        %3763 = vset.pattern.permute.xlu0 31
        %3764 = vperm.xlu0 %3763, %v235
        %v3765 = vpop.permute.xlu0 %3764
        %3766 = vset.pattern.permute.xlu0 31
        %3767 = vperm.xlu0 %3766, %v236
        %v3768 = vpop.permute.xlu0 %3767
        %3769 = vset.pattern.permute.xlu0 31
        %3770 = vperm.xlu0 %3769, %v237
        %v3771 = vpop.permute.xlu0 %3770
        %3772 = vset.pattern.permute.xlu0 31
        %3773 = vperm.xlu0 %3772, %v238
        %v3774 = vpop.permute.xlu0 %3773
        %3775 = vset.pattern.permute.xlu0 31
        %3776 = vperm.xlu0 %3775, %v239
        %v3777 = vpop.permute.xlu0 %3776
        %3778 = vset.pattern.permute.xlu0 31
        %3779 = vperm.xlu0 %3778, %v240
        %v3780 = vpop.permute.xlu0 %3779
        %3781 = vset.pattern.permute.xlu0 31
        %3782 = vperm.xlu0 %3781, %v241
        %v3783 = vpop.permute.xlu0 %3782
        %3784 = vset.pattern.permute.xlu0 31
        %3785 = vperm.xlu0 %3784, %v242
        %v3786 = vpop.permute.xlu0 %3785
        %3787 = vset.pattern.permute.xlu0 31
        %3788 = vperm.xlu0 %3787, %v243
        %v3789 = vpop.permute.xlu0 %3788
        %3790 = vset.pattern.permute.xlu0 31
        %3791 = vperm.xlu0 %3790, %v244
        %v3792 = vpop.permute.xlu0 %3791
        %3793 = vset.pattern.permute.xlu0 31
        %3794 = vperm.xlu0 %3793, %v245
        %v3795 = vpop.permute.xlu0 %3794
        %3796 = vset.pattern.permute.xlu0 31
        %3797 = vperm.xlu0 %3796, %v246
        %v3798 = vpop.permute.xlu0 %3797
        %3799 = vset.pattern.permute.xlu0 31
        %3800 = vperm.xlu0 %3799, %v247
        %v3801 = vpop.permute.xlu0 %3800
        %3802 = vset.pattern.permute.xlu0 31
        %3803 = vperm.xlu0 %3802, %v248
        %v3804 = vpop.permute.xlu0 %3803
        %vm3805 = vcmp.eq.s32.totalorder %v3759, %v227
        %vm3806 = vcmp.eq.s32.totalorder %v3762, %v227
        %vm3807 = vcmp.eq.s32.totalorder %v3765, %v227
        %vm3808 = vcmp.eq.s32.totalorder %v3768, %v227
        %vm3809 = vcmp.eq.s32.totalorder %v3771, %v227
        %vm3810 = vcmp.eq.s32.totalorder %v3774, %v227
        %vm3811 = vcmp.eq.s32.totalorder %v3777, %v227
        %vm3812 = vcmp.eq.s32.totalorder %v3780, %v227
        %vm3813 = vcmp.eq.s32.totalorder %v3783, %v227
        %vm3814 = vcmp.eq.s32.totalorder %v3786, %v227
        %vm3815 = vcmp.eq.s32.totalorder %v3789, %v227
        %vm3816 = vcmp.eq.s32.totalorder %v3792, %v227
        %vm3817 = vcmp.eq.s32.totalorder %v3795, %v227
        %vm3818 = vcmp.eq.s32.totalorder %v3798, %v227
        %vm3819 = vcmp.eq.s32.totalorder %v3801, %v227
        %vm3820 = vcmp.eq.s32.totalorder %v3804, %v227
        %v3821 = vsel %vm3805, 1, 0
        %v3822 = vsel %vm3806, 1, 0
        %v3823 = vsel %vm3807, 1, 0
        %v3824 = vsel %vm3808, 1, 0
        %v3825 = vsel %vm3809, 1, 0
        %v3826 = vsel %vm3810, 1, 0
        %v3827 = vsel %vm3811, 1, 0
        %v3828 = vsel %vm3812, 1, 0
        %v3829 = vsel %vm3813, 1, 0
        %v3830 = vsel %vm3814, 1, 0
        %v3831 = vsel %vm3815, 1, 0
        %v3832 = vsel %vm3816, 1, 0
        %v3833 = vsel %vm3817, 1, 0
        %v3834 = vsel %vm3818, 1, 0
        %v3835 = vsel %vm3819, 1, 0
        %v3836 = vsel %vm3820, 1, 0
        %v3837 = vcvt.s32.f32 %v3821
        %v3838 = vcvt.s32.f32 %v3822
        %v3839 = vcvt.s32.f32 %v3823
        %v3840 = vcvt.s32.f32 %v3824
        %v3841 = vcvt.s32.f32 %v3825
        %v3842 = vcvt.s32.f32 %v3826
        %v3843 = vcvt.s32.f32 %v3827
        %v3844 = vcvt.s32.f32 %v3828
        %v3845 = vcvt.s32.f32 %v3829
        %v3846 = vcvt.s32.f32 %v3830
        %v3847 = vcvt.s32.f32 %v3831
        %v3848 = vcvt.s32.f32 %v3832
        %v3849 = vcvt.s32.f32 %v3833
        %v3850 = vcvt.s32.f32 %v3834
        %v3851 = vcvt.s32.f32 %v3835
        %v3852 = vcvt.s32.f32 %v3836
        %v3853 = vadd.f32 %v3741, %v3837
        %v3854 = vadd.f32 %v3742, %v3838
        %v3855 = vadd.f32 %v3743, %v3839
        %v3856 = vadd.f32 %v3744, %v3840
        %v3857 = vadd.f32 %v3745, %v3841
        %v3858 = vadd.f32 %v3746, %v3842
        %v3859 = vadd.f32 %v3747, %v3843
        %v3860 = vadd.f32 %v3748, %v3844
        %v3861 = vadd.f32 %v3749, %v3845
        %v3862 = vadd.f32 %v3750, %v3846
        %v3863 = vadd.f32 %v3751, %v3847
        %v3864 = vadd.f32 %v3752, %v3848
        %v3865 = vadd.f32 %v3753, %v3849
        %v3866 = vadd.f32 %v3754, %v3850
        %v3867 = vadd.f32 %v3755, %v3851
        %v3868 = vadd.f32 %v3756, %v3852
        %3869 = vset.pattern.permute.xlu0 32
        %3870 = vperm.xlu0 %3869, %v233
        %v3871 = vpop.permute.xlu0 %3870
        %3872 = vset.pattern.permute.xlu0 32
        %3873 = vperm.xlu0 %3872, %v234
        %v3874 = vpop.permute.xlu0 %3873
        %3875 = vset.pattern.permute.xlu0 32
        %3876 = vperm.xlu0 %3875, %v235
        %v3877 = vpop.permute.xlu0 %3876
        %3878 = vset.pattern.permute.xlu0 32
        %3879 = vperm.xlu0 %3878, %v236
        %v3880 = vpop.permute.xlu0 %3879
        %3881 = vset.pattern.permute.xlu0 32
        %3882 = vperm.xlu0 %3881, %v237
        %v3883 = vpop.permute.xlu0 %3882
        %3884 = vset.pattern.permute.xlu0 32
        %3885 = vperm.xlu0 %3884, %v238
        %v3886 = vpop.permute.xlu0 %3885
        %3887 = vset.pattern.permute.xlu0 32
        %3888 = vperm.xlu0 %3887, %v239
        %v3889 = vpop.permute.xlu0 %3888
        %3890 = vset.pattern.permute.xlu0 32
        %3891 = vperm.xlu0 %3890, %v240
        %v3892 = vpop.permute.xlu0 %3891
        %3893 = vset.pattern.permute.xlu0 32
        %3894 = vperm.xlu0 %3893, %v241
        %v3895 = vpop.permute.xlu0 %3894
        %3896 = vset.pattern.permute.xlu0 32
        %3897 = vperm.xlu0 %3896, %v242
        %v3898 = vpop.permute.xlu0 %3897
        %3899 = vset.pattern.permute.xlu0 32
        %3900 = vperm.xlu0 %3899, %v243
        %v3901 = vpop.permute.xlu0 %3900
        %3902 = vset.pattern.permute.xlu0 32
        %3903 = vperm.xlu0 %3902, %v244
        %v3904 = vpop.permute.xlu0 %3903
        %3905 = vset.pattern.permute.xlu0 32
        %3906 = vperm.xlu0 %3905, %v245
        %v3907 = vpop.permute.xlu0 %3906
        %3908 = vset.pattern.permute.xlu0 32
        %3909 = vperm.xlu0 %3908, %v246
        %v3910 = vpop.permute.xlu0 %3909
        %3911 = vset.pattern.permute.xlu0 32
        %3912 = vperm.xlu0 %3911, %v247
        %v3913 = vpop.permute.xlu0 %3912
        %3914 = vset.pattern.permute.xlu0 32
        %3915 = vperm.xlu0 %3914, %v248
        %v3916 = vpop.permute.xlu0 %3915
        %vm3917 = vcmp.eq.s32.totalorder %v3871, %v227
        %vm3918 = vcmp.eq.s32.totalorder %v3874, %v227
        %vm3919 = vcmp.eq.s32.totalorder %v3877, %v227
        %vm3920 = vcmp.eq.s32.totalorder %v3880, %v227
        %vm3921 = vcmp.eq.s32.totalorder %v3883, %v227
        %vm3922 = vcmp.eq.s32.totalorder %v3886, %v227
        %vm3923 = vcmp.eq.s32.totalorder %v3889, %v227
        %vm3924 = vcmp.eq.s32.totalorder %v3892, %v227
        %vm3925 = vcmp.eq.s32.totalorder %v3895, %v227
        %vm3926 = vcmp.eq.s32.totalorder %v3898, %v227
        %vm3927 = vcmp.eq.s32.totalorder %v3901, %v227
        %vm3928 = vcmp.eq.s32.totalorder %v3904, %v227
        %vm3929 = vcmp.eq.s32.totalorder %v3907, %v227
        %vm3930 = vcmp.eq.s32.totalorder %v3910, %v227
        %vm3931 = vcmp.eq.s32.totalorder %v3913, %v227
        %vm3932 = vcmp.eq.s32.totalorder %v3916, %v227
        %v3933 = vsel %vm3917, 1, 0
        %v3934 = vsel %vm3918, 1, 0
        %v3935 = vsel %vm3919, 1, 0
        %v3936 = vsel %vm3920, 1, 0
        %v3937 = vsel %vm3921, 1, 0
        %v3938 = vsel %vm3922, 1, 0
        %v3939 = vsel %vm3923, 1, 0
        %v3940 = vsel %vm3924, 1, 0
        %v3941 = vsel %vm3925, 1, 0
        %v3942 = vsel %vm3926, 1, 0
        %v3943 = vsel %vm3927, 1, 0
        %v3944 = vsel %vm3928, 1, 0
        %v3945 = vsel %vm3929, 1, 0
        %v3946 = vsel %vm3930, 1, 0
        %v3947 = vsel %vm3931, 1, 0
        %v3948 = vsel %vm3932, 1, 0
        %v3949 = vcvt.s32.f32 %v3933
        %v3950 = vcvt.s32.f32 %v3934
        %v3951 = vcvt.s32.f32 %v3935
        %v3952 = vcvt.s32.f32 %v3936
        %v3953 = vcvt.s32.f32 %v3937
        %v3954 = vcvt.s32.f32 %v3938
        %v3955 = vcvt.s32.f32 %v3939
        %v3956 = vcvt.s32.f32 %v3940
        %v3957 = vcvt.s32.f32 %v3941
        %v3958 = vcvt.s32.f32 %v3942
        %v3959 = vcvt.s32.f32 %v3943
        %v3960 = vcvt.s32.f32 %v3944
        %v3961 = vcvt.s32.f32 %v3945
        %v3962 = vcvt.s32.f32 %v3946
        %v3963 = vcvt.s32.f32 %v3947
        %v3964 = vcvt.s32.f32 %v3948
        %v3965 = vadd.f32 %v3853, %v3949
        %v3966 = vadd.f32 %v3854, %v3950
        %v3967 = vadd.f32 %v3855, %v3951
        %v3968 = vadd.f32 %v3856, %v3952
        %v3969 = vadd.f32 %v3857, %v3953
        %v3970 = vadd.f32 %v3858, %v3954
        %v3971 = vadd.f32 %v3859, %v3955
        %v3972 = vadd.f32 %v3860, %v3956
        %v3973 = vadd.f32 %v3861, %v3957
        %v3974 = vadd.f32 %v3862, %v3958
        %v3975 = vadd.f32 %v3863, %v3959
        %v3976 = vadd.f32 %v3864, %v3960
        %v3977 = vadd.f32 %v3865, %v3961
        %v3978 = vadd.f32 %v3866, %v3962
        %v3979 = vadd.f32 %v3867, %v3963
        %v3980 = vadd.f32 %v3868, %v3964
        %v3981 = vld [vmem:[%s2] sm:$0xff]
        %v3982 = vld [vmem:[%s2 + $0x8] sm:$0xff]
        %v3983 = vld [vmem:[%s2 + $0x10] sm:$0xff]
        %v3984 = vld [vmem:[%s2 + $0x18] sm:$0xff]
        %v3985 = vld [vmem:[%s2 + $0x20] sm:$0xff]
        %v3986 = vld [vmem:[%s2 + $0x28] sm:$0xff]
        %v3987 = vld [vmem:[%s2 + $0x30] sm:$0xff]
        %v3988 = vld [vmem:[%s2 + $0x38] sm:$0xff]
        %v3989 = vld [vmem:[%s2 + $0x40] sm:$0xff]
        %v3990 = vld [vmem:[%s2 + $0x48] sm:$0xff]
        %v3991 = vld [vmem:[%s2 + $0x50] sm:$0xff]
        %v3992 = vld [vmem:[%s2 + $0x58] sm:$0xff]
        %v3993 = vld [vmem:[%s2 + $0x60] sm:$0xff]
        %v3994 = vld [vmem:[%s2 + $0x68] sm:$0xff]
        %v3995 = vld [vmem:[%s2 + $0x70] sm:$0xff]
        %v3996 = vld [vmem:[%s2 + $0x78] sm:$0xff]
        %3997 = vmatprep.subr.mxu0 0.0
        %3998 = vmatpush1.msra.mxu0 %v3981
        %3999 = vmatprep.subr.mxu0 0.0
        %4000 = vmatpush1.msra.mxu0 %v3982
        %4001 = vmatprep.subr.mxu0 0.0
        %4002 = vmatpush1.msra.mxu0 %v3983
        %4003 = vmatprep.subr.mxu0 0.0
        %4004 = vmatpush1.msra.mxu0 %v3984
        %4005 = vmatprep.subr.mxu0 0.0
        %4006 = vmatpush1.msra.mxu0 %v3985
        %4007 = vmatprep.subr.mxu0 0.0
        %4008 = vmatpush1.msra.mxu0 %v3986
        %4009 = vmatprep.subr.mxu0 0.0
        %4010 = vmatpush1.msra.mxu0 %v3987
        %4011 = vmatprep.subr.mxu0 0.0
        %4012 = vmatpush1.msra.mxu0 %v3988
        %4013 = vmatprep.subr.mxu0 0.0
        %4014 = vmatpush1.msra.mxu0 %v3989
        %4015 = vmatprep.subr.mxu0 0.0
        %4016 = vmatpush1.msra.mxu0 %v3990
        %4017 = vmatprep.subr.mxu0 0.0
        %4018 = vmatpush1.msra.mxu0 %v3991
        %4019 = vmatprep.subr.mxu0 0.0
        %4020 = vmatpush1.msra.mxu0 %v3992
        %4021 = vmatprep.subr.mxu0 0.0
        %4022 = vmatpush1.msra.mxu0 %v3993
        %4023 = vmatprep.subr.mxu0 0.0
        %4024 = vmatpush1.msra.mxu0 %v3994
        %4025 = vmatprep.subr.mxu0 0.0
        %4026 = vmatpush1.msra.mxu0 %v3995
        %4027 = vmatprep.subr.mxu0 0.0
        %4028 = vmatpush1.msra.mxu0 %v3996
        %4029 = vmatprep.subr.mxu0 0.0
        %4030 = vmatpush1.msra.mxu0 0.0
        %4031 = vmatprep.subr.mxu0 0.0
        %4032 = vmatpush1.msra.mxu0 0.0
        %4033 = vmatprep.subr.mxu0 0.0
        %4034 = vmatpush1.msra.mxu0 0.0
        %4035 = vmatprep.subr.mxu0 0.0
        %4036 = vmatpush1.msra.mxu0 0.0
        %4037 = vmatprep.subr.mxu0 0.0
        %4038 = vmatpush1.msra.mxu0 0.0
        %4039 = vmatprep.subr.mxu0 0.0
        %4040 = vmatpush1.msra.mxu0 0.0
        %4041 = vmatprep.subr.mxu0 0.0
        %4042 = vmatpush1.msra.mxu0 0.0
        %4043 = vmatprep.subr.mxu0 0.0
        %4044 = vmatpush1.msra.mxu0 0.0
        %4045 = vmatprep.subr.mxu0 0.0
        %4046 = vmatpush1.msra.mxu0 0.0
        %4047 = vmatprep.subr.mxu0 0.0
        %4048 = vmatpush1.msra.mxu0 0.0
        %4049 = vmatprep.subr.mxu0 0.0
        %4050 = vmatpush1.msra.mxu0 0.0
        %4051 = vmatprep.subr.mxu0 0.0
        %4052 = vmatpush1.msra.mxu0 0.0
        %4053 = vmatprep.subr.mxu0 0.0
        %4054 = vmatpush1.msra.mxu0 0.0
        %4055 = vmatprep.subr.mxu0 0.0
        %4056 = vmatpush1.msra.mxu0 0.0
        %4057 = vmatprep.subr.mxu0 0.0
        %4058 = vmatpush1.msra.mxu0 0.0
        %4059 = vmatprep.subr.mxu0 0.0
        %4060 = vmatpush1.msra.mxu0 0.0
        %4061 = vmatprep.mubr.f32.mxu0 0.0
        %4062 = vmatmul.mubr.f32.gmra.mrb[0].mxu0 %v3965
        %v4063 = vpop.f32.mrb[0].mxu0
        %v4064 = vadd.f32 0.0, %v4063
        %v4065 = vpop.f32.mrb[0].mxu0
        %4066 = vmatprep.mubr.f32.mxu0 0.0
        %4067 = vmatmul.mubr.f32.gmra.mrb[0].mxu0 %v3966
        %v4068 = vpop.f32.mrb[0].mxu0
        %v4069 = vadd.f32 0.0, %v4068
        %v4070 = vpop.f32.mrb[0].mxu0
        %4071 = vmatprep.mubr.f32.mxu0 0.0
        %4072 = vmatmul.mubr.f32.gmra.mrb[0].mxu0 %v3967
        %v4073 = vpop.f32.mrb[0].mxu0
        %v4074 = vadd.f32 0.0, %v4073
        %v4075 = vpop.f32.mrb[0].mxu0
        %4076 = vmatprep.mubr.f32.mxu0 0.0
        %4077 = vmatmul.mubr.f32.gmra.mrb[0].mxu0 %v3968
        %v4078 = vpop.f32.mrb[0].mxu0
        %v4079 = vadd.f32 0.0, %v4078
        %v4080 = vpop.f32.mrb[0].mxu0
        %4081 = vmatprep.mubr.f32.mxu0 0.0
        %4082 = vmatmul.mubr.f32.gmra.mrb[0].mxu0 %v3969
        %v4083 = vpop.f32.mrb[0].mxu0
        %v4084 = vadd.f32 0.0, %v4083
        %v4085 = vpop.f32.mrb[0].mxu0
        %4086 = vmatprep.mubr.f32.mxu0 0.0
        %4087 = vmatmul.mubr.f32.gmra.mrb[0].mxu0 %v3970
        %v4088 = vpop.f32.mrb[0].mxu0
        %v4089 = vadd.f32 0.0, %v4088
        %v4090 = vpop.f32.mrb[0].mxu0
        %4091 = vmatprep.mubr.f32.mxu0 0.0
        %4092 = vmatmul.mubr.f32.gmra.mrb[0].mxu0 %v3971
        %v4093 = vpop.f32.mrb[0].mxu0
        %v4094 = vadd.f32 0.0, %v4093
        %v4095 = vpop.f32.mrb[0].mxu0
        %4096 = vmatprep.mubr.f32.mxu0 0.0
        %4097 = vmatmul.mubr.f32.gmra.mrb[0].mxu0 %v3972
        %v4098 = vpop.f32.mrb[0].mxu0
        %v4099 = vadd.f32 0.0, %v4098
        %v4100 = vpop.f32.mrb[0].mxu0
        %4101 = vmatprep.mubr.f32.mxu0 0.0
        %4102 = vmatmul.mubr.f32.gmra.mrb[0].mxu0 %v3973
        %v4103 = vpop.f32.mrb[0].mxu0
        %v4104 = vadd.f32 0.0, %v4103
        %v4105 = vpop.f32.mrb[0].mxu0
        %4106 = vmatprep.mubr.f32.mxu0 0.0
        %4107 = vmatmul.mubr.f32.gmra.mrb[0].mxu0 %v3974
        %v4108 = vpop.f32.mrb[0].mxu0
        %v4109 = vadd.f32 0.0, %v4108
        %v4110 = vpop.f32.mrb[0].mxu0
        %4111 = vmatprep.mubr.f32.mxu0 0.0
        %4112 = vmatmul.mubr.f32.gmra.mrb[0].mxu0 %v3975
        %v4113 = vpop.f32.mrb[0].mxu0
        %v4114 = vadd.f32 0.0, %v4113
        %v4115 = vpop.f32.mrb[0].mxu0
        %4116 = vmatprep.mubr.f32.mxu0 0.0
        %4117 = vmatmul.mubr.f32.gmra.mrb[0].mxu0 %v3976
        %v4118 = vpop.f32.mrb[0].mxu0
        %v4119 = vadd.f32 0.0, %v4118
        %v4120 = vpop.f32.mrb[0].mxu0
        %4121 = vmatprep.mubr.f32.mxu0 0.0
        %4122 = vmatmul.mubr.f32.gmra.mrb[0].mxu0 %v3977
        %v4123 = vpop.f32.mrb[0].mxu0
        %v4124 = vadd.f32 0.0, %v4123
        %v4125 = vpop.f32.mrb[0].mxu0
        %4126 = vmatprep.mubr.f32.mxu0 0.0
        %4127 = vmatmul.mubr.f32.gmra.mrb[0].mxu0 %v3978
        %v4128 = vpop.f32.mrb[0].mxu0
        %v4129 = vadd.f32 0.0, %v4128
        %v4130 = vpop.f32.mrb[0].mxu0
        %4131 = vmatprep.mubr.f32.mxu0 0.0
        %4132 = vmatmul.mubr.f32.gmra.mrb[0].mxu0 %v3979
        %v4133 = vpop.f32.mrb[0].mxu0
        %v4134 = vadd.f32 0.0, %v4133
        %v4135 = vpop.f32.mrb[0].mxu0
        %4136 = vmatprep.mubr.f32.mxu0 0.0
        %4137 = vmatmul.mubr.f32.gmra.mrb[0].mxu0 %v3980
        %v4138 = vpop.f32.mrb[0].mxu0
        %v4139 = vadd.f32 0.0, %v4138
        %v4140 = vpop.f32.mrb[0].mxu0
        %4141 = vdwg.mxu0
        %vm4142 = vcmask 211968
        %v4144 = vsel %vm4142, %v586, 0
        %v4147 = vsel %vm4142, %v588, 0
        %v4150 = vsel %vm4142, %v590, 0
        %v4153 = vsel %vm4142, %v592, 0
        %v4156 = vsel %vm4142, %v594, 0
        %v4159 = vsel %vm4142, %v596, 0
        %v4162 = vsel %vm4142, %v598, 0
        %v4165 = vsel %vm4142, %v600, 0
        %v4168 = vsel %vm4142, %v602, 0
        %v4171 = vsel %vm4142, %v604, 0
        %v4174 = vsel %vm4142, %v606, 0
        %v4177 = vsel %vm4142, %v608, 0
        %v4180 = vsel %vm4142, %v610, 0
        %v4183 = vsel %vm4142, %v612, 0
        %v4186 = vsel %vm4142, %v614, 0
        %v4189 = vsel %vm4142, %v616, 0
        %vm4191 = vcmask 1041408
        %v4193 = vsel %vm4191, %v636, 0
        %4195 = vmatprep.subr.mxu0 0.0
        %4196 = vmatpush1.msra.mxu0 %v617
        %4197 = vmatprep.subr.mxu0 0.0
        %4198 = vmatpush1.msra.mxu0 %v618
        %4199 = vmatprep.subr.mxu0 0.0
        %4200 = vmatpush1.msra.mxu0 %v619
        %4201 = vmatprep.subr.mxu0 0.0
        %4202 = vmatpush1.msra.mxu0 %v620
        %4203 = vmatprep.subr.mxu0 0.0
        %4204 = vmatpush1.msra.mxu0 %v621
        %4205 = vmatprep.subr.mxu0 0.0
        %4206 = vmatpush1.msra.mxu0 %v622
        %4207 = vmatprep.subr.mxu0 0.0
        %4208 = vmatpush1.msra.mxu0 %v623
        %4209 = vmatprep.subr.mxu0 0.0
        %4210 = vmatpush1.msra.mxu0 %v624
        %4211 = vmatprep.subr.mxu0 0.0
        %4212 = vmatpush1.msra.mxu0 %v625
        %4213 = vmatprep.subr.mxu0 0.0
        %4214 = vmatpush1.msra.mxu0 %v626
        %4215 = vmatprep.subr.mxu0 0.0
        %4216 = vmatpush1.msra.mxu0 %v627
        %4217 = vmatprep.subr.mxu0 0.0
        %4218 = vmatpush1.msra.mxu0 %v628
        %4219 = vmatprep.subr.mxu0 0.0
        %4220 = vmatpush1.msra.mxu0 %v629
        %4221 = vmatprep.subr.mxu0 0.0
        %4222 = vmatpush1.msra.mxu0 %v630
        %4223 = vmatprep.subr.mxu0 0.0
        %4224 = vmatpush1.msra.mxu0 %v631
        %4225 = vmatprep.subr.mxu0 0.0
        %4226 = vmatpush1.msra.mxu0 %v632
        %4227 = vmatprep.subr.mxu0 0.0
        %4228 = vmatpush1.msra.mxu0 %v633
        %4229 = vmatprep.subr.mxu0 0.0
        %4230 = vmatpush1.msra.mxu0 %v634
        %4231 = vmatprep.subr.mxu0 0.0
        %4232 = vmatpush1.msra.mxu0 %v635
        %4233 = vmatprep.subr.mxu0 0.0
        %4234 = vmatpush1.msra.mxu0 %v4193
        %4235 = vmatprep.subr.mxu0 0.0
        %4236 = vmatpush1.msra.mxu0 0.0
        %4237 = vmatprep.subr.mxu0 0.0
        %4238 = vmatpush1.msra.mxu0 0.0
        %4239 = vmatprep.subr.mxu0 0.0
        %4240 = vmatpush1.msra.mxu0 0.0
        %4241 = vmatprep.subr.mxu0 0.0
        %4242 = vmatpush1.msra.mxu0 0.0
        %4243 = vmatprep.subr.mxu0 0.0
        %4244 = vmatpush1.msra.mxu0 0.0
        %4245 = vmatprep.subr.mxu0 0.0
        %4246 = vmatpush1.msra.mxu0 0.0
        %4247 = vmatprep.subr.mxu0 0.0
        %4248 = vmatpush1.msra.mxu0 0.0
        %4249 = vmatprep.subr.mxu0 0.0
        %4250 = vmatpush1.msra.mxu0 0.0
        %4251 = vmatprep.subr.mxu0 0.0
        %4252 = vmatpush1.msra.mxu0 0.0
        %4253 = vmatprep.subr.mxu0 0.0
        %4254 = vmatpush1.msra.mxu0 0.0
        %4255 = vmatprep.subr.mxu0 0.0
        %4256 = vmatpush1.msra.mxu0 0.0
        %4257 = vmatprep.subr.mxu0 0.0
        %4258 = vmatpush1.msra.mxu0 0.0
        %4259 = vmatprep.mubr.f32.mxu0 %v4144
        %4260 = vmatmul.mubr.f32.gmra.mrb[0].mxu0 %v585
        %v4261 = vpop.f32.mrb[0].mxu0
        %v4262 = vadd.f32 %v4064, %v4261
        %v4263 = vpop.f32.mrb[0].mxu0
        %4264 = vmatprep.mubr.f32.mxu0 %v4147
        %4265 = vmatmul.mubr.f32.gmra.mrb[0].mxu0 %v587
        %v4266 = vpop.f32.mrb[0].mxu0
        %v4267 = vadd.f32 %v4069, %v4266
        %v4268 = vpop.f32.mrb[0].mxu0
        %4269 = vmatprep.mubr.f32.mxu0 %v4150
        %4270 = vmatmul.mubr.f32.gmra.mrb[0].mxu0 %v589
        %v4271 = vpop.f32.mrb[0].mxu0
        %v4272 = vadd.f32 %v4074, %v4271
        %v4273 = vpop.f32.mrb[0].mxu0
        %4274 = vmatprep.mubr.f32.mxu0 %v4153
        %4275 = vmatmul.mubr.f32.gmra.mrb[0].mxu0 %v591
        %v4276 = vpop.f32.mrb[0].mxu0
        %v4277 = vadd.f32 %v4079, %v4276
        %v4278 = vpop.f32.mrb[0].mxu0
        %4279 = vmatprep.mubr.f32.mxu0 %v4156
        %4280 = vmatmul.mubr.f32.gmra.mrb[0].mxu0 %v593
        %v4281 = vpop.f32.mrb[0].mxu0
        %v4282 = vadd.f32 %v4084, %v4281
        %v4283 = vpop.f32.mrb[0].mxu0
        %4284 = vmatprep.mubr.f32.mxu0 %v4159
        %4285 = vmatmul.mubr.f32.gmra.mrb[0].mxu0 %v595
        %v4286 = vpop.f32.mrb[0].mxu0
        %v4287 = vadd.f32 %v4089, %v4286
        %v4288 = vpop.f32.mrb[0].mxu0
        %4289 = vmatprep.mubr.f32.mxu0 %v4162
        %4290 = vmatmul.mubr.f32.gmra.mrb[0].mxu0 %v597
        %v4291 = vpop.f32.mrb[0].mxu0
        %v4292 = vadd.f32 %v4094, %v4291
        %v4293 = vpop.f32.mrb[0].mxu0
        %4294 = vmatprep.mubr.f32.mxu0 %v4165
        %4295 = vmatmul.mubr.f32.gmra.mrb[0].mxu0 %v599
        %v4296 = vpop.f32.mrb[0].mxu0
        %v4297 = vadd.f32 %v4099, %v4296
        %v4298 = vpop.f32.mrb[0].mxu0
        %4299 = vmatprep.mubr.f32.mxu0 %v4168
        %4300 = vmatmul.mubr.f32.gmra.mrb[0].mxu0 %v601
        %v4301 = vpop.f32.mrb[0].mxu0
        %v4302 = vadd.f32 %v4104, %v4301
        %v4303 = vpop.f32.mrb[0].mxu0
        %4304 = vmatprep.mubr.f32.mxu0 %v4171
        %4305 = vmatmul.mubr.f32.gmra.mrb[0].mxu0 %v603
        %v4306 = vpop.f32.mrb[0].mxu0
        %v4307 = vadd.f32 %v4109, %v4306
        %v4308 = vpop.f32.mrb[0].mxu0
        %4309 = vmatprep.mubr.f32.mxu0 %v4174
        %4310 = vmatmul.mubr.f32.gmra.mrb[0].mxu0 %v605
        %v4311 = vpop.f32.mrb[0].mxu0
        %v4312 = vadd.f32 %v4114, %v4311
        %v4313 = vpop.f32.mrb[0].mxu0
        %4314 = vmatprep.mubr.f32.mxu0 %v4177
        %4315 = vmatmul.mubr.f32.gmra.mrb[0].mxu0 %v607
        %v4316 = vpop.f32.mrb[0].mxu0
        %v4317 = vadd.f32 %v4119, %v4316
        %v4318 = vpop.f32.mrb[0].mxu0
        %4319 = vmatprep.mubr.f32.mxu0 %v4180
        %4320 = vmatmul.mubr.f32.gmra.mrb[0].mxu0 %v609
        %v4321 = vpop.f32.mrb[0].mxu0
        %v4322 = vadd.f32 %v4124, %v4321
        %v4323 = vpop.f32.mrb[0].mxu0
        %4324 = vmatprep.mubr.f32.mxu0 %v4183
        %4325 = vmatmul.mubr.f32.gmra.mrb[0].mxu0 %v611
        %v4326 = vpop.f32.mrb[0].mxu0
        %v4327 = vadd.f32 %v4129, %v4326
        %v4328 = vpop.f32.mrb[0].mxu0
        %4329 = vmatprep.mubr.f32.mxu0 %v4186
        %4330 = vmatmul.mubr.f32.gmra.mrb[0].mxu0 %v613
        %v4331 = vpop.f32.mrb[0].mxu0
        %v4332 = vadd.f32 %v4134, %v4331
        %v4333 = vpop.f32.mrb[0].mxu0
        %4334 = vmatprep.mubr.f32.mxu0 %v4189
        %4335 = vmatmul.mubr.f32.gmra.mrb[0].mxu0 %v615
        %v4336 = vpop.f32.mrb[0].mxu0
        %v4337 = vadd.f32 %v4139, %v4336
        %v4338 = vpop.f32.mrb[0].mxu0
        %4339 = vdwg.mxu0
        %4340 = vadd.xlane.f32.xlu0 %v4262
        %v4341 = vpop.xlane.xlu0 %4340
        %4342 = vadd.xlane.f32.xlu0 %v4267
        %v4343 = vpop.xlane.xlu0 %4342
        %4344 = vadd.xlane.f32.xlu0 %v4272
        %v4345 = vpop.xlane.xlu0 %4344
        %4346 = vadd.xlane.f32.xlu0 %v4277
        %v4347 = vpop.xlane.xlu0 %4346
        %4348 = vadd.xlane.f32.xlu0 %v4282
        %v4349 = vpop.xlane.xlu0 %4348
        %4350 = vadd.xlane.f32.xlu0 %v4287
        %v4351 = vpop.xlane.xlu0 %4350
        %4352 = vadd.xlane.f32.xlu0 %v4292
        %v4353 = vpop.xlane.xlu0 %4352
        %4354 = vadd.xlane.f32.xlu0 %v4297
        %v4355 = vpop.xlane.xlu0 %4354
        %4356 = vadd.xlane.f32.xlu0 %v4302
        %v4357 = vpop.xlane.xlu0 %4356
        %4358 = vadd.xlane.f32.xlu0 %v4307
        %v4359 = vpop.xlane.xlu0 %4358
        %4360 = vadd.xlane.f32.xlu0 %v4312
        %v4361 = vpop.xlane.xlu0 %4360
        %4362 = vadd.xlane.f32.xlu0 %v4317
        %v4363 = vpop.xlane.xlu0 %4362
        %4364 = vadd.xlane.f32.xlu0 %v4322
        %v4365 = vpop.xlane.xlu0 %4364
        %4366 = vadd.xlane.f32.xlu0 %v4327
        %v4367 = vpop.xlane.xlu0 %4366
        %4368 = vadd.xlane.f32.xlu0 %v4332
        %v4369 = vpop.xlane.xlu0 %4368
        %4370 = vadd.xlane.f32.xlu0 %v4337
        %v4371 = vpop.xlane.xlu0 %4370
        %v4372 = vrcp.pop 128.0
        %v4373 = vmul.f32 %v4341, %v4372
        %v4374 = vmul.f32 %v4343, %v4372
        %v4375 = vmul.f32 %v4345, %v4372
        %v4376 = vmul.f32 %v4347, %v4372
        %v4377 = vmul.f32 %v4349, %v4372
        %v4378 = vmul.f32 %v4351, %v4372
        %v4379 = vmul.f32 %v4353, %v4372
        %v4380 = vmul.f32 %v4355, %v4372
        %v4381 = vmul.f32 %v4357, %v4372
        %v4382 = vmul.f32 %v4359, %v4372
        %v4383 = vmul.f32 %v4361, %v4372
        %v4384 = vmul.f32 %v4363, %v4372
        %v4385 = vmul.f32 %v4365, %v4372
        %v4386 = vmul.f32 %v4367, %v4372
        %v4387 = vmul.f32 %v4369, %v4372
        %v4388 = vmul.f32 %v4371, %v4372
        %v4389 = vsub.f32 %v4262, %v4373
        %v4390 = vsub.f32 %v4267, %v4374
        %v4391 = vsub.f32 %v4272, %v4375
        %v4392 = vsub.f32 %v4277, %v4376
        %v4393 = vsub.f32 %v4282, %v4377
        %v4394 = vsub.f32 %v4287, %v4378
        %v4395 = vsub.f32 %v4292, %v4379
        %v4396 = vsub.f32 %v4297, %v4380
        %v4397 = vsub.f32 %v4302, %v4381
        %v4398 = vsub.f32 %v4307, %v4382
        %v4399 = vsub.f32 %v4312, %v4383
        %v4400 = vsub.f32 %v4317, %v4384
        %v4401 = vsub.f32 %v4322, %v4385
        %v4402 = vsub.f32 %v4327, %v4386
        %v4403 = vsub.f32 %v4332, %v4387
        %v4404 = vsub.f32 %v4337, %v4388
        %v4405 = vmul.f32 %v4389, %v4389
        %v4406 = vmul.f32 %v4390, %v4390
        %v4407 = vmul.f32 %v4391, %v4391
        %v4408 = vmul.f32 %v4392, %v4392
        %v4409 = vmul.f32 %v4393, %v4393
        %v4410 = vmul.f32 %v4394, %v4394
        %v4411 = vmul.f32 %v4395, %v4395
        %v4412 = vmul.f32 %v4396, %v4396
        %v4413 = vmul.f32 %v4397, %v4397
        %v4414 = vmul.f32 %v4398, %v4398
        %v4415 = vmul.f32 %v4399, %v4399
        %v4416 = vmul.f32 %v4400, %v4400
        %v4417 = vmul.f32 %v4401, %v4401
        %v4418 = vmul.f32 %v4402, %v4402
        %v4419 = vmul.f32 %v4403, %v4403
        %v4420 = vmul.f32 %v4404, %v4404
        %4421 = vadd.xlane.f32.xlu0 %v4405
        %v4422 = vpop.xlane.xlu0 %4421
        %4423 = vadd.xlane.f32.xlu0 %v4406
        %v4424 = vpop.xlane.xlu0 %4423
        %4425 = vadd.xlane.f32.xlu0 %v4407
        %v4426 = vpop.xlane.xlu0 %4425
        %4427 = vadd.xlane.f32.xlu0 %v4408
        %v4428 = vpop.xlane.xlu0 %4427
        %4429 = vadd.xlane.f32.xlu0 %v4409
        %v4430 = vpop.xlane.xlu0 %4429
        %4431 = vadd.xlane.f32.xlu0 %v4410
        %v4432 = vpop.xlane.xlu0 %4431
        %4433 = vadd.xlane.f32.xlu0 %v4411
        %v4434 = vpop.xlane.xlu0 %4433
        %4435 = vadd.xlane.f32.xlu0 %v4412
        %v4436 = vpop.xlane.xlu0 %4435
        %4437 = vadd.xlane.f32.xlu0 %v4413
        %v4438 = vpop.xlane.xlu0 %4437
        %4439 = vadd.xlane.f32.xlu0 %v4414
        %v4440 = vpop.xlane.xlu0 %4439
        %4441 = vadd.xlane.f32.xlu0 %v4415
        %v4442 = vpop.xlane.xlu0 %4441
        %4443 = vadd.xlane.f32.xlu0 %v4416
        %v4444 = vpop.xlane.xlu0 %4443
        %4445 = vadd.xlane.f32.xlu0 %v4417
        %v4446 = vpop.xlane.xlu0 %4445
        %4447 = vadd.xlane.f32.xlu0 %v4418
        %v4448 = vpop.xlane.xlu0 %4447
        %4449 = vadd.xlane.f32.xlu0 %v4419
        %v4450 = vpop.xlane.xlu0 %4449
        %4451 = vadd.xlane.f32.xlu0 %v4420
        %v4452 = vpop.xlane.xlu0 %4451
        %v4453 = vmul.f32 %v4422, %v4372
        %v4454 = vmul.f32 %v4424, %v4372
        %v4455 = vmul.f32 %v4426, %v4372
        %v4456 = vmul.f32 %v4428, %v4372
        %v4457 = vmul.f32 %v4430, %v4372
        %v4458 = vmul.f32 %v4432, %v4372
        %v4459 = vmul.f32 %v4434, %v4372
        %v4460 = vmul.f32 %v4436, %v4372
        %v4461 = vmul.f32 %v4438, %v4372
        %v4462 = vmul.f32 %v4440, %v4372
        %v4463 = vmul.f32 %v4442, %v4372
        %v4464 = vmul.f32 %v4444, %v4372
        %v4465 = vmul.f32 %v4446, %v4372
        %v4466 = vmul.f32 %v4448, %v4372
        %v4467 = vmul.f32 %v4450, %v4372
        %v4468 = vmul.f32 %v4452, %v4372
        %v4469 = vadd.f32 %v4453, 1e-12
        %v4470 = vadd.f32 %v4454, 1e-12
        %v4471 = vadd.f32 %v4455, 1e-12
        %v4472 = vadd.f32 %v4456, 1e-12
        %v4473 = vadd.f32 %v4457, 1e-12
        %v4474 = vadd.f32 %v4458, 1e-12
        %v4475 = vadd.f32 %v4459, 1e-12
        %v4476 = vadd.f32 %v4460, 1e-12
        %v4477 = vadd.f32 %v4461, 1e-12
        %v4478 = vadd.f32 %v4462, 1e-12
        %v4479 = vadd.f32 %v4463, 1e-12
        %v4480 = vadd.f32 %v4464, 1e-12
        %v4481 = vadd.f32 %v4465, 1e-12
        %v4482 = vadd.f32 %v4466, 1e-12
        %v4483 = vadd.f32 %v4467, 1e-12
        %v4484 = vadd.f32 %v4468, 1e-12
        %v4485 = vrsqrt.pop %v4469
        %v4486 = vrsqrt.pop %v4470
        %v4487 = vrsqrt.pop %v4471
        %v4488 = vrsqrt.pop %v4472
        %v4489 = vrsqrt.pop %v4473
        %v4490 = vrsqrt.pop %v4474
        %v4491 = vrsqrt.pop %v4475
        %v4492 = vrsqrt.pop %v4476
        %v4493 = vrsqrt.pop %v4477
        %v4494 = vrsqrt.pop %v4478
        %v4495 = vrsqrt.pop %v4479
        %v4496 = vrsqrt.pop %v4480
        %v4497 = vrsqrt.pop %v4481
        %v4498 = vrsqrt.pop %v4482
        %v4499 = vrsqrt.pop %v4483
        %v4500 = vrsqrt.pop %v4484
        %v4501 = vmul.f32 %v4389, %v4485
        %v4502 = vmul.f32 %v4390, %v4486
        %v4503 = vmul.f32 %v4391, %v4487
        %v4504 = vmul.f32 %v4392, %v4488
        %v4505 = vmul.f32 %v4393, %v4489
        %v4506 = vmul.f32 %v4394, %v4490
        %v4507 = vmul.f32 %v4395, %v4491
        %v4508 = vmul.f32 %v4396, %v4492
        %v4509 = vmul.f32 %v4397, %v4493
        %v4510 = vmul.f32 %v4398, %v4494
        %v4511 = vmul.f32 %v4399, %v4495
        %v4512 = vmul.f32 %v4400, %v4496
        %v4513 = vmul.f32 %v4401, %v4497
        %v4514 = vmul.f32 %v4402, %v4498
        %v4515 = vmul.f32 %v4403, %v4499
        %v4516 = vmul.f32 %v4404, %v4500
        %v4517 = vld [vmem:[%s3] sm:$0x1]
        %v4519 = vlaneseq
        %v4520 = vshrl.u32 %v4519, 7
        %v4521 = vsub.s32 0, %v4520
        %v4522 = vrot.slane %v4517, %v4521
        %v4524 = vmul.f32 %v4501, %v4522
        %v4525 = vmul.f32 %v4502, %v4522
        %v4526 = vmul.f32 %v4503, %v4522
        %v4527 = vmul.f32 %v4504, %v4522
        %v4528 = vmul.f32 %v4505, %v4522
        %v4529 = vmul.f32 %v4506, %v4522
        %v4530 = vmul.f32 %v4507, %v4522
        %v4531 = vmul.f32 %v4508, %v4522
        %v4532 = vmul.f32 %v4509, %v4522
        %v4533 = vmul.f32 %v4510, %v4522
        %v4534 = vmul.f32 %v4511, %v4522
        %v4535 = vmul.f32 %v4512, %v4522
        %v4536 = vmul.f32 %v4513, %v4522
        %v4537 = vmul.f32 %v4514, %v4522
        %v4538 = vmul.f32 %v4515, %v4522
        %v4539 = vmul.f32 %v4516, %v4522
        %v4540 = vld [vmem:[%s4] sm:$0x1]
        %v4542 = vlaneseq
        %v4543 = vshrl.u32 %v4542, 7
        %v4544 = vsub.s32 0, %v4543
        %v4545 = vrot.slane %v4540, %v4544
        %v4547 = vadd.f32 %v4524, %v4545
        %v4548 = vadd.f32 %v4525, %v4545
        %v4549 = vadd.f32 %v4526, %v4545
        %v4550 = vadd.f32 %v4527, %v4545
        %v4551 = vadd.f32 %v4528, %v4545
        %v4552 = vadd.f32 %v4529, %v4545
        %v4553 = vadd.f32 %v4530, %v4545
        %v4554 = vadd.f32 %v4531, %v4545
        %v4555 = vadd.f32 %v4532, %v4545
        %v4556 = vadd.f32 %v4533, %v4545
        %v4557 = vadd.f32 %v4534, %v4545
        %v4558 = vadd.f32 %v4535, %v4545
        %v4559 = vadd.f32 %v4536, %v4545
        %v4560 = vadd.f32 %v4537, %v4545
        %v4561 = vadd.f32 %v4538, %v4545
        %v4562 = vadd.f32 %v4539, %v4545
        %4563 = vst [vmem:[%s218] sm:$0xff] %v4547
        %4564 = vst [vmem:[%s218 + $0x8] sm:$0xff] %v4548
        %4565 = vst [vmem:[%s218 + $0x10] sm:$0xff] %v4549
        %4566 = vst [vmem:[%s218 + $0x18] sm:$0xff] %v4550
        %4567 = vst [vmem:[%s218 + $0x20] sm:$0xff] %v4551
        %4568 = vst [vmem:[%s218 + $0x28] sm:$0xff] %v4552
        %4569 = vst [vmem:[%s218 + $0x30] sm:$0xff] %v4553
        %4570 = vst [vmem:[%s218 + $0x38] sm:$0xff] %v4554
        %4571 = vst [vmem:[%s218 + $0x40] sm:$0xff] %v4555
        %4572 = vst [vmem:[%s218 + $0x48] sm:$0xff] %v4556
        %4573 = vst [vmem:[%s218 + $0x50] sm:$0xff] %v4557
        %4574 = vst [vmem:[%s218 + $0x58] sm:$0xff] %v4558
        %4575 = vst [vmem:[%s218 + $0x60] sm:$0xff] %v4559
        %4576 = vst [vmem:[%s218 + $0x68] sm:$0xff] %v4560
        %4577 = vst [vmem:[%s218 + $0x70] sm:$0xff] %v4561
        %4578 = vst [vmem:[%s218 + $0x78] sm:$0xff] %v4562
        %s4579 = sand.u32 %s137, 1
        %s4580 = scalar_lea.sflag [#allocation3], %s4579
        %s4581 = sand.u32 %s137, 1
        %s4582 = smul.addr %s4581, 128
        %s4583 = scalar_lea.vmem [#allocation2], %s4582
        // Predicated region
        $region41: #{tpu_custom_call.1} parent=39 // pred_check
          %p4584 = pneg %p147
        $region42: #{tpu_custom_call.1} parent=39 // pred_check_branch
          %4586 = sbr.rel (%p4584) target = $region44
        $region43: #{tpu_custom_call.1} parent=39 // pred_region
          %s4587 = smul.u32 16, %s19
          %s4589 = ssub.s32 2048, 2048
          %4590 = vsyncadd %s4580, %s4589
          %s4591 = smul.addr %s4587, 128
          %s4592 = scalar_lea.hbm %s5, %s4591
          %s4593 = sshll.u32 %s4583, 4
          %s4594 = int_to_ptr.vmem [resolvable:$true] %s4593
          %4599 = dma.vmem_to_hbm [thread:$0]  %s4594, 2048, %s4592, %s4580, 128, 128, 8
        $region44: #{tpu_custom_call.1} parent=39 // pred_fallthru
          _
      $region40: #{tpu_custom_call.1} parent=5 // pred_fallthru
        _
      %p4600 = scmp.le.s32.totalorder 2, %s14
      // Predicated region
      $region45: #{tpu_custom_call.1} parent=5 // pred_check
        %p4601 = pneg %p4600
      $region46: #{tpu_custom_call.1} parent=5 // pred_check_branch
        %4603 = sbr.rel (%p4601) target = $region48
      $region47: #{tpu_custom_call.1} parent=5 // pred_region
        %s4604 = ssub.s32 %s14, 2
        // Predicated region
        $region49: #{tpu_custom_call.1} parent=47 // pred_check
          %p4605 = pneg %p153
        $region50: #{tpu_custom_call.1} parent=47 // pred_check_branch
          %4607 = sbr.rel (%p4605) target = $region52
        $region51: #{tpu_custom_call.1} parent=47 // pred_region
          %s4608 = sand.u32 %s138, 1
          %s4609 = scalar_lea.sflag [#allocation3], %s4608
          %s4610 = sand.u32 %s138, 1
          %s4611 = smul.addr %s4610, 128
          %s4612 = scalar_lea.vmem [#allocation2], %s4611
          %4613 = dma.done %s4609, 2048
        $region52: #{tpu_custom_call.1} parent=47 // pred_fallthru
          _
      $region48: #{tpu_custom_call.1} parent=5 // pred_fallthru
        _
    $region6: #{tpu_custom_call.1} parent=1 // loop_footer
      %s18 = sadd.s32 1, %s14
    $region7: #{tpu_custom_call.1} parent=1 // loop_footer_branch
      %13 = sbr.rel target = $region3
    $region8: #{tpu_custom_call.1} parent=1 // loop_exit
      _
    %4614 = vsyncpa [#allocation3], 1
    %s4615 = scalar_lea.sflag [#allocation3], 1
    %4616 = vsyncpa %s4615, 1

</llo_original>
